<compile_context>
chip_gen: v6e
topology: v6e:2x2x1
jax: 0.10.0
libtpu: 0.0.40
codegen_flags: <defaults>
</compile_context>

<pallas_src>
import numpy as np
import jax
import jax.numpy as jnp
from jax.experimental import pallas as pl
from jax.experimental.pallas import tpu as pltpu

# ----------------------------- configuration --------------------------------
PATCH = 8
IMG = 16
IN_CH = 3
HIDDEN = 32
N_HEADS = 4
N_LAYERS = 2
N_CLASSES = 10
BATCH = 2
EPS = 1e-5
LANE = 128                         # padded lane width for logits / vector table

N_PATCH = (IMG // PATCH) ** 2      # 4 patches
SEQ = N_PATCH + 1                  # 5 tokens (cls + patches)

# vector-table layout: 8 rows per layer, 3 tail rows
#   per layer l (base = 8*l): 0=bqkv(96 lanes) 1=bo 2=g1 3=be1 4=bb1 5=bb2 6=g2 7=be2
#   tail (base = 8*L):        0=gh 1=beh 2=bh (128 lanes)
ROWS_PER_LAYER = 8


# ------------------------------ small helpers -------------------------------
def _dot(a, b):
    return jnp.dot(a, b, preferred_element_type=jnp.float32)


def _dot_t(a, b):
    # contract last dims of both: (M, K) x (N, K) -> (M, N)   (i.e. a @ b.T)
    return jax.lax.dot_general(a, b, (((1,), (1,)), ((), ())),
                               preferred_element_type=jnp.float32)


def _gelu(x):
    return 0.5 * x * (1.0 + jnp.tanh(0.7978845608028654 * (x + 0.044715 * x * x * x)))


def _layernorm(v, g, b):
    mu = jnp.mean(v, axis=-1, keepdims=True)
    var = jnp.mean((v - mu) ** 2, axis=-1, keepdims=True)
    return (v - mu) * jax.lax.rsqrt(var + EPS) * g + b


# --------------------------- fused ViT kernel --------------------------------
def _vit_kernel(patches_ref, wp_ref, slab_ref, mask_ref,
                wqkv_ref, wmat_ref, vec_ref, wh_ref, out_ref):
    D = HIDDEN
    H = N_HEADS
    dh = D // H
    L = N_LAYERS
    B = out_ref.shape[0]

    def vec(r, w=D):                       # (1, w) row from the packed table
        return vec_ref[r:r + 1, :w]

    # patch-embed matmul; rows [0,B) of patches are zero so those rows become
    # the cls token via slab_ref[0] (bias/cls slab), rows [B,..) get b_patch.
    x = _dot(patches_ref[...], wp_ref[...]) + slab_ref[0]          # (B*S, D)
    pe = slab_ref[1]                                               # (B*S, D)
    neg = mask_ref[...]                    # 0 same batch / -1e9 cross batch

    for l in range(L):                     # static unroll over layers
        base = l * ROWS_PER_LAYER
        xr = x + pe                        # PE added at the start of each layer

        # ---- fused QKV: one (B*S, D) @ (D, 3D) matmul (scale folded in Wq) --
        qkv = _dot(xr, wqkv_ref[l]) + vec(base + 0, 3 * D)         # (B*S, 3D)

        ctx_heads = []
        for h in range(H):                 # static unroll over heads
            q = qkv[:, h * dh:(h + 1) * dh]
            k = qkv[:, D + h * dh:D + (h + 1) * dh]
            v = qkv[:, 2 * D + h * dh:2 * D + (h + 1) * dh]
            s = _dot_t(q, k) + neg                                 # (B*S, B*S)
            s = s - jnp.max(s, axis=-1, keepdims=True)
            p = jnp.exp(s)
            p = p * pl.reciprocal(jnp.sum(p, axis=-1, keepdims=True), approx=True)
            ctx_heads.append(_dot(p, v))                           # (B*S, dh)

        # ---- fused Wo: single K=32 matmul on the lane-concatenated ctx ------
        ctx = jnp.concatenate(ctx_heads, axis=-1)                  # (B*S, D)
        attn = _dot(ctx, wmat_ref[l, 0]) + vec(base + 1)           # (B*S, D)

        x = _layernorm(xr + attn, vec(base + 2), vec(base + 3))
        hid = _gelu(_dot(x, wmat_ref[l, 1]) + vec(base + 4))
        ffn = _dot(hid, wmat_ref[l, 2]) + vec(base + 5)
        x = _layernorm(x + ffn, vec(base + 6), vec(base + 7))

    # ---- fused head: LayerNorm + Linear on the cls rows (rows 0..B-1) -------
    tail = L * ROWS_PER_LAYER
    cls_final = x[:B, :]                                           # (B, D)
    xn = _layernorm(cls_final, vec(tail + 0), vec(tail + 1))
    out_ref[...] = _dot(xn, wh_ref[...]) + vec(tail + 2, LANE)     # (B, 128)


def _full_spec(shape):
    zeros = (0,) * len(shape)
    return pl.BlockSpec(shape, lambda i: zeros)


# ------------------------------ ViT forward ----------------------------------
def vit_forward(x, params):
    B, C, Hi, Wi = x.shape
    P = PATCH
    Hp, Wp = Hi // P, Wi // P
    N = Hp * Wp
    D = HIDDEN
    S = N + 1
    H = N_HEADS
    dh = D // H
    L = N_LAYERS
    scale = 1.0 / float(np.sqrt(dh))

    def pad128(v):                                   # (1, k) -> (1, 128)
        return jnp.zeros((1, LANE), jnp.float32).at[:, :v.shape[-1]].set(v)

    # glue: NCHW -> (B*N, C*P*P) patch rows (same flatten order as Conv2d weight),
    # padded with B leading zero rows so the matmul output is the token slab.
    patches = x.reshape(B, C, Hp, P, Wp, P).transpose(0, 2, 4, 1, 3, 5)
    patches = patches.reshape(B * N, C * P * P)
    patches_slab = jnp.zeros((B * S, C * P * P), jnp.float32).at[B:].set(patches)

    # slab table: row 0 = per-row embedding bias (cls token for rows [0,B),
    # patch-embed bias elsewhere); row 1 = positional encoding in slab layout.
    cls = params['cls_token'].reshape(1, D)
    bias_slab = jnp.concatenate(
        [jnp.broadcast_to(cls, (B, D)),
         jnp.broadcast_to(params['b_patch'], (B * N, D))], axis=0)      # (B*S, D)
    pe = params['pe'][:S]                                               # (S, D)
    pe_slab = jnp.concatenate([jnp.broadcast_to(pe[0:1], (B, D)),
                               jnp.tile(pe[1:S], (B, 1))], axis=0)      # (B*S, D)
    slab_tab = jnp.stack([bias_slab, pe_slab], axis=0)                  # (2,B*S,D)

    # static block-diagonal additive attention mask over the slab.
    batch_id = np.concatenate([np.arange(B), np.repeat(np.arange(B), N)])
    neg_mask = np.where(batch_id[:, None] == batch_id[None, :], 0.0, -1e9)
    neg_mask = jnp.asarray(neg_mask, jnp.float32)                       # (BS,BS)

    lyr = params['layers']
    # fused QKV weights (attention scale folded into Wq), stacked Wo/W1/W2.
    wqkv = jnp.concatenate([lyr['wq'] * scale, lyr['wk'], lyr['wv']], axis=-1)  # (L,D,3D)
    wmats = jnp.stack([lyr['wo'], lyr['w1'], lyr['w2']], axis=1)                # (L,3,D,D)

    # packed vector table: all (1,*) biases / LayerNorm params, 128 lanes/row.
    rows = []
    for l in range(L):
        bqkv = jnp.concatenate([lyr['bq'][l] * scale, lyr['bk'][l], lyr['bv'][l]],
                               axis=-1)                                  # (1, 3D)
        rows.append(pad128(bqkv))
        for k in ('bo', 'g1', 'be1', 'bb1', 'bb2', 'g2', 'be2'):
            rows.append(pad128(lyr[k][l]))
    rows += [pad128(params['gh']), pad128(params['beh']), pad128(params['bh'])]
    vec_tab = jnp.concatenate(rows, axis=0)            # (L*8 + 3, 128)

    # lane-dense head weight: pad to 128 lanes, slice back outside the kernel.
    wh_pad = jnp.zeros((D, LANE), jnp.float32).at[:, :N_CLASSES].set(params['wh'])

    args = (patches_slab, params['w_patch'], slab_tab, neg_mask,
            wqkv, wmats, vec_tab, wh_pad)

    logits_pad = pl.pallas_call(
        _vit_kernel,
        out_shape=jax.ShapeDtypeStruct((B, LANE), jnp.float32),
        grid=(1,),
        in_specs=[_full_spec(a.shape) for a in args],
        out_specs=_full_spec((B, LANE)),
        compiler_params=pltpu.CompilerParams(dimension_semantics=("arbitrary",)),
    )(*args)
    return logits_pad[:, :N_CLASSES]


# ------------------------------ parameters -----------------------------------
def sinusoidal_pe(S, D):
    pos = np.arange(S, dtype=np.float64)[:, None]
    div = np.exp(np.arange(0, D, 2, dtype=np.float64) * (-np.log(10000.0) / D))
    pe = np.zeros((S, D), dtype=np.float64)
    pe[:, 0::2] = np.sin(pos * div)
    pe[:, 1::2] = np.cos(pos * div)
    return jnp.asarray(pe, jnp.float32)


def init_params(key):
    D = HIDDEN
    K = IN_CH * PATCH * PATCH
    S = SEQ
    ks = iter(jax.random.split(key, 64))

    def nrm(shape, scale=0.02):
        return (scale * jax.random.normal(next(ks), shape)).astype(jnp.float32)

    params = {
        'w_patch': nrm((K, D)),
        'b_patch': nrm((1, D)),
        'cls_token': jnp.zeros((1, 1, D), jnp.float32),   # matches torch.zeros init
        'pe': sinusoidal_pe(S, D),
        'gh': jnp.ones((1, D), jnp.float32),
        'beh': jnp.zeros((1, D), jnp.float32),
        'wh': nrm((D, N_CLASSES)),
        'bh': nrm((1, N_CLASSES)),
    }

    def layer_params():
        return {
            'wq': nrm((D, D)), 'bq': nrm((1, D)),
            'wk': nrm((D, D)), 'bk': nrm((1, D)),
            'wv': nrm((D, D)), 'bv': nrm((1, D)),
            'wo': nrm((D, D)), 'bo': nrm((1, D)),
            'g1': jnp.ones((1, D), jnp.float32), 'be1': jnp.zeros((1, D), jnp.float32),
            'w1': nrm((D, D)), 'bb1': nrm((1, D)),
            'w2': nrm((D, D)), 'bb2': nrm((1, D)),
            'g2': jnp.ones((1, D), jnp.float32), 'be2': jnp.zeros((1, D), jnp.float32),
        }

    per_layer = [layer_params() for _ in range(N_LAYERS)]
    params['layers'] = {k: jnp.stack([lp[k] for lp in per_layer], axis=0)
                        for k in per_layer[0]}
    return params


# --------------------------- numpy reference ----------------------------------
def ref_forward(x, params):
    f64 = lambda a: np.asarray(a, np.float64)

    def ln(v, g, b):
        mu = v.mean(-1, keepdims=True)
        var = ((v - mu) ** 2).mean(-1, keepdims=True)
        return (v - mu) / np.sqrt(var + EPS) * g + b

    def gelu(v):
        return 0.5 * v * (1.0 + np.tanh(np.sqrt(2.0 / np.pi) * (v + 0.044715 * v ** 3)))

    x = f64(x)
    B, C, Hi, Wi = x.shape
    P = PATCH
    Hp, Wp = Hi // P, Wi // P
    N = Hp * Wp
    D = HIDDEN
    dh = D // N_HEADS
    patches = x.reshape(B, C, Hp, P, Wp, P).transpose(0, 2, 4, 1, 3, 5)
    patches = patches.reshape(B, N, C * P * P)
    emb = patches @ f64(params['w_patch']) + f64(params['b_patch'])
    cls = np.broadcast_to(f64(params['cls_token'])[0], (B, 1, D))
    xt = np.concatenate([cls, emb], axis=1)
    pe = f64(params['pe'])[None, :N + 1]
    L = params['layers']['wq'].shape[0]
    for l in range(L):
        g = lambda k: f64(params['layers'][k][l])
        xt = xt + pe
        q = xt @ g('wq') + g('bq')
        k_ = xt @ g('wk') + g('bk')
        v = xt @ g('wv') + g('bv')
        heads = []
        for h in range(N_HEADS):
            sl = slice(h * dh, (h + 1) * dh)
            s = np.einsum('bqd,bkd->bqk', q[..., sl], k_[..., sl]) / np.sqrt(dh)
            s = s - s.max(-1, keepdims=True)
            p = np.exp(s)
            p = p / p.sum(-1, keepdims=True)
            heads.append(np.einsum('bqk,bkd->bqd', p, v[..., sl]))
        attn = np.concatenate(heads, -1) @ g('wo') + g('bo')
        xt = ln(xt + attn, g('g1'), g('be1'))
        hdn = gelu(xt @ g('w1') + g('bb1'))
        ffn = hdn @ g('w2') + g('bb2')
        xt = ln(xt + ffn, g('g2'), g('be2'))
    cls_final = xt[:, 0, :]
    return ln(cls_final, f64(params['gh']), f64(params['beh'])) @ f64(params['wh']) + f64(params['bh'])


# ------------------------------------ main ------------------------------------
if __name__ == "__main__":
    key = jax.random.PRNGKey(0)
    kp, kx = jax.random.split(key)
    params = init_params(kp)
    x = jax.random.normal(kx, (BATCH, IN_CH, IMG, IMG), dtype=jnp.float32)

    out = jax.jit(vit_forward)(x, params)
    out = jax.block_until_ready(out)

    ref = ref_forward(np.asarray(x), jax.tree_util.tree_map(np.asarray, params))
    err = float(np.max(np.abs(np.asarray(out, np.float64) - ref)))

    assert out.shape == (BATCH, N_CLASSES)
    assert np.isfinite(np.asarray(out)).all()
    assert err < 2e-2, f"max abs err vs reference: {err}"
    print("KERNEL_OK")
</pallas_src>

<mosaic_0001>
module attributes {stable_mosaic.version = 11 : i64} {
  func.func @_vit_kernel(%arg0: i32, %arg1: memref<10x192xf32, #tpu.memory_space<vmem>>, %arg2: memref<192x32xf32, #tpu.memory_space<vmem>>, %arg3: memref<2x10x32xf32, #tpu.memory_space<vmem>>, %arg4: memref<10x10xf32, #tpu.memory_space<vmem>>, %arg5: memref<2x32x96xf32, #tpu.memory_space<vmem>>, %arg6: memref<2x3x32x32xf32, #tpu.memory_space<vmem>>, %arg7: memref<19x128xf32, #tpu.memory_space<vmem>>, %arg8: memref<32x128xf32, #tpu.memory_space<vmem>>, %arg9: memref<2x128xf32, #tpu.memory_space<vmem>>) attributes {dimension_semantics = [#tpu.dimension_semantics<arbitrary>], iteration_bounds = array<i64: 1>, scalar_prefetch = 0 : i64, scratch_operands = 0 : i64, tpu.core_type = #tpu.core_type<tc>, window_params = [{pipeline_mode = #tpu.pipeline_mode<synchronous>, transform_indices = @transform_0, window_bounds = array<i64: 10, 192>}, {pipeline_mode = #tpu.pipeline_mode<synchronous>, transform_indices = @transform_1, window_bounds = array<i64: 192, 32>}, {pipeline_mode = #tpu.pipeline_mode<synchronous>, transform_indices = @transform_2, window_bounds = array<i64: 2, 10, 32>}, {pipeline_mode = #tpu.pipeline_mode<synchronous>, transform_indices = @transform_3, window_bounds = array<i64: 10, 10>}, {pipeline_mode = #tpu.pipeline_mode<synchronous>, transform_indices = @transform_4, window_bounds = array<i64: 2, 32, 96>}, {pipeline_mode = #tpu.pipeline_mode<synchronous>, transform_indices = @transform_5, window_bounds = array<i64: 2, 3, 32, 32>}, {pipeline_mode = #tpu.pipeline_mode<synchronous>, transform_indices = @transform_6, window_bounds = array<i64: 19, 128>}, {pipeline_mode = #tpu.pipeline_mode<synchronous>, transform_indices = @transform_7, window_bounds = array<i64: 32, 128>}, {pipeline_mode = #tpu.pipeline_mode<synchronous>, transform_indices = @transform_8, window_bounds = array<i64: 2, 128>}]} {
    %c0 = arith.constant 0 : index
    %c0_0 = arith.constant 0 : index
    %0 = vector.load %arg1[%c0, %c0_0] : memref<10x192xf32, #tpu.memory_space<vmem>>, vector<10x192xf32>
    %c0_1 = arith.constant 0 : index
    %c0_2 = arith.constant 0 : index
    %1 = vector.load %arg2[%c0_1, %c0_2] : memref<192x32xf32, #tpu.memory_space<vmem>>, vector<192x32xf32>
    %cst = arith.constant dense<0.000000e+00> : vector<10x32xf32>
    %2 = tpu.matmul %0, %1, %cst {dimension_numbers = #tpu.dot_dimension_numbers<[1], [0], [0], [1], [0, 0, 1, 1], [], []>} : vector<10x192xf32>, vector<192x32xf32>, vector<10x32xf32> -> vector<10x32xf32>
    %c0_3 = arith.constant 0 : index
    %c0_4 = arith.constant 0 : index
    %c0_5 = arith.constant 0 : index
    %3 = vector.load %arg3[%c0_3, %c0_4, %c0_5] : memref<2x10x32xf32, #tpu.memory_space<vmem>>, vector<1x10x32xf32>
    %4 = vector.shape_cast %3 : vector<1x10x32xf32> to vector<10x32xf32>
    %5 = arith.addf %2, %4 : vector<10x32xf32>
    %c1 = arith.constant 1 : index
    %c0_6 = arith.constant 0 : index
    %c0_7 = arith.constant 0 : index
    %6 = vector.load %arg3[%c1, %c0_6, %c0_7] : memref<2x10x32xf32, #tpu.memory_space<vmem>>, vector<1x10x32xf32>
    %7 = vector.shape_cast %6 : vector<1x10x32xf32> to vector<10x32xf32>
    %c0_8 = arith.constant 0 : index
    %c0_9 = arith.constant 0 : index
    %8 = vector.load %arg4[%c0_8, %c0_9] : memref<10x10xf32, #tpu.memory_space<vmem>>, vector<10x10xf32>
    %9 = arith.addf %5, %7 : vector<10x32xf32>
    %c0_10 = arith.constant 0 : index
    %c0_11 = arith.constant 0 : index
    %c0_12 = arith.constant 0 : index
    %10 = vector.load %arg5[%c0_10, %c0_11, %c0_12] : memref<2x32x96xf32, #tpu.memory_space<vmem>>, vector<1x32x96xf32>
    %11 = vector.shape_cast %10 : vector<1x32x96xf32> to vector<32x96xf32>
    %cst_13 = arith.constant dense<0.000000e+00> : vector<10x96xf32>
    %12 = tpu.matmul %9, %11, %cst_13 {dimension_numbers = #tpu.dot_dimension_numbers<[1], [0], [0], [1], [0, 0, 1, 1], [], []>} : vector<10x32xf32>, vector<32x96xf32>, vector<10x96xf32> -> vector<10x96xf32>
    %c0_14 = arith.constant 0 : index
    %c0_15 = arith.constant 0 : index
    %13 = vector.load %arg7[%c0_14, %c0_15] : memref<19x128xf32, #tpu.memory_space<vmem>>, vector<1x96xf32>
    %14 = vector.broadcast %13 : vector<1x96xf32> to vector<10x96xf32>
    %15 = arith.addf %12, %14 : vector<10x96xf32>
    %16 = vector.extract_strided_slice %15 {offsets = [0, 0], sizes = [10, 8], strides = [1, 1]} : vector<10x96xf32> to vector<10x8xf32>
    %17 = vector.extract_strided_slice %15 {offsets = [0, 32], sizes = [10, 8], strides = [1, 1]} : vector<10x96xf32> to vector<10x8xf32>
    %18 = vector.extract_strided_slice %15 {offsets = [0, 64], sizes = [10, 8], strides = [1, 1]} : vector<10x96xf32> to vector<10x8xf32>
    %cst_16 = arith.constant dense<0.000000e+00> : vector<10x10xf32>
    %19 = tpu.matmul %16, %17, %cst_16 {dimension_numbers = #tpu.dot_dimension_numbers<[1], [1], [0], [0], [0, 0, 1, 0], [], []>} : vector<10x8xf32>, vector<10x8xf32>, vector<10x10xf32> -> vector<10x10xf32>
    %20 = arith.addf %19, %8 : vector<10x10xf32>
    %cst_17 = arith.constant dense<0xFF800000> : vector<10xf32>
    %21 = vector.multi_reduction <maximumf>, %20, %cst_17 [1] : vector<10x10xf32> to vector<10xf32>
    %22 = vector.shape_cast %21 : vector<10xf32> to vector<10x1xf32>
    %23 = vector.broadcast %22 : vector<10x1xf32> to vector<10x10xf32>
    %24 = arith.subf %20, %23 : vector<10x10xf32>
    %25 = math.exp %24 : vector<10x10xf32>
    %cst_18 = arith.constant dense<0.000000e+00> : vector<10xf32>
    %26 = vector.multi_reduction <add>, %25, %cst_18 [1] : vector<10x10xf32> to vector<10xf32>
    %27 = vector.shape_cast %26 : vector<10xf32> to vector<10x1xf32>
    %28 = tpu.reciprocal %27 {approx = true} : vector<10x1xf32> -> vector<10x1xf32>
    %29 = vector.broadcast %28 : vector<10x1xf32> to vector<10x10xf32>
    %30 = arith.mulf %25, %29 : vector<10x10xf32>
    %cst_19 = arith.constant dense<0.000000e+00> : vector<10x8xf32>
    %31 = tpu.matmul %30, %18, %cst_19 {dimension_numbers = #tpu.dot_dimension_numbers<[1], [0], [0], [1], [0, 0, 1, 1], [], []>} : vector<10x10xf32>, vector<10x8xf32>, vector<10x8xf32> -> vector<10x8xf32>
    %32 = vector.extract_strided_slice %15 {offsets = [0, 8], sizes = [10, 8], strides = [1, 1]} : vector<10x96xf32> to vector<10x8xf32>
    %33 = vector.extract_strided_slice %15 {offsets = [0, 40], sizes = [10, 8], strides = [1, 1]} : vector<10x96xf32> to vector<10x8xf32>
    %34 = vector.extract_strided_slice %15 {offsets = [0, 72], sizes = [10, 8], strides = [1, 1]} : vector<10x96xf32> to vector<10x8xf32>
    %cst_20 = arith.constant dense<0.000000e+00> : vector<10x10xf32>
    %35 = tpu.matmul %32, %33, %cst_20 {dimension_numbers = #tpu.dot_dimension_numbers<[1], [1], [0], [0], [0, 0, 1, 0], [], []>} : vector<10x8xf32>, vector<10x8xf32>, vector<10x10xf32> -> vector<10x10xf32>
    %36 = arith.addf %35, %8 : vector<10x10xf32>
    %cst_21 = arith.constant dense<0xFF800000> : vector<10xf32>
    %37 = vector.multi_reduction <maximumf>, %36, %cst_21 [1] : vector<10x10xf32> to vector<10xf32>
    %38 = vector.shape_cast %37 : vector<10xf32> to vector<10x1xf32>
    %39 = vector.broadcast %38 : vector<10x1xf32> to vector<10x10xf32>
    %40 = arith.subf %36, %39 : vector<10x10xf32>
    %41 = math.exp %40 : vector<10x10xf32>
    %cst_22 = arith.constant dense<0.000000e+00> : vector<10xf32>
    %42 = vector.multi_reduction <add>, %41, %cst_22 [1] : vector<10x10xf32> to vector<10xf32>
    %43 = vector.shape_cast %42 : vector<10xf32> to vector<10x1xf32>
    %44 = tpu.reciprocal %43 {approx = true} : vector<10x1xf32> -> vector<10x1xf32>
    %45 = vector.broadcast %44 : vector<10x1xf32> to vector<10x10xf32>
    %46 = arith.mulf %41, %45 : vector<10x10xf32>
    %cst_23 = arith.constant dense<0.000000e+00> : vector<10x8xf32>
    %47 = tpu.matmul %46, %34, %cst_23 {dimension_numbers = #tpu.dot_dimension_numbers<[1], [0], [0], [1], [0, 0, 1, 1], [], []>} : vector<10x10xf32>, vector<10x8xf32>, vector<10x8xf32> -> vector<10x8xf32>
    %48 = vector.extract_strided_slice %15 {offsets = [0, 16], sizes = [10, 8], strides = [1, 1]} : vector<10x96xf32> to vector<10x8xf32>
    %49 = vector.extract_strided_slice %15 {offsets = [0, 48], sizes = [10, 8], strides = [1, 1]} : vector<10x96xf32> to vector<10x8xf32>
    %50 = vector.extract_strided_slice %15 {offsets = [0, 80], sizes = [10, 8], strides = [1, 1]} : vector<10x96xf32> to vector<10x8xf32>
    %cst_24 = arith.constant dense<0.000000e+00> : vector<10x10xf32>
    %51 = tpu.matmul %48, %49, %cst_24 {dimension_numbers = #tpu.dot_dimension_numbers<[1], [1], [0], [0], [0, 0, 1, 0], [], []>} : vector<10x8xf32>, vector<10x8xf32>, vector<10x10xf32> -> vector<10x10xf32>
    %52 = arith.addf %51, %8 : vector<10x10xf32>
    %cst_25 = arith.constant dense<0xFF800000> : vector<10xf32>
    %53 = vector.multi_reduction <maximumf>, %52, %cst_25 [1] : vector<10x10xf32> to vector<10xf32>
    %54 = vector.shape_cast %53 : vector<10xf32> to vector<10x1xf32>
    %55 = vector.broadcast %54 : vector<10x1xf32> to vector<10x10xf32>
    %56 = arith.subf %52, %55 : vector<10x10xf32>
    %57 = math.exp %56 : vector<10x10xf32>
    %cst_26 = arith.constant dense<0.000000e+00> : vector<10xf32>
    %58 = vector.multi_reduction <add>, %57, %cst_26 [1] : vector<10x10xf32> to vector<10xf32>
    %59 = vector.shape_cast %58 : vector<10xf32> to vector<10x1xf32>
    %60 = tpu.reciprocal %59 {approx = true} : vector<10x1xf32> -> vector<10x1xf32>
    %61 = vector.broadcast %60 : vector<10x1xf32> to vector<10x10xf32>
    %62 = arith.mulf %57, %61 : vector<10x10xf32>
    %cst_27 = arith.constant dense<0.000000e+00> : vector<10x8xf32>
    %63 = tpu.matmul %62, %50, %cst_27 {dimension_numbers = #tpu.dot_dimension_numbers<[1], [0], [0], [1], [0, 0, 1, 1], [], []>} : vector<10x10xf32>, vector<10x8xf32>, vector<10x8xf32> -> vector<10x8xf32>
    %64 = vector.extract_strided_slice %15 {offsets = [0, 24], sizes = [10, 8], strides = [1, 1]} : vector<10x96xf32> to vector<10x8xf32>
    %65 = vector.extract_strided_slice %15 {offsets = [0, 56], sizes = [10, 8], strides = [1, 1]} : vector<10x96xf32> to vector<10x8xf32>
    %66 = vector.extract_strided_slice %15 {offsets = [0, 88], sizes = [10, 8], strides = [1, 1]} : vector<10x96xf32> to vector<10x8xf32>
    %cst_28 = arith.constant dense<0.000000e+00> : vector<10x10xf32>
    %67 = tpu.matmul %64, %65, %cst_28 {dimension_numbers = #tpu.dot_dimension_numbers<[1], [1], [0], [0], [0, 0, 1, 0], [], []>} : vector<10x8xf32>, vector<10x8xf32>, vector<10x10xf32> -> vector<10x10xf32>
    %68 = arith.addf %67, %8 : vector<10x10xf32>
    %cst_29 = arith.constant dense<0xFF800000> : vector<10xf32>
    %69 = vector.multi_reduction <maximumf>, %68, %cst_29 [1] : vector<10x10xf32> to vector<10xf32>
    %70 = vector.shape_cast %69 : vector<10xf32> to vector<10x1xf32>
    %71 = vector.broadcast %70 : vector<10x1xf32> to vector<10x10xf32>
    %72 = arith.subf %68, %71 : vector<10x10xf32>
    %73 = math.exp %72 : vector<10x10xf32>
    %cst_30 = arith.constant dense<0.000000e+00> : vector<10xf32>
    %74 = vector.multi_reduction <add>, %73, %cst_30 [1] : vector<10x10xf32> to vector<10xf32>
    %75 = vector.shape_cast %74 : vector<10xf32> to vector<10x1xf32>
    %76 = tpu.reciprocal %75 {approx = true} : vector<10x1xf32> -> vector<10x1xf32>
    %77 = vector.broadcast %76 : vector<10x1xf32> to vector<10x10xf32>
    %78 = arith.mulf %73, %77 : vector<10x10xf32>
    %cst_31 = arith.constant dense<0.000000e+00> : vector<10x8xf32>
    %79 = tpu.matmul %78, %66, %cst_31 {dimension_numbers = #tpu.dot_dimension_numbers<[1], [0], [0], [1], [0, 0, 1, 1], [], []>} : vector<10x10xf32>, vector<10x8xf32>, vector<10x8xf32> -> vector<10x8xf32>
    %80 = tpu.concatenate %31, %47, %63, %79 in 1 : vector<10x8xf32>, vector<10x8xf32>, vector<10x8xf32>, vector<10x8xf32> -> vector<10x32xf32>
    %c0_32 = arith.constant 0 : index
    %c0_33 = arith.constant 0 : index
    %c0_34 = arith.constant 0 : index
    %c0_35 = arith.constant 0 : index
    %81 = vector.load %arg6[%c0_32, %c0_33, %c0_34, %c0_35] : memref<2x3x32x32xf32, #tpu.memory_space<vmem>>, vector<1x1x32x32xf32>
    %82 = vector.shape_cast %81 : vector<1x1x32x32xf32> to vector<32x32xf32>
    %cst_36 = arith.constant dense<0.000000e+00> : vector<10x32xf32>
    %83 = tpu.matmul %80, %82, %cst_36 {dimension_numbers = #tpu.dot_dimension_numbers<[1], [0], [0], [1], [0, 0, 1, 1], [], []>} : vector<10x32xf32>, vector<32x32xf32>, vector<10x32xf32> -> vector<10x32xf32>
    %c1_37 = arith.constant 1 : index
    %c0_38 = arith.constant 0 : index
    %84 = vector.load %arg7[%c1_37, %c0_38] : memref<19x128xf32, #tpu.memory_space<vmem>>, vector<1x32xf32>
    %85 = vector.broadcast %84 : vector<1x32xf32> to vector<10x32xf32>
    %86 = arith.addf %83, %85 : vector<10x32xf32>
    %87 = arith.addf %9, %86 : vector<10x32xf32>
    %c2 = arith.constant 2 : index
    %c0_39 = arith.constant 0 : index
    %88 = vector.load %arg7[%c2, %c0_39] : memref<19x128xf32, #tpu.memory_space<vmem>>, vector<1x32xf32>
    %c3 = arith.constant 3 : index
    %c0_40 = arith.constant 0 : index
    %89 = vector.load %arg7[%c3, %c0_40] : memref<19x128xf32, #tpu.memory_space<vmem>>, vector<1x32xf32>
    %cst_41 = arith.constant dense<0.000000e+00> : vector<10xf32>
    %90 = vector.multi_reduction <add>, %87, %cst_41 [1] : vector<10x32xf32> to vector<10xf32>
    %91 = vector.shape_cast %90 : vector<10xf32> to vector<10x1xf32>
    %cst_42 = arith.constant 3.200000e+01 : f32
    %92 = vector.broadcast %cst_42 : f32 to vector<10x1xf32>
    %93 = arith.divf %91, %92 : vector<10x1xf32>
    %94 = vector.broadcast %93 : vector<10x1xf32> to vector<10x32xf32>
    %95 = arith.subf %87, %94 : vector<10x32xf32>
    %96 = arith.mulf %95, %95 : vector<10x32xf32>
    %cst_43 = arith.constant dense<0.000000e+00> : vector<10xf32>
    %97 = vector.multi_reduction <add>, %96, %cst_43 [1] : vector<10x32xf32> to vector<10xf32>
    %98 = vector.shape_cast %97 : vector<10xf32> to vector<10x1xf32>
    %cst_44 = arith.constant 3.200000e+01 : f32
    %99 = vector.broadcast %cst_44 : f32 to vector<10x1xf32>
    %100 = arith.divf %98, %99 : vector<10x1xf32>
    %101 = vector.broadcast %93 : vector<10x1xf32> to vector<10x32xf32>
    %102 = arith.subf %87, %101 : vector<10x32xf32>
    %cst_45 = arith.constant 9.99999974E-6 : f32
    %103 = vector.broadcast %cst_45 : f32 to vector<10x1xf32>
    %104 = arith.addf %100, %103 : vector<10x1xf32>
    %105 = math.rsqrt %104 : vector<10x1xf32>
    %106 = vector.broadcast %105 : vector<10x1xf32> to vector<10x32xf32>
    %107 = arith.mulf %102, %106 : vector<10x32xf32>
    %108 = vector.broadcast %88 : vector<1x32xf32> to vector<10x32xf32>
    %109 = arith.mulf %107, %108 : vector<10x32xf32>
    %110 = vector.broadcast %89 : vector<1x32xf32> to vector<10x32xf32>
    %111 = arith.addf %109, %110 : vector<10x32xf32>
    %c0_46 = arith.constant 0 : index
    %c1_47 = arith.constant 1 : index
    %c0_48 = arith.constant 0 : index
    %c0_49 = arith.constant 0 : index
    %112 = vector.load %arg6[%c0_46, %c1_47, %c0_48, %c0_49] : memref<2x3x32x32xf32, #tpu.memory_space<vmem>>, vector<1x1x32x32xf32>
    %113 = vector.shape_cast %112 : vector<1x1x32x32xf32> to vector<32x32xf32>
    %cst_50 = arith.constant dense<0.000000e+00> : vector<10x32xf32>
    %114 = tpu.matmul %111, %113, %cst_50 {dimension_numbers = #tpu.dot_dimension_numbers<[1], [0], [0], [1], [0, 0, 1, 1], [], []>} : vector<10x32xf32>, vector<32x32xf32>, vector<10x32xf32> -> vector<10x32xf32>
    %c4 = arith.constant 4 : index
    %c0_51 = arith.constant 0 : index
    %115 = vector.load %arg7[%c4, %c0_51] : memref<19x128xf32, #tpu.memory_space<vmem>>, vector<1x32xf32>
    %116 = vector.broadcast %115 : vector<1x32xf32> to vector<10x32xf32>
    %117 = arith.addf %114, %116 : vector<10x32xf32>
    %cst_52 = arith.constant 5.000000e-01 : f32
    %118 = vector.broadcast %cst_52 : f32 to vector<10x32xf32>
    %119 = arith.mulf %118, %117 : vector<10x32xf32>
    %cst_53 = arith.constant 4.471500e-02 : f32
    %120 = vector.broadcast %cst_53 : f32 to vector<10x32xf32>
    %121 = arith.mulf %120, %117 : vector<10x32xf32>
    %122 = arith.mulf %121, %117 : vector<10x32xf32>
    %123 = arith.mulf %122, %117 : vector<10x32xf32>
    %124 = arith.addf %117, %123 : vector<10x32xf32>
    %cst_54 = arith.constant 0.797884583 : f32
    %125 = vector.broadcast %cst_54 : f32 to vector<10x32xf32>
    %126 = arith.mulf %125, %124 : vector<10x32xf32>
    %127 = math.tanh %126 : vector<10x32xf32>
    %cst_55 = arith.constant 1.000000e+00 : f32
    %128 = vector.broadcast %cst_55 : f32 to vector<10x32xf32>
    %129 = arith.addf %128, %127 : vector<10x32xf32>
    %130 = arith.mulf %119, %129 : vector<10x32xf32>
    %c0_56 = arith.constant 0 : index
    %c2_57 = arith.constant 2 : index
    %c0_58 = arith.constant 0 : index
    %c0_59 = arith.constant 0 : index
    %131 = vector.load %arg6[%c0_56, %c2_57, %c0_58, %c0_59] : memref<2x3x32x32xf32, #tpu.memory_space<vmem>>, vector<1x1x32x32xf32>
    %132 = vector.shape_cast %131 : vector<1x1x32x32xf32> to vector<32x32xf32>
    %cst_60 = arith.constant dense<0.000000e+00> : vector<10x32xf32>
    %133 = tpu.matmul %130, %132, %cst_60 {dimension_numbers = #tpu.dot_dimension_numbers<[1], [0], [0], [1], [0, 0, 1, 1], [], []>} : vector<10x32xf32>, vector<32x32xf32>, vector<10x32xf32> -> vector<10x32xf32>
    %c5 = arith.constant 5 : index
    %c0_61 = arith.constant 0 : index
    %134 = vector.load %arg7[%c5, %c0_61] : memref<19x128xf32, #tpu.memory_space<vmem>>, vector<1x32xf32>
    %135 = vector.broadcast %134 : vector<1x32xf32> to vector<10x32xf32>
    %136 = arith.addf %133, %135 : vector<10x32xf32>
    %137 = arith.addf %111, %136 : vector<10x32xf32>
    %c6 = arith.constant 6 : index
    %c0_62 = arith.constant 0 : index
    %138 = vector.load %arg7[%c6, %c0_62] : memref<19x128xf32, #tpu.memory_space<vmem>>, vector<1x32xf32>
    %c7 = arith.constant 7 : index
    %c0_63 = arith.constant 0 : index
    %139 = vector.load %arg7[%c7, %c0_63] : memref<19x128xf32, #tpu.memory_space<vmem>>, vector<1x32xf32>
    %cst_64 = arith.constant dense<0.000000e+00> : vector<10xf32>
    %140 = vector.multi_reduction <add>, %137, %cst_64 [1] : vector<10x32xf32> to vector<10xf32>
    %141 = vector.shape_cast %140 : vector<10xf32> to vector<10x1xf32>
    %cst_65 = arith.constant 3.200000e+01 : f32
    %142 = vector.broadcast %cst_65 : f32 to vector<10x1xf32>
    %143 = arith.divf %141, %142 : vector<10x1xf32>
    %144 = vector.broadcast %143 : vector<10x1xf32> to vector<10x32xf32>
    %145 = arith.subf %137, %144 : vector<10x32xf32>
    %146 = arith.mulf %145, %145 : vector<10x32xf32>
    %cst_66 = arith.constant dense<0.000000e+00> : vector<10xf32>
    %147 = vector.multi_reduction <add>, %146, %cst_66 [1] : vector<10x32xf32> to vector<10xf32>
    %148 = vector.shape_cast %147 : vector<10xf32> to vector<10x1xf32>
    %cst_67 = arith.constant 3.200000e+01 : f32
    %149 = vector.broadcast %cst_67 : f32 to vector<10x1xf32>
    %150 = arith.divf %148, %149 : vector<10x1xf32>
    %151 = vector.broadcast %143 : vector<10x1xf32> to vector<10x32xf32>
    %152 = arith.subf %137, %151 : vector<10x32xf32>
    %cst_68 = arith.constant 9.99999974E-6 : f32
    %153 = vector.broadcast %cst_68 : f32 to vector<10x1xf32>
    %154 = arith.addf %150, %153 : vector<10x1xf32>
    %155 = math.rsqrt %154 : vector<10x1xf32>
    %156 = vector.broadcast %155 : vector<10x1xf32> to vector<10x32xf32>
    %157 = arith.mulf %152, %156 : vector<10x32xf32>
    %158 = vector.broadcast %138 : vector<1x32xf32> to vector<10x32xf32>
    %159 = arith.mulf %157, %158 : vector<10x32xf32>
    %160 = vector.broadcast %139 : vector<1x32xf32> to vector<10x32xf32>
    %161 = arith.addf %159, %160 : vector<10x32xf32>
    %162 = arith.addf %161, %7 : vector<10x32xf32>
    %c1_69 = arith.constant 1 : index
    %c0_70 = arith.constant 0 : index
    %c0_71 = arith.constant 0 : index
    %163 = vector.load %arg5[%c1_69, %c0_70, %c0_71] : memref<2x32x96xf32, #tpu.memory_space<vmem>>, vector<1x32x96xf32>
    %164 = vector.shape_cast %163 : vector<1x32x96xf32> to vector<32x96xf32>
    %cst_72 = arith.constant dense<0.000000e+00> : vector<10x96xf32>
    %165 = tpu.matmul %162, %164, %cst_72 {dimension_numbers = #tpu.dot_dimension_numbers<[1], [0], [0], [1], [0, 0, 1, 1], [], []>} : vector<10x32xf32>, vector<32x96xf32>, vector<10x96xf32> -> vector<10x96xf32>
    %c8 = arith.constant 8 : index
    %c0_73 = arith.constant 0 : index
    %166 = vector.load %arg7[%c8, %c0_73] : memref<19x128xf32, #tpu.memory_space<vmem>>, vector<1x96xf32>
    %167 = vector.broadcast %166 : vector<1x96xf32> to vector<10x96xf32>
    %168 = arith.addf %165, %167 : vector<10x96xf32>
    %169 = vector.extract_strided_slice %168 {offsets = [0, 0], sizes = [10, 8], strides = [1, 1]} : vector<10x96xf32> to vector<10x8xf32>
    %170 = vector.extract_strided_slice %168 {offsets = [0, 32], sizes = [10, 8], strides = [1, 1]} : vector<10x96xf32> to vector<10x8xf32>
    %171 = vector.extract_strided_slice %168 {offsets = [0, 64], sizes = [10, 8], strides = [1, 1]} : vector<10x96xf32> to vector<10x8xf32>
    %cst_74 = arith.constant dense<0.000000e+00> : vector<10x10xf32>
    %172 = tpu.matmul %169, %170, %cst_74 {dimension_numbers = #tpu.dot_dimension_numbers<[1], [1], [0], [0], [0, 0, 1, 0], [], []>} : vector<10x8xf32>, vector<10x8xf32>, vector<10x10xf32> -> vector<10x10xf32>
    %173 = arith.addf %172, %8 : vector<10x10xf32>
    %cst_75 = arith.constant dense<0xFF800000> : vector<10xf32>
    %174 = vector.multi_reduction <maximumf>, %173, %cst_75 [1] : vector<10x10xf32> to vector<10xf32>
    %175 = vector.shape_cast %174 : vector<10xf32> to vector<10x1xf32>
    %176 = vector.broadcast %175 : vector<10x1xf32> to vector<10x10xf32>
    %177 = arith.subf %173, %176 : vector<10x10xf32>
    %178 = math.exp %177 : vector<10x10xf32>
    %cst_76 = arith.constant dense<0.000000e+00> : vector<10xf32>
    %179 = vector.multi_reduction <add>, %178, %cst_76 [1] : vector<10x10xf32> to vector<10xf32>
    %180 = vector.shape_cast %179 : vector<10xf32> to vector<10x1xf32>
    %181 = tpu.reciprocal %180 {approx = true} : vector<10x1xf32> -> vector<10x1xf32>
    %182 = vector.broadcast %181 : vector<10x1xf32> to vector<10x10xf32>
    %183 = arith.mulf %178, %182 : vector<10x10xf32>
    %cst_77 = arith.constant dense<0.000000e+00> : vector<10x8xf32>
    %184 = tpu.matmul %183, %171, %cst_77 {dimension_numbers = #tpu.dot_dimension_numbers<[1], [0], [0], [1], [0, 0, 1, 1], [], []>} : vector<10x10xf32>, vector<10x8xf32>, vector<10x8xf32> -> vector<10x8xf32>
    %185 = vector.extract_strided_slice %168 {offsets = [0, 8], sizes = [10, 8], strides = [1, 1]} : vector<10x96xf32> to vector<10x8xf32>
    %186 = vector.extract_strided_slice %168 {offsets = [0, 40], sizes = [10, 8], strides = [1, 1]} : vector<10x96xf32> to vector<10x8xf32>
    %187 = vector.extract_strided_slice %168 {offsets = [0, 72], sizes = [10, 8], strides = [1, 1]} : vector<10x96xf32> to vector<10x8xf32>
    %cst_78 = arith.constant dense<0.000000e+00> : vector<10x10xf32>
    %188 = tpu.matmul %185, %186, %cst_78 {dimension_numbers = #tpu.dot_dimension_numbers<[1], [1], [0], [0], [0, 0, 1, 0], [], []>} : vector<10x8xf32>, vector<10x8xf32>, vector<10x10xf32> -> vector<10x10xf32>
    %189 = arith.addf %188, %8 : vector<10x10xf32>
    %cst_79 = arith.constant dense<0xFF800000> : vector<10xf32>
    %190 = vector.multi_reduction <maximumf>, %189, %cst_79 [1] : vector<10x10xf32> to vector<10xf32>
    %191 = vector.shape_cast %190 : vector<10xf32> to vector<10x1xf32>
    %192 = vector.broadcast %191 : vector<10x1xf32> to vector<10x10xf32>
    %193 = arith.subf %189, %192 : vector<10x10xf32>
    %194 = math.exp %193 : vector<10x10xf32>
    %cst_80 = arith.constant dense<0.000000e+00> : vector<10xf32>
    %195 = vector.multi_reduction <add>, %194, %cst_80 [1] : vector<10x10xf32> to vector<10xf32>
    %196 = vector.shape_cast %195 : vector<10xf32> to vector<10x1xf32>
    %197 = tpu.reciprocal %196 {approx = true} : vector<10x1xf32> -> vector<10x1xf32>
    %198 = vector.broadcast %197 : vector<10x1xf32> to vector<10x10xf32>
    %199 = arith.mulf %194, %198 : vector<10x10xf32>
    %cst_81 = arith.constant dense<0.000000e+00> : vector<10x8xf32>
    %200 = tpu.matmul %199, %187, %cst_81 {dimension_numbers = #tpu.dot_dimension_numbers<[1], [0], [0], [1], [0, 0, 1, 1], [], []>} : vector<10x10xf32>, vector<10x8xf32>, vector<10x8xf32> -> vector<10x8xf32>
    %201 = vector.extract_strided_slice %168 {offsets = [0, 16], sizes = [10, 8], strides = [1, 1]} : vector<10x96xf32> to vector<10x8xf32>
    %202 = vector.extract_strided_slice %168 {offsets = [0, 48], sizes = [10, 8], strides = [1, 1]} : vector<10x96xf32> to vector<10x8xf32>
    %203 = vector.extract_strided_slice %168 {offsets = [0, 80], sizes = [10, 8], strides = [1, 1]} : vector<10x96xf32> to vector<10x8xf32>
    %cst_82 = arith.constant dense<0.000000e+00> : vector<10x10xf32>
    %204 = tpu.matmul %201, %202, %cst_82 {dimension_numbers = #tpu.dot_dimension_numbers<[1], [1], [0], [0], [0, 0, 1, 0], [], []>} : vector<10x8xf32>, vector<10x8xf32>, vector<10x10xf32> -> vector<10x10xf32>
    %205 = arith.addf %204, %8 : vector<10x10xf32>
    %cst_83 = arith.constant dense<0xFF800000> : vector<10xf32>
    %206 = vector.multi_reduction <maximumf>, %205, %cst_83 [1] : vector<10x10xf32> to vector<10xf32>
    %207 = vector.shape_cast %206 : vector<10xf32> to vector<10x1xf32>
    %208 = vector.broadcast %207 : vector<10x1xf32> to vector<10x10xf32>
    %209 = arith.subf %205, %208 : vector<10x10xf32>
    %210 = math.exp %209 : vector<10x10xf32>
    %cst_84 = arith.constant dense<0.000000e+00> : vector<10xf32>
    %211 = vector.multi_reduction <add>, %210, %cst_84 [1] : vector<10x10xf32> to vector<10xf32>
    %212 = vector.shape_cast %211 : vector<10xf32> to vector<10x1xf32>
    %213 = tpu.reciprocal %212 {approx = true} : vector<10x1xf32> -> vector<10x1xf32>
    %214 = vector.broadcast %213 : vector<10x1xf32> to vector<10x10xf32>
    %215 = arith.mulf %210, %214 : vector<10x10xf32>
    %cst_85 = arith.constant dense<0.000000e+00> : vector<10x8xf32>
    %216 = tpu.matmul %215, %203, %cst_85 {dimension_numbers = #tpu.dot_dimension_numbers<[1], [0], [0], [1], [0, 0, 1, 1], [], []>} : vector<10x10xf32>, vector<10x8xf32>, vector<10x8xf32> -> vector<10x8xf32>
    %217 = vector.extract_strided_slice %168 {offsets = [0, 24], sizes = [10, 8], strides = [1, 1]} : vector<10x96xf32> to vector<10x8xf32>
    %218 = vector.extract_strided_slice %168 {offsets = [0, 56], sizes = [10, 8], strides = [1, 1]} : vector<10x96xf32> to vector<10x8xf32>
    %219 = vector.extract_strided_slice %168 {offsets = [0, 88], sizes = [10, 8], strides = [1, 1]} : vector<10x96xf32> to vector<10x8xf32>
    %cst_86 = arith.constant dense<0.000000e+00> : vector<10x10xf32>
    %220 = tpu.matmul %217, %218, %cst_86 {dimension_numbers = #tpu.dot_dimension_numbers<[1], [1], [0], [0], [0, 0, 1, 0], [], []>} : vector<10x8xf32>, vector<10x8xf32>, vector<10x10xf32> -> vector<10x10xf32>
    %221 = arith.addf %220, %8 : vector<10x10xf32>
    %cst_87 = arith.constant dense<0xFF800000> : vector<10xf32>
    %222 = vector.multi_reduction <maximumf>, %221, %cst_87 [1] : vector<10x10xf32> to vector<10xf32>
    %223 = vector.shape_cast %222 : vector<10xf32> to vector<10x1xf32>
    %224 = vector.broadcast %223 : vector<10x1xf32> to vector<10x10xf32>
    %225 = arith.subf %221, %224 : vector<10x10xf32>
    %226 = math.exp %225 : vector<10x10xf32>
    %cst_88 = arith.constant dense<0.000000e+00> : vector<10xf32>
    %227 = vector.multi_reduction <add>, %226, %cst_88 [1] : vector<10x10xf32> to vector<10xf32>
    %228 = vector.shape_cast %227 : vector<10xf32> to vector<10x1xf32>
    %229 = tpu.reciprocal %228 {approx = true} : vector<10x1xf32> -> vector<10x1xf32>
    %230 = vector.broadcast %229 : vector<10x1xf32> to vector<10x10xf32>
    %231 = arith.mulf %226, %230 : vector<10x10xf32>
    %cst_89 = arith.constant dense<0.000000e+00> : vector<10x8xf32>
    %232 = tpu.matmul %231, %219, %cst_89 {dimension_numbers = #tpu.dot_dimension_numbers<[1], [0], [0], [1], [0, 0, 1, 1], [], []>} : vector<10x10xf32>, vector<10x8xf32>, vector<10x8xf32> -> vector<10x8xf32>
    %233 = tpu.concatenate %184, %200, %216, %232 in 1 : vector<10x8xf32>, vector<10x8xf32>, vector<10x8xf32>, vector<10x8xf32> -> vector<10x32xf32>
    %c1_90 = arith.constant 1 : index
    %c0_91 = arith.constant 0 : index
    %c0_92 = arith.constant 0 : index
    %c0_93 = arith.constant 0 : index
    %234 = vector.load %arg6[%c1_90, %c0_91, %c0_92, %c0_93] : memref<2x3x32x32xf32, #tpu.memory_space<vmem>>, vector<1x1x32x32xf32>
    %235 = vector.shape_cast %234 : vector<1x1x32x32xf32> to vector<32x32xf32>
    %cst_94 = arith.constant dense<0.000000e+00> : vector<10x32xf32>
    %236 = tpu.matmul %233, %235, %cst_94 {dimension_numbers = #tpu.dot_dimension_numbers<[1], [0], [0], [1], [0, 0, 1, 1], [], []>} : vector<10x32xf32>, vector<32x32xf32>, vector<10x32xf32> -> vector<10x32xf32>
    %c9 = arith.constant 9 : index
    %c0_95 = arith.constant 0 : index
    %237 = vector.load %arg7[%c9, %c0_95] : memref<19x128xf32, #tpu.memory_space<vmem>>, vector<1x32xf32>
    %238 = vector.broadcast %237 : vector<1x32xf32> to vector<10x32xf32>
    %239 = arith.addf %236, %238 : vector<10x32xf32>
    %240 = arith.addf %162, %239 : vector<10x32xf32>
    %c10 = arith.constant 10 : index
    %c0_96 = arith.constant 0 : index
    %241 = vector.load %arg7[%c10, %c0_96] : memref<19x128xf32, #tpu.memory_space<vmem>>, vector<1x32xf32>
    %c11 = arith.constant 11 : index
    %c0_97 = arith.constant 0 : index
    %242 = vector.load %arg7[%c11, %c0_97] : memref<19x128xf32, #tpu.memory_space<vmem>>, vector<1x32xf32>
    %cst_98 = arith.constant dense<0.000000e+00> : vector<10xf32>
    %243 = vector.multi_reduction <add>, %240, %cst_98 [1] : vector<10x32xf32> to vector<10xf32>
    %244 = vector.shape_cast %243 : vector<10xf32> to vector<10x1xf32>
    %cst_99 = arith.constant 3.200000e+01 : f32
    %245 = vector.broadcast %cst_99 : f32 to vector<10x1xf32>
    %246 = arith.divf %244, %245 : vector<10x1xf32>
    %247 = vector.broadcast %246 : vector<10x1xf32> to vector<10x32xf32>
    %248 = arith.subf %240, %247 : vector<10x32xf32>
    %249 = arith.mulf %248, %248 : vector<10x32xf32>
    %cst_100 = arith.constant dense<0.000000e+00> : vector<10xf32>
    %250 = vector.multi_reduction <add>, %249, %cst_100 [1] : vector<10x32xf32> to vector<10xf32>
    %251 = vector.shape_cast %250 : vector<10xf32> to vector<10x1xf32>
    %cst_101 = arith.constant 3.200000e+01 : f32
    %252 = vector.broadcast %cst_101 : f32 to vector<10x1xf32>
    %253 = arith.divf %251, %252 : vector<10x1xf32>
    %254 = vector.broadcast %246 : vector<10x1xf32> to vector<10x32xf32>
    %255 = arith.subf %240, %254 : vector<10x32xf32>
    %cst_102 = arith.constant 9.99999974E-6 : f32
    %256 = vector.broadcast %cst_102 : f32 to vector<10x1xf32>
    %257 = arith.addf %253, %256 : vector<10x1xf32>
    %258 = math.rsqrt %257 : vector<10x1xf32>
    %259 = vector.broadcast %258 : vector<10x1xf32> to vector<10x32xf32>
    %260 = arith.mulf %255, %259 : vector<10x32xf32>
    %261 = vector.broadcast %241 : vector<1x32xf32> to vector<10x32xf32>
    %262 = arith.mulf %260, %261 : vector<10x32xf32>
    %263 = vector.broadcast %242 : vector<1x32xf32> to vector<10x32xf32>
    %264 = arith.addf %262, %263 : vector<10x32xf32>
    %c1_103 = arith.constant 1 : index
    %c1_104 = arith.constant 1 : index
    %c0_105 = arith.constant 0 : index
    %c0_106 = arith.constant 0 : index
    %265 = vector.load %arg6[%c1_103, %c1_104, %c0_105, %c0_106] : memref<2x3x32x32xf32, #tpu.memory_space<vmem>>, vector<1x1x32x32xf32>
    %266 = vector.shape_cast %265 : vector<1x1x32x32xf32> to vector<32x32xf32>
    %cst_107 = arith.constant dense<0.000000e+00> : vector<10x32xf32>
    %267 = tpu.matmul %264, %266, %cst_107 {dimension_numbers = #tpu.dot_dimension_numbers<[1], [0], [0], [1], [0, 0, 1, 1], [], []>} : vector<10x32xf32>, vector<32x32xf32>, vector<10x32xf32> -> vector<10x32xf32>
    %c12 = arith.constant 12 : index
    %c0_108 = arith.constant 0 : index
    %268 = vector.load %arg7[%c12, %c0_108] : memref<19x128xf32, #tpu.memory_space<vmem>>, vector<1x32xf32>
    %269 = vector.broadcast %268 : vector<1x32xf32> to vector<10x32xf32>
    %270 = arith.addf %267, %269 : vector<10x32xf32>
    %cst_109 = arith.constant 5.000000e-01 : f32
    %271 = vector.broadcast %cst_109 : f32 to vector<10x32xf32>
    %272 = arith.mulf %271, %270 : vector<10x32xf32>
    %cst_110 = arith.constant 4.471500e-02 : f32
    %273 = vector.broadcast %cst_110 : f32 to vector<10x32xf32>
    %274 = arith.mulf %273, %270 : vector<10x32xf32>
    %275 = arith.mulf %274, %270 : vector<10x32xf32>
    %276 = arith.mulf %275, %270 : vector<10x32xf32>
    %277 = arith.addf %270, %276 : vector<10x32xf32>
    %cst_111 = arith.constant 0.797884583 : f32
    %278 = vector.broadcast %cst_111 : f32 to vector<10x32xf32>
    %279 = arith.mulf %278, %277 : vector<10x32xf32>
    %280 = math.tanh %279 : vector<10x32xf32>
    %cst_112 = arith.constant 1.000000e+00 : f32
    %281 = vector.broadcast %cst_112 : f32 to vector<10x32xf32>
    %282 = arith.addf %281, %280 : vector<10x32xf32>
    %283 = arith.mulf %272, %282 : vector<10x32xf32>
    %c1_113 = arith.constant 1 : index
    %c2_114 = arith.constant 2 : index
    %c0_115 = arith.constant 0 : index
    %c0_116 = arith.constant 0 : index
    %284 = vector.load %arg6[%c1_113, %c2_114, %c0_115, %c0_116] : memref<2x3x32x32xf32, #tpu.memory_space<vmem>>, vector<1x1x32x32xf32>
    %285 = vector.shape_cast %284 : vector<1x1x32x32xf32> to vector<32x32xf32>
    %cst_117 = arith.constant dense<0.000000e+00> : vector<10x32xf32>
    %286 = tpu.matmul %283, %285, %cst_117 {dimension_numbers = #tpu.dot_dimension_numbers<[1], [0], [0], [1], [0, 0, 1, 1], [], []>} : vector<10x32xf32>, vector<32x32xf32>, vector<10x32xf32> -> vector<10x32xf32>
    %c13 = arith.constant 13 : index
    %c0_118 = arith.constant 0 : index
    %287 = vector.load %arg7[%c13, %c0_118] : memref<19x128xf32, #tpu.memory_space<vmem>>, vector<1x32xf32>
    %288 = vector.broadcast %287 : vector<1x32xf32> to vector<10x32xf32>
    %289 = arith.addf %286, %288 : vector<10x32xf32>
    %290 = arith.addf %264, %289 : vector<10x32xf32>
    %c14 = arith.constant 14 : index
    %c0_119 = arith.constant 0 : index
    %291 = vector.load %arg7[%c14, %c0_119] : memref<19x128xf32, #tpu.memory_space<vmem>>, vector<1x32xf32>
    %c15 = arith.constant 15 : index
    %c0_120 = arith.constant 0 : index
    %292 = vector.load %arg7[%c15, %c0_120] : memref<19x128xf32, #tpu.memory_space<vmem>>, vector<1x32xf32>
    %cst_121 = arith.constant dense<0.000000e+00> : vector<10xf32>
    %293 = vector.multi_reduction <add>, %290, %cst_121 [1] : vector<10x32xf32> to vector<10xf32>
    %294 = vector.shape_cast %293 : vector<10xf32> to vector<10x1xf32>
    %cst_122 = arith.constant 3.200000e+01 : f32
    %295 = vector.broadcast %cst_122 : f32 to vector<10x1xf32>
    %296 = arith.divf %294, %295 : vector<10x1xf32>
    %297 = vector.broadcast %296 : vector<10x1xf32> to vector<10x32xf32>
    %298 = arith.subf %290, %297 : vector<10x32xf32>
    %299 = arith.mulf %298, %298 : vector<10x32xf32>
    %cst_123 = arith.constant dense<0.000000e+00> : vector<10xf32>
    %300 = vector.multi_reduction <add>, %299, %cst_123 [1] : vector<10x32xf32> to vector<10xf32>
    %301 = vector.shape_cast %300 : vector<10xf32> to vector<10x1xf32>
    %cst_124 = arith.constant 3.200000e+01 : f32
    %302 = vector.broadcast %cst_124 : f32 to vector<10x1xf32>
    %303 = arith.divf %301, %302 : vector<10x1xf32>
    %304 = vector.broadcast %296 : vector<10x1xf32> to vector<10x32xf32>
    %305 = arith.subf %290, %304 : vector<10x32xf32>
    %cst_125 = arith.constant 9.99999974E-6 : f32
    %306 = vector.broadcast %cst_125 : f32 to vector<10x1xf32>
    %307 = arith.addf %303, %306 : vector<10x1xf32>
    %308 = math.rsqrt %307 : vector<10x1xf32>
    %309 = vector.broadcast %308 : vector<10x1xf32> to vector<10x32xf32>
    %310 = arith.mulf %305, %309 : vector<10x32xf32>
    %311 = vector.broadcast %291 : vector<1x32xf32> to vector<10x32xf32>
    %312 = arith.mulf %310, %311 : vector<10x32xf32>
    %313 = vector.broadcast %292 : vector<1x32xf32> to vector<10x32xf32>
    %314 = arith.addf %312, %313 : vector<10x32xf32>
    %315 = vector.extract_strided_slice %314 {offsets = [0, 0], sizes = [2, 32], strides = [1, 1]} : vector<10x32xf32> to vector<2x32xf32>
    %c16 = arith.constant 16 : index
    %c0_126 = arith.constant 0 : index
    %316 = vector.load %arg7[%c16, %c0_126] : memref<19x128xf32, #tpu.memory_space<vmem>>, vector<1x32xf32>
    %c17 = arith.constant 17 : index
    %c0_127 = arith.constant 0 : index
    %317 = vector.load %arg7[%c17, %c0_127] : memref<19x128xf32, #tpu.memory_space<vmem>>, vector<1x32xf32>
    %cst_128 = arith.constant dense<0.000000e+00> : vector<2xf32>
    %318 = vector.multi_reduction <add>, %315, %cst_128 [1] : vector<2x32xf32> to vector<2xf32>
    %319 = vector.shape_cast %318 : vector<2xf32> to vector<2x1xf32>
    %cst_129 = arith.constant 3.200000e+01 : f32
    %320 = vector.broadcast %cst_129 : f32 to vector<2x1xf32>
    %321 = arith.divf %319, %320 : vector<2x1xf32>
    %322 = vector.broadcast %321 : vector<2x1xf32> to vector<2x32xf32>
    %323 = arith.subf %315, %322 : vector<2x32xf32>
    %324 = arith.mulf %323, %323 : vector<2x32xf32>
    %cst_130 = arith.constant dense<0.000000e+00> : vector<2xf32>
    %325 = vector.multi_reduction <add>, %324, %cst_130 [1] : vector<2x32xf32> to vector<2xf32>
    %326 = vector.shape_cast %325 : vector<2xf32> to vector<2x1xf32>
    %cst_131 = arith.constant 3.200000e+01 : f32
    %327 = vector.broadcast %cst_131 : f32 to vector<2x1xf32>
    %328 = arith.divf %326, %327 : vector<2x1xf32>
    %329 = vector.broadcast %321 : vector<2x1xf32> to vector<2x32xf32>
    %330 = arith.subf %315, %329 : vector<2x32xf32>
    %cst_132 = arith.constant 9.99999974E-6 : f32
    %331 = vector.broadcast %cst_132 : f32 to vector<2x1xf32>
    %332 = arith.addf %328, %331 : vector<2x1xf32>
    %333 = math.rsqrt %332 : vector<2x1xf32>
    %334 = vector.broadcast %333 : vector<2x1xf32> to vector<2x32xf32>
    %335 = arith.mulf %330, %334 : vector<2x32xf32>
    %336 = vector.broadcast %316 : vector<1x32xf32> to vector<2x32xf32>
    %337 = arith.mulf %335, %336 : vector<2x32xf32>
    %338 = vector.broadcast %317 : vector<1x32xf32> to vector<2x32xf32>
    %339 = arith.addf %337, %338 : vector<2x32xf32>
    %c0_133 = arith.constant 0 : index
    %c0_134 = arith.constant 0 : index
    %340 = vector.load %arg8[%c0_133, %c0_134] : memref<32x128xf32, #tpu.memory_space<vmem>>, vector<32x128xf32>
    %cst_135 = arith.constant dense<0.000000e+00> : vector<2x128xf32>
    %341 = tpu.matmul %339, %340, %cst_135 {dimension_numbers = #tpu.dot_dimension_numbers<[1], [0], [0], [1], [0, 0, 1, 1], [], []>} : vector<2x32xf32>, vector<32x128xf32>, vector<2x128xf32> -> vector<2x128xf32>
    %c18 = arith.constant 18 : index
    %c0_136 = arith.constant 0 : index
    %342 = vector.load %arg7[%c18, %c0_136] : memref<19x128xf32, #tpu.memory_space<vmem>>, vector<1x128xf32>
    %343 = vector.broadcast %342 : vector<1x128xf32> to vector<2x128xf32>
    %344 = arith.addf %341, %343 : vector<2x128xf32>
    %c0_137 = arith.constant 0 : index
    %c0_138 = arith.constant 0 : index
    %345 = vector.load %arg9[%c0_137, %c0_138] : memref<2x128xf32, #tpu.memory_space<vmem>>, vector<2x128xf32>
    tpu.vector_store %arg9[%c0_137, %c0_138], %344 {strides = array<i32>} : memref<2x128xf32, #tpu.memory_space<vmem>>, vector<2x128xf32>,
    return
  }
  func.func @transform_0(%arg0: i32) -> (i32, i32) {
    %c0_i32 = arith.constant 0 : i32
    %c0_i32_0 = arith.constant 0 : i32
    %c0_i32_1 = arith.constant 0 : i32
    return %c0_i32, %c0_i32_0 : i32, i32
  }
  func.func @transform_1(%arg0: i32) -> (i32, i32) {
    %c0_i32 = arith.constant 0 : i32
    %c0_i32_0 = arith.constant 0 : i32
    %c0_i32_1 = arith.constant 0 : i32
    return %c0_i32, %c0_i32_0 : i32, i32
  }
  func.func @transform_2(%arg0: i32) -> (i32, i32, i32) {
    %c0_i32 = arith.constant 0 : i32
    %c0_i32_0 = arith.constant 0 : i32
    %c0_i32_1 = arith.constant 0 : i32
    %c0_i32_2 = arith.constant 0 : i32
    return %c0_i32, %c0_i32_0, %c0_i32_1 : i32, i32, i32
  }
  func.func @transform_3(%arg0: i32) -> (i32, i32) {
    %c0_i32 = arith.constant 0 : i32
    %c0_i32_0 = arith.constant 0 : i32
    %c0_i32_1 = arith.constant 0 : i32
    return %c0_i32, %c0_i32_0 : i32, i32
  }
  func.func @transform_4(%arg0: i32) -> (i32, i32, i32) {
    %c0_i32 = arith.constant 0 : i32
    %c0_i32_0 = arith.constant 0 : i32
    %c0_i32_1 = arith.constant 0 : i32
    %c0_i32_2 = arith.constant 0 : i32
    return %c0_i32, %c0_i32_0, %c0_i32_1 : i32, i32, i32
  }
  func.func @transform_5(%arg0: i32) -> (i32, i32, i32, i32) {
    %c0_i32 = arith.constant 0 : i32
    %c0_i32_0 = arith.constant 0 : i32
    %c0_i32_1 = arith.constant 0 : i32
    %c0_i32_2 = arith.constant 0 : i32
    %c0_i32_3 = arith.constant 0 : i32
    return %c0_i32, %c0_i32_0, %c0_i32_1, %c0_i32_2 : i32, i32, i32, i32
  }
  func.func @transform_6(%arg0: i32) -> (i32, i32) {
    %c0_i32 = arith.constant 0 : i32
    %c0_i32_0 = arith.constant 0 : i32
    %c0_i32_1 = arith.constant 0 : i32
    return %c0_i32, %c0_i32_0 : i32, i32
  }
  func.func @transform_7(%arg0: i32) -> (i32, i32) {
    %c0_i32 = arith.constant 0 : i32
    %c0_i32_0 = arith.constant 0 : i32
    %c0_i32_1 = arith.constant 0 : i32
    return %c0_i32, %c0_i32_0 : i32, i32
  }
  func.func @transform_8(%arg0: i32) -> (i32, i32) {
    %c0_i32 = arith.constant 0 : i32
    %c0_i32_0 = arith.constant 0 : i32
    %c0_i32_1 = arith.constant 0 : i32
    return %c0_i32, %c0_i32_0 : i32, i32
  }
}

</mosaic_0001>

<llo_original>
// kernel: vit_forward.1
$region0: #{vit_forward.1}
  #allocation0 [shape = 'u32[]', space=smem, size = 0x4, offset = 0x4, fixed_abs, tag = 'smem constant byte address 0x4 - core index']
  #allocation1 [shape = 'u32[144,128]{1,0:T(1,128)}', space=vmem, size = 0x12000, scoped, tag = 'internal scratch']
  %s0 = inlined_call_operand.vmem [shape: f32[10,192], index: 0, kind: input, shape index: {}]
  %s1 = inlined_call_operand.vmem [shape: f32[192,32], index: 1, kind: input, shape index: {}]
  %s2 = inlined_call_operand.vmem [shape: f32[2,10,32], index: 2, kind: input, shape index: {}]
  %s3 = inlined_call_operand.vmem [shape: f32[10,10], index: 3, kind: input, shape index: {}]
  %s4 = inlined_call_operand.vmem [shape: f32[2,32,96], index: 4, kind: input, shape index: {}]
  %s5 = inlined_call_operand.vmem [shape: f32[2,3,32,32], index: 5, kind: input, shape index: {}]
  %s6 = inlined_call_operand.vmem [shape: f32[19,128], index: 6, kind: input, shape index: {}]
  %s7 = inlined_call_operand.vmem [shape: f32[32,128], index: 7, kind: input, shape index: {}]
  %s8 = inlined_call_operand.hbm [shape: f32[2,128], index: 8, kind: output, shape index: {}]
  %s9 = sld [smem:[#allocation0]]
  $region42: #{vit_forward.1} parent=0
    _
  %s11 = ssub.s32 1, %s9
  %s12 = scalar_select 0, %s11, %s9
  $region1: #{vit_forward.1} parent=0
    #allocation2 [shape = 'u8[1024]{0}', space=vmem, size = 0x400, scoped, tag = 'output window, operand 0, single buffered']
    #allocation3 [shape = 's32[1]{0}', space=sflag, size = 0x4, scoped, tag = 'scoped memory for vit_forward.1']
    %13 = vsyncpa [#allocation3], 0
    // Predicated region
    $region2: #{vit_forward.1} parent=1 // pred_check
      _
    $region3: #{vit_forward.1} parent=1 // pred_check_branch
      %15 = sbr.rel (0) target = $region5
    $region4: #{vit_forward.1} parent=1 // pred_region
      _
    $region5: #{vit_forward.1} parent=1 // pred_fallthru
      _
    // Predicated region
    $region6: #{vit_forward.1} parent=1 // pred_check
      _
    $region7: #{vit_forward.1} parent=1 // pred_check_branch
      %17 = sbr.rel (0) target = $region9
    $region8: #{vit_forward.1} parent=1 // pred_region
      _
    $region9: #{vit_forward.1} parent=1 // pred_fallthru
      _
    // Predicated region
    $region10: #{vit_forward.1} parent=1 // pred_check
      _
    $region11: #{vit_forward.1} parent=1 // pred_check_branch
      %19 = sbr.rel (0) target = $region13
    $region12: #{vit_forward.1} parent=1 // pred_region
      _
    $region13: #{vit_forward.1} parent=1 // pred_fallthru
      _
    // Predicated region
    $region14: #{vit_forward.1} parent=1 // pred_check
      _
    $region15: #{vit_forward.1} parent=1 // pred_check_branch
      %21 = sbr.rel (0) target = $region17
    $region16: #{vit_forward.1} parent=1 // pred_region
      _
    $region17: #{vit_forward.1} parent=1 // pred_fallthru
      _
    // Predicated region
    $region18: #{vit_forward.1} parent=1 // pred_check
      _
    $region19: #{vit_forward.1} parent=1 // pred_check_branch
      %23 = sbr.rel (0) target = $region21
    $region20: #{vit_forward.1} parent=1 // pred_region
      _
    $region21: #{vit_forward.1} parent=1 // pred_fallthru
      _
    // Predicated region
    $region22: #{vit_forward.1} parent=1 // pred_check
      _
    $region23: #{vit_forward.1} parent=1 // pred_check_branch
      %25 = sbr.rel (0) target = $region25
    $region24: #{vit_forward.1} parent=1 // pred_region
      _
    $region25: #{vit_forward.1} parent=1 // pred_fallthru
      _
    // Predicated region
    $region26: #{vit_forward.1} parent=1 // pred_check
      _
    $region27: #{vit_forward.1} parent=1 // pred_check_branch
      %27 = sbr.rel (0) target = $region29
    $region28: #{vit_forward.1} parent=1 // pred_region
      _
    $region29: #{vit_forward.1} parent=1 // pred_fallthru
      _
    // Predicated region
    $region30: #{vit_forward.1} parent=1 // pred_check
      _
    $region31: #{vit_forward.1} parent=1 // pred_check_branch
      %29 = sbr.rel (0) target = $region33
    $region32: #{vit_forward.1} parent=1 // pred_region
      _
    $region33: #{vit_forward.1} parent=1 // pred_fallthru
      _
    %v30 = vld [vmem:[%s0] sm:$0xff]
    %v31 = vld [vmem:[%s0 + $0x8] sm:$0xff]
    %v32 = vld [vmem:[%s0 + $0x10] sm:$0x3]
    %v33 = vld [vmem:[%s0 + $0x18] sm:$0x3]
    %v34 = vld [vmem:[%s1] sm:$0xff]
    %v35 = vld [vmem:[%s1 + $0x8] sm:$0xff]
    %v36 = vld [vmem:[%s1 + $0x10] sm:$0xff]
    %v37 = vld [vmem:[%s1 + $0x18] sm:$0xff]
    %v38 = vld [vmem:[%s1 + $0x20] sm:$0xff]
    %v39 = vld [vmem:[%s1 + $0x28] sm:$0xff]
    %v40 = vld [vmem:[%s1 + $0x30] sm:$0xff]
    %v41 = vld [vmem:[%s1 + $0x38] sm:$0xff]
    %v42 = vld [vmem:[%s1 + $0x40] sm:$0xff]
    %v43 = vld [vmem:[%s1 + $0x48] sm:$0xff]
    %v44 = vld [vmem:[%s1 + $0x50] sm:$0xff]
    %v45 = vld [vmem:[%s1 + $0x58] sm:$0xff]
    %v46 = vld [vmem:[%s1 + $0x60] sm:$0xff]
    %v47 = vld [vmem:[%s1 + $0x68] sm:$0xff]
    %v48 = vld [vmem:[%s1 + $0x70] sm:$0xff]
    %v49 = vld [vmem:[%s1 + $0x78] sm:$0xff]
    %v50 = vld [vmem:[%s1 + $0x80] sm:$0xff]
    %v51 = vld [vmem:[%s1 + $0x88] sm:$0xff]
    %v52 = vld [vmem:[%s1 + $0x90] sm:$0xff]
    %v53 = vld [vmem:[%s1 + $0x98] sm:$0xff]
    %v54 = vld [vmem:[%s1 + $0xa0] sm:$0xff]
    %v55 = vld [vmem:[%s1 + $0xa8] sm:$0xff]
    %v56 = vld [vmem:[%s1 + $0xb0] sm:$0xff]
    %v57 = vld [vmem:[%s1 + $0xb8] sm:$0xff]
    %v58 = vld [vmem:[%s2] sm:$0xff]
    %v59 = vld [vmem:[%s2 + $0x8] sm:$0x3]
    %vm60 = vcmask 523264
    %v62 = vsel %vm60, %v31, 0
    %v65 = vsel %vm60, %v33, 0
    %67 = vmatprep.subr.mxu0 0.0
    %68 = vmatpush1.msra.mxu0 %v49
    %69 = vmatprep.subr.mxu0 0.0
    %70 = vmatpush1.msra.mxu0 %v48
    %71 = vmatprep.subr.mxu0 0.0
    %72 = vmatpush1.msra.mxu0 %v47
    %73 = vmatprep.subr.mxu0 0.0
    %74 = vmatpush1.msra.mxu0 %v46
    %75 = vmatprep.subr.mxu0 0.0
    %76 = vmatpush1.msra.mxu0 %v45
    %77 = vmatprep.subr.mxu0 0.0
    %78 = vmatpush1.msra.mxu0 %v44
    %79 = vmatprep.subr.mxu0 0.0
    %80 = vmatpush1.msra.mxu0 %v43
    %81 = vmatprep.subr.mxu0 0.0
    %82 = vmatpush1.msra.mxu0 %v42
    %83 = vmatprep.subr.mxu0 0.0
    %84 = vmatpush1.msra.mxu0 %v41
    %85 = vmatprep.subr.mxu0 0.0
    %86 = vmatpush1.msra.mxu0 %v40
    %87 = vmatprep.subr.mxu0 0.0
    %88 = vmatpush1.msra.mxu0 %v39
    %89 = vmatprep.subr.mxu0 0.0
    %90 = vmatpush1.msra.mxu0 %v38
    %91 = vmatprep.subr.mxu0 0.0
    %92 = vmatpush1.msra.mxu0 %v37
    %93 = vmatprep.subr.mxu0 0.0
    %94 = vmatpush1.msra.mxu0 %v36
    %95 = vmatprep.subr.mxu0 0.0
    %96 = vmatpush1.msra.mxu0 %v35
    %97 = vmatprep.subr.mxu0 0.0
    %98 = vmatpush1.msra.mxu0 %v34
    %99 = vmatprep.subr.mxu0 0.0
    %100 = vmatpush2.msra.mxu0 0.0
    %101 = vmatprep.subr.mxu0 0.0
    %102 = vmatpush2.msra.mxu0 0.0
    %103 = vmatprep.subr.mxu0 0.0
    %104 = vmatpush2.msra.mxu0 0.0
    %105 = vmatprep.subr.mxu0 0.0
    %106 = vmatpush2.msra.mxu0 0.0
    %107 = vmatprep.subr.mxu0 0.0
    %108 = vmatpush2.msra.mxu0 0.0
    %109 = vmatprep.subr.mxu0 0.0
    %110 = vmatpush2.msra.mxu0 0.0
    %111 = vmatprep.subr.mxu0 0.0
    %112 = vmatpush2.msra.mxu0 0.0
    %113 = vmatprep.subr.mxu0 0.0
    %114 = vmatpush2.msra.mxu0 0.0
    %115 = vmatprep.subr.mxu0 0.0
    %116 = vmatpush2.msra.mxu0 %v57
    %117 = vmatprep.subr.mxu0 0.0
    %118 = vmatpush2.msra.mxu0 %v56
    %119 = vmatprep.subr.mxu0 0.0
    %120 = vmatpush2.msra.mxu0 %v55
    %121 = vmatprep.subr.mxu0 0.0
    %122 = vmatpush2.msra.mxu0 %v54
    %123 = vmatprep.subr.mxu0 0.0
    %124 = vmatpush2.msra.mxu0 %v53
    %125 = vmatprep.subr.mxu0 0.0
    %126 = vmatpush2.msra.mxu0 %v52
    %127 = vmatprep.subr.mxu0 0.0
    %128 = vmatpush2.msra.mxu0 %v51
    %129 = vmatprep.subr.mxu0 0.0
    %130 = vmatpush2.msra.mxu0 %v50
    %131 = vmatprep.mubr.f32.mxu0 %v62
    %132 = vmatmul.mubr.f32.gmra.mxu0 %v30
    %v133 = vpop.f32.mrf.mxu0
    %v134 = vadd.f32 %v58, %v133
    %v135 = vpop.f32.mrf.mxu0
    %136 = vmatprep.mubr.f32.mxu0 %v65
    %137 = vmatmul.mubr.f32.gmra.mxu0 %v32
    %v138 = vpop.f32.mrf.mxu0
    %v139 = vadd.f32 %v59, %v138
    %v140 = vpop.f32.mrf.mxu0
    %141 = vdwg.mxu0
    %s142 = scalar_lea.vmem %s2, 16
    %v143 = vld [vmem:[%s142] sm:$0xff]
    %v144 = vld [vmem:[%s142 + $0x8] sm:$0x3]
    %v145 = vld [vmem:[%s3] sm:$0xff]
    %v146 = vld [vmem:[%s3 + $0x8] sm:$0x3]
    %v147 = vadd.f32 %v134, %v143
    %v148 = vadd.f32 %v139, %v144
    %v149 = vld [vmem:[%s4] sm:$0xff]
    %v150 = vld [vmem:[%s4 + $0x8] sm:$0xff]
    %v151 = vld [vmem:[%s4 + $0x10] sm:$0xff]
    %v152 = vld [vmem:[%s4 + $0x18] sm:$0xff]
    %v153 = vld [vmem:[%s6] sm:$0x1]
    %v154 = vlaneseq
    %v155 = vshrl.u32 %v154, 7
    %v156 = vsub.s32 0, %v155
    %v157 = vrot.slane %v153, %v156
    %vm158 = vcmask 261120
    %v160 = vsel %vm158, %v147, 0
    %v163 = vsel %vm158, %v148, 0
    %165 = vmatprep.subr.mxu0 0.0
    %166 = vmatpush1.msra.mxu0 0.0
    %167 = vmatprep.subr.mxu0 0.0
    %168 = vmatpush1.msra.mxu0 0.0
    %169 = vmatprep.subr.mxu0 0.0
    %170 = vmatpush1.msra.mxu0 0.0
    %171 = vmatprep.subr.mxu0 0.0
    %172 = vmatpush1.msra.mxu0 0.0
    %173 = vmatprep.subr.mxu0 0.0
    %174 = vmatpush1.msra.mxu0 0.0
    %175 = vmatprep.subr.mxu0 0.0
    %176 = vmatpush1.msra.mxu0 0.0
    %177 = vmatprep.subr.mxu0 0.0
    %178 = vmatpush1.msra.mxu0 0.0
    %179 = vmatprep.subr.mxu0 0.0
    %180 = vmatpush1.msra.mxu0 0.0
    %181 = vmatprep.subr.mxu0 0.0
    %182 = vmatpush1.msra.mxu0 0.0
    %183 = vmatprep.subr.mxu0 0.0
    %184 = vmatpush1.msra.mxu0 0.0
    %185 = vmatprep.subr.mxu0 0.0
    %186 = vmatpush1.msra.mxu0 0.0
    %187 = vmatprep.subr.mxu0 0.0
    %188 = vmatpush1.msra.mxu0 0.0
    %189 = vmatprep.subr.mxu0 0.0
    %190 = vmatpush1.msra.mxu0 %v152
    %191 = vmatprep.subr.mxu0 0.0
    %192 = vmatpush1.msra.mxu0 %v151
    %193 = vmatprep.subr.mxu0 0.0
    %194 = vmatpush1.msra.mxu0 %v150
    %195 = vmatprep.subr.mxu0 0.0
    %196 = vmatpush1.msra.mxu0 %v149
    %197 = vmatprep.subr.mxu0 0.0
    %198 = vmatpush2.msra.mxu0 0.0
    %199 = vmatprep.subr.mxu0 0.0
    %200 = vmatpush2.msra.mxu0 0.0
    %201 = vmatprep.subr.mxu0 0.0
    %202 = vmatpush2.msra.mxu0 0.0
    %203 = vmatprep.subr.mxu0 0.0
    %204 = vmatpush2.msra.mxu0 0.0
    %205 = vmatprep.subr.mxu0 0.0
    %206 = vmatpush2.msra.mxu0 0.0
    %207 = vmatprep.subr.mxu0 0.0
    %208 = vmatpush2.msra.mxu0 0.0
    %209 = vmatprep.subr.mxu0 0.0
    %210 = vmatpush2.msra.mxu0 0.0
    %211 = vmatprep.subr.mxu0 0.0
    %212 = vmatpush2.msra.mxu0 0.0
    %213 = vmatprep.subr.mxu0 0.0
    %214 = vmatpush2.msra.mxu0 0.0
    %215 = vmatprep.subr.mxu0 0.0
    %216 = vmatpush2.msra.mxu0 0.0
    %217 = vmatprep.subr.mxu0 0.0
    %218 = vmatpush2.msra.mxu0 0.0
    %219 = vmatprep.subr.mxu0 0.0
    %220 = vmatpush2.msra.mxu0 0.0
    %221 = vmatprep.subr.mxu0 0.0
    %222 = vmatpush2.msra.mxu0 0.0
    %223 = vmatprep.subr.mxu0 0.0
    %224 = vmatpush2.msra.mxu0 0.0
    %225 = vmatprep.subr.mxu0 0.0
    %226 = vmatpush2.msra.mxu0 0.0
    %227 = vmatprep.subr.mxu0 0.0
    %228 = vmatpush2.msra.mxu0 0.0
    %229 = vmatprep.mubr.f32.mxu0 0.0
    %230 = vmatmul.mubr.f32.gmra.mxu0 %v160
    %v231 = vpop.f32.mrf.mxu0
    %v232 = vadd.f32 %v157, %v231
    %v233 = vpop.f32.mrf.mxu0
    %234 = vmatprep.mubr.f32.mxu0 0.0
    %235 = vmatmul.mubr.f32.gmra.mxu0 %v163
    %v236 = vpop.f32.mrf.mxu0
    %v237 = vadd.f32 %v157, %v236
    %v238 = vpop.f32.mrf.mxu0
    %239 = vdwg.mxu0
    %242 = vrot.lane.b32.xlu0 %v232, 96
    %v243 = vpop.permute.xlu0 %242
    %244 = vrot.lane.b32.xlu0 %v237, 96
    %v245 = vpop.permute.xlu0 %244
    %vm246 = vcmask 64512
    %v247 = vsel %vm246, %v232, 0
    %v249 = vsel %vm246, %v237, 0
    %v251 = vsel %vm246, %v243, 0
    %v253 = vsel %vm246, %v245, 0
    %255 = vmatprep.subr.mxu0 0.0
    %256 = vmatpush1.xpose.msra.mxu0 0.0
    %257 = vmatprep.subr.mxu0 0.0
    %258 = vmatpush1.xpose.msra.mxu0 0.0
    %259 = vmatprep.subr.mxu0 0.0
    %260 = vmatpush1.xpose.msra.mxu0 0.0
    %261 = vmatprep.subr.mxu0 0.0
    %262 = vmatpush1.xpose.msra.mxu0 0.0
    %263 = vmatprep.subr.mxu0 0.0
    %264 = vmatpush1.xpose.msra.mxu0 0.0
    %265 = vmatprep.subr.mxu0 0.0
    %266 = vmatpush1.xpose.msra.mxu0 0.0
    %267 = vmatprep.subr.mxu0 0.0
    %268 = vmatpush1.xpose.msra.mxu0 0.0
    %269 = vmatprep.subr.mxu0 0.0
    %270 = vmatpush1.xpose.msra.mxu0 0.0
    %271 = vmatprep.subr.mxu0 0.0
    %272 = vmatpush1.xpose.msra.mxu0 0.0
    %273 = vmatprep.subr.mxu0 0.0
    %274 = vmatpush1.xpose.msra.mxu0 0.0
    %275 = vmatprep.subr.mxu0 0.0
    %276 = vmatpush1.xpose.msra.mxu0 0.0
    %277 = vmatprep.subr.mxu0 0.0
    %278 = vmatpush1.xpose.msra.mxu0 0.0
    %279 = vmatprep.subr.mxu0 0.0
    %280 = vmatpush1.xpose.msra.mxu0 0.0
    %281 = vmatprep.subr.mxu0 0.0
    %282 = vmatpush1.xpose.msra.mxu0 0.0
    %283 = vmatprep.subr.mxu0 0.0
    %284 = vmatpush1.xpose.msra.mxu0 %v253
    %285 = vmatprep.subr.mxu0 0.0
    %286 = vmatpush1.xpose.msra.mxu0 %v251
    %287 = vmatprep.subr.mxu0 0.0
    %288 = vmatpush2.xpose.msra.mxu0 0.0
    %289 = vmatprep.subr.mxu0 0.0
    %290 = vmatpush2.xpose.msra.mxu0 0.0
    %291 = vmatprep.subr.mxu0 0.0
    %292 = vmatpush2.xpose.msra.mxu0 0.0
    %293 = vmatprep.subr.mxu0 0.0
    %294 = vmatpush2.xpose.msra.mxu0 0.0
    %295 = vmatprep.subr.mxu0 0.0
    %296 = vmatpush2.xpose.msra.mxu0 0.0
    %297 = vmatprep.subr.mxu0 0.0
    %298 = vmatpush2.xpose.msra.mxu0 0.0
    %299 = vmatprep.subr.mxu0 0.0
    %300 = vmatpush2.xpose.msra.mxu0 0.0
    %301 = vmatprep.subr.mxu0 0.0
    %302 = vmatpush2.xpose.msra.mxu0 0.0
    %303 = vmatprep.subr.mxu0 0.0
    %304 = vmatpush2.xpose.msra.mxu0 0.0
    %305 = vmatprep.subr.mxu0 0.0
    %306 = vmatpush2.xpose.msra.mxu0 0.0
    %307 = vmatprep.subr.mxu0 0.0
    %308 = vmatpush2.xpose.msra.mxu0 0.0
    %309 = vmatprep.subr.mxu0 0.0
    %310 = vmatpush2.xpose.msra.mxu0 0.0
    %311 = vmatprep.subr.mxu0 0.0
    %312 = vmatpush2.xpose.msra.mxu0 0.0
    %313 = vmatprep.subr.mxu0 0.0
    %314 = vmatpush2.xpose.msra.mxu0 0.0
    %315 = vmatprep.subr.mxu0 0.0
    %316 = vmatpush2.xpose.msra.mxu0 0.0
    %317 = vmatprep.subr.mxu0 0.0
    %318 = vmatpush2.xpose.msra.mxu0 0.0
    %319 = vmatprep.mubr.f32.mxu0 0.0
    %320 = vmatmul.mubr.f32.gmra.mxu0 %v247
    %v321 = vpop.f32.mrf.mxu0
    %v322 = vadd.f32 %v145, %v321
    %v323 = vpop.f32.mrf.mxu0
    %324 = vmatprep.mubr.f32.mxu0 0.0
    %325 = vmatmul.mubr.f32.gmra.mxu0 %v249
    %v326 = vpop.f32.mrf.mxu0
    %v327 = vadd.f32 %v146, %v326
    %v328 = vpop.f32.mrf.mxu0
    %329 = vdwg.mxu0
    %vm330 = vcmask 80896
    %v331 = vsel %vm330, %v322, -inf
    %332 = vmax.xlane.f32.xlu0 %v331
    %v333 = vpop.xlane.xlu0 %332
    %vm334 = vcmask 74752
    %v335 = vsel %vm334, %v327, -inf
    %336 = vmax.xlane.f32.xlu0 %v335
    %v337 = vpop.xlane.xlu0 %336
    %v338 = vsub.f32 %v322, %v333
    %v339 = vsub.f32 %v327, %v337
    %v340 = vmul.f32 %v338, 1.442695
    %v341 = vpow.pop %v340
    %v342 = vmul.f32 %v339, 1.442695
    %v343 = vpow.pop %v342
    %v344 = vsel %vm330, %v341, 0.0
    %345 = vadd.xlane.f32.xlu0 %v344
    %v346 = vpop.xlane.xlu0 %345
    %v347 = vsel %vm334, %v343, 0.0
    %348 = vadd.xlane.f32.xlu0 %v347
    %v349 = vpop.xlane.xlu0 %348
    %v350 = vrcp.pop %v346
    %v351 = vrcp.pop %v349
    %v352 = vmul.f32 %v341, %v350
    %v353 = vmul.f32 %v343, %v351
    %354 = vrot.lane.b32.xlu0 %v232, 64
    %v355 = vpop.permute.xlu0 %354
    %356 = vrot.lane.b32.xlu0 %v237, 64
    %v357 = vpop.permute.xlu0 %356
    %v360 = vsel %vm330, %v352, 0
    %v363 = vsel %vm330, %v353, 0
    %vm365 = vcmask 1041408
    %v366 = vsel %vm365, %v357, 0
    %368 = vmatprep.subr.mxu0 0.0
    %369 = vmatpush1.msra.mxu0 0.0
    %370 = vmatprep.subr.mxu0 0.0
    %371 = vmatpush1.msra.mxu0 0.0
    %372 = vmatprep.subr.mxu0 0.0
    %373 = vmatpush1.msra.mxu0 0.0
    %374 = vmatprep.subr.mxu0 0.0
    %375 = vmatpush1.msra.mxu0 0.0
    %376 = vmatprep.subr.mxu0 0.0
    %377 = vmatpush1.msra.mxu0 0.0
    %378 = vmatprep.subr.mxu0 0.0
    %379 = vmatpush1.msra.mxu0 0.0
    %380 = vmatprep.subr.mxu0 0.0
    %381 = vmatpush1.msra.mxu0 0.0
    %382 = vmatprep.subr.mxu0 0.0
    %383 = vmatpush1.msra.mxu0 0.0
    %384 = vmatprep.subr.mxu0 0.0
    %385 = vmatpush1.msra.mxu0 0.0
    %386 = vmatprep.subr.mxu0 0.0
    %387 = vmatpush1.msra.mxu0 0.0
    %388 = vmatprep.subr.mxu0 0.0
    %389 = vmatpush1.msra.mxu0 0.0
    %390 = vmatprep.subr.mxu0 0.0
    %391 = vmatpush1.msra.mxu0 0.0
    %392 = vmatprep.subr.mxu0 0.0
    %393 = vmatpush1.msra.mxu0 0.0
    %394 = vmatprep.subr.mxu0 0.0
    %395 = vmatpush1.msra.mxu0 0.0
    %396 = vmatprep.subr.mxu0 0.0
    %397 = vmatpush1.msra.mxu0 %v366
    %398 = vmatprep.subr.mxu0 0.0
    %399 = vmatpush1.msra.mxu0 %v355
    %400 = vmatprep.subr.mxu0 0.0
    %401 = vmatpush2.msra.mxu0 0.0
    %402 = vmatprep.subr.mxu0 0.0
    %403 = vmatpush2.msra.mxu0 0.0
    %404 = vmatprep.subr.mxu0 0.0
    %405 = vmatpush2.msra.mxu0 0.0
    %406 = vmatprep.subr.mxu0 0.0
    %407 = vmatpush2.msra.mxu0 0.0
    %408 = vmatprep.subr.mxu0 0.0
    %409 = vmatpush2.msra.mxu0 0.0
    %410 = vmatprep.subr.mxu0 0.0
    %411 = vmatpush2.msra.mxu0 0.0
    %412 = vmatprep.subr.mxu0 0.0
    %413 = vmatpush2.msra.mxu0 0.0
    %414 = vmatprep.subr.mxu0 0.0
    %415 = vmatpush2.msra.mxu0 0.0
    %416 = vmatprep.subr.mxu0 0.0
    %417 = vmatpush2.msra.mxu0 0.0
    %418 = vmatprep.subr.mxu0 0.0
    %419 = vmatpush2.msra.mxu0 0.0
    %420 = vmatprep.subr.mxu0 0.0
    %421 = vmatpush2.msra.mxu0 0.0
    %422 = vmatprep.subr.mxu0 0.0
    %423 = vmatpush2.msra.mxu0 0.0
    %424 = vmatprep.subr.mxu0 0.0
    %425 = vmatpush2.msra.mxu0 0.0
    %426 = vmatprep.subr.mxu0 0.0
    %427 = vmatpush2.msra.mxu0 0.0
    %428 = vmatprep.subr.mxu0 0.0
    %429 = vmatpush2.msra.mxu0 0.0
    %430 = vmatprep.subr.mxu0 0.0
    %431 = vmatpush2.msra.mxu0 0.0
    %432 = vmatprep.mubr.f32.mxu0 0.0
    %433 = vmatmul.mubr.f32.gmra.mxu0 %v360
    %v434 = vpop.f32.mrf.mxu0
    %v435 = vadd.f32 0.0, %v434
    %v436 = vpop.f32.mrf.mxu0
    %437 = vmatprep.mubr.f32.mxu0 0.0
    %438 = vmatmul.mubr.f32.gmra.mxu0 %v363
    %v439 = vpop.f32.mrf.mxu0
    %v440 = vadd.f32 0.0, %v439
    %v441 = vpop.f32.mrf.mxu0
    %442 = vdwg.mxu0
    %443 = vrot.lane.b32.xlu0 %v232, 120
    %v444 = vpop.permute.xlu0 %443
    %445 = vrot.lane.b32.xlu0 %v237, 120
    %v446 = vpop.permute.xlu0 %445
    %447 = vrot.lane.b32.xlu0 %v232, 88
    %v448 = vpop.permute.xlu0 %447
    %449 = vrot.lane.b32.xlu0 %v237, 88
    %v450 = vpop.permute.xlu0 %449
    %v451 = vsel %vm246, %v444, 0
    %v453 = vsel %vm246, %v446, 0
    %v455 = vsel %vm246, %v448, 0
    %v457 = vsel %vm246, %v450, 0
    %459 = vmatprep.subr.mxu0 0.0
    %460 = vmatpush1.xpose.msra.mxu0 0.0
    %461 = vmatprep.subr.mxu0 0.0
    %462 = vmatpush1.xpose.msra.mxu0 0.0
    %463 = vmatprep.subr.mxu0 0.0
    %464 = vmatpush1.xpose.msra.mxu0 0.0
    %465 = vmatprep.subr.mxu0 0.0
    %466 = vmatpush1.xpose.msra.mxu0 0.0
    %467 = vmatprep.subr.mxu0 0.0
    %468 = vmatpush1.xpose.msra.mxu0 0.0
    %469 = vmatprep.subr.mxu0 0.0
    %470 = vmatpush1.xpose.msra.mxu0 0.0
    %471 = vmatprep.subr.mxu0 0.0
    %472 = vmatpush1.xpose.msra.mxu0 0.0
    %473 = vmatprep.subr.mxu0 0.0
    %474 = vmatpush1.xpose.msra.mxu0 0.0
    %475 = vmatprep.subr.mxu0 0.0
    %476 = vmatpush1.xpose.msra.mxu0 0.0
    %477 = vmatprep.subr.mxu0 0.0
    %478 = vmatpush1.xpose.msra.mxu0 0.0
    %479 = vmatprep.subr.mxu0 0.0
    %480 = vmatpush1.xpose.msra.mxu0 0.0
    %481 = vmatprep.subr.mxu0 0.0
    %482 = vmatpush1.xpose.msra.mxu0 0.0
    %483 = vmatprep.subr.mxu0 0.0
    %484 = vmatpush1.xpose.msra.mxu0 0.0
    %485 = vmatprep.subr.mxu0 0.0
    %486 = vmatpush1.xpose.msra.mxu0 0.0
    %487 = vmatprep.subr.mxu0 0.0
    %488 = vmatpush1.xpose.msra.mxu0 %v457
    %489 = vmatprep.subr.mxu0 0.0
    %490 = vmatpush1.xpose.msra.mxu0 %v455
    %491 = vmatprep.subr.mxu0 0.0
    %492 = vmatpush2.xpose.msra.mxu0 0.0
    %493 = vmatprep.subr.mxu0 0.0
    %494 = vmatpush2.xpose.msra.mxu0 0.0
    %495 = vmatprep.subr.mxu0 0.0
    %496 = vmatpush2.xpose.msra.mxu0 0.0
    %497 = vmatprep.subr.mxu0 0.0
    %498 = vmatpush2.xpose.msra.mxu0 0.0
    %499 = vmatprep.subr.mxu0 0.0
    %500 = vmatpush2.xpose.msra.mxu0 0.0
    %501 = vmatprep.subr.mxu0 0.0
    %502 = vmatpush2.xpose.msra.mxu0 0.0
    %503 = vmatprep.subr.mxu0 0.0
    %504 = vmatpush2.xpose.msra.mxu0 0.0
    %505 = vmatprep.subr.mxu0 0.0
    %506 = vmatpush2.xpose.msra.mxu0 0.0
    %507 = vmatprep.subr.mxu0 0.0
    %508 = vmatpush2.xpose.msra.mxu0 0.0
    %509 = vmatprep.subr.mxu0 0.0
    %510 = vmatpush2.xpose.msra.mxu0 0.0
    %511 = vmatprep.subr.mxu0 0.0
    %512 = vmatpush2.xpose.msra.mxu0 0.0
    %513 = vmatprep.subr.mxu0 0.0
    %514 = vmatpush2.xpose.msra.mxu0 0.0
    %515 = vmatprep.subr.mxu0 0.0
    %516 = vmatpush2.xpose.msra.mxu0 0.0
    %517 = vmatprep.subr.mxu0 0.0
    %518 = vmatpush2.xpose.msra.mxu0 0.0
    %519 = vmatprep.subr.mxu0 0.0
    %520 = vmatpush2.xpose.msra.mxu0 0.0
    %521 = vmatprep.subr.mxu0 0.0
    %522 = vmatpush2.xpose.msra.mxu0 0.0
    %523 = vmatprep.mubr.f32.mxu0 0.0
    %524 = vmatmul.mubr.f32.gmra.mxu0 %v451
    %v525 = vpop.f32.mrf.mxu0
    %v526 = vadd.f32 %v145, %v525
    %v527 = vpop.f32.mrf.mxu0
    %528 = vmatprep.mubr.f32.mxu0 0.0
    %529 = vmatmul.mubr.f32.gmra.mxu0 %v453
    %v530 = vpop.f32.mrf.mxu0
    %v531 = vadd.f32 %v146, %v530
    %v532 = vpop.f32.mrf.mxu0
    %533 = vdwg.mxu0
    %v534 = vsel %vm330, %v526, -inf
    %535 = vmax.xlane.f32.xlu0 %v534
    %v536 = vpop.xlane.xlu0 %535
    %v537 = vsel %vm334, %v531, -inf
    %538 = vmax.xlane.f32.xlu0 %v537
    %v539 = vpop.xlane.xlu0 %538
    %v540 = vsub.f32 %v526, %v536
    %v541 = vsub.f32 %v531, %v539
    %v542 = vmul.f32 %v540, 1.442695
    %v543 = vpow.pop %v542
    %v544 = vmul.f32 %v541, 1.442695
    %v545 = vpow.pop %v544
    %v546 = vsel %vm330, %v543, 0.0
    %547 = vadd.xlane.f32.xlu0 %v546
    %v548 = vpop.xlane.xlu0 %547
    %v549 = vsel %vm334, %v545, 0.0
    %550 = vadd.xlane.f32.xlu0 %v549
    %v551 = vpop.xlane.xlu0 %550
    %v552 = vrcp.pop %v548
    %v553 = vrcp.pop %v551
    %v554 = vmul.f32 %v543, %v552
    %v555 = vmul.f32 %v545, %v553
    %556 = vrot.lane.b32.xlu0 %v232, 56
    %v557 = vpop.permute.xlu0 %556
    %558 = vrot.lane.b32.xlu0 %v237, 56
    %v559 = vpop.permute.xlu0 %558
    %v562 = vsel %vm330, %v554, 0
    %v565 = vsel %vm330, %v555, 0
    %v567 = vsel %vm365, %v559, 0
    %569 = vmatprep.subr.mxu0 0.0
    %570 = vmatpush1.msra.mxu0 0.0
    %571 = vmatprep.subr.mxu0 0.0
    %572 = vmatpush1.msra.mxu0 0.0
    %573 = vmatprep.subr.mxu0 0.0
    %574 = vmatpush1.msra.mxu0 0.0
    %575 = vmatprep.subr.mxu0 0.0
    %576 = vmatpush1.msra.mxu0 0.0
    %577 = vmatprep.subr.mxu0 0.0
    %578 = vmatpush1.msra.mxu0 0.0
    %579 = vmatprep.subr.mxu0 0.0
    %580 = vmatpush1.msra.mxu0 0.0
    %581 = vmatprep.subr.mxu0 0.0
    %582 = vmatpush1.msra.mxu0 0.0
    %583 = vmatprep.subr.mxu0 0.0
    %584 = vmatpush1.msra.mxu0 0.0
    %585 = vmatprep.subr.mxu0 0.0
    %586 = vmatpush1.msra.mxu0 0.0
    %587 = vmatprep.subr.mxu0 0.0
    %588 = vmatpush1.msra.mxu0 0.0
    %589 = vmatprep.subr.mxu0 0.0
    %590 = vmatpush1.msra.mxu0 0.0
    %591 = vmatprep.subr.mxu0 0.0
    %592 = vmatpush1.msra.mxu0 0.0
    %593 = vmatprep.subr.mxu0 0.0
    %594 = vmatpush1.msra.mxu0 0.0
    %595 = vmatprep.subr.mxu0 0.0
    %596 = vmatpush1.msra.mxu0 0.0
    %597 = vmatprep.subr.mxu0 0.0
    %598 = vmatpush1.msra.mxu0 %v567
    %599 = vmatprep.subr.mxu0 0.0
    %600 = vmatpush1.msra.mxu0 %v557
    %601 = vmatprep.subr.mxu0 0.0
    %602 = vmatpush2.msra.mxu0 0.0
    %603 = vmatprep.subr.mxu0 0.0
    %604 = vmatpush2.msra.mxu0 0.0
    %605 = vmatprep.subr.mxu0 0.0
    %606 = vmatpush2.msra.mxu0 0.0
    %607 = vmatprep.subr.mxu0 0.0
    %608 = vmatpush2.msra.mxu0 0.0
    %609 = vmatprep.subr.mxu0 0.0
    %610 = vmatpush2.msra.mxu0 0.0
    %611 = vmatprep.subr.mxu0 0.0
    %612 = vmatpush2.msra.mxu0 0.0
    %613 = vmatprep.subr.mxu0 0.0
    %614 = vmatpush2.msra.mxu0 0.0
    %615 = vmatprep.subr.mxu0 0.0
    %616 = vmatpush2.msra.mxu0 0.0
    %617 = vmatprep.subr.mxu0 0.0
    %618 = vmatpush2.msra.mxu0 0.0
    %619 = vmatprep.subr.mxu0 0.0
    %620 = vmatpush2.msra.mxu0 0.0
    %621 = vmatprep.subr.mxu0 0.0
    %622 = vmatpush2.msra.mxu0 0.0
    %623 = vmatprep.subr.mxu0 0.0
    %624 = vmatpush2.msra.mxu0 0.0
    %625 = vmatprep.subr.mxu0 0.0
    %626 = vmatpush2.msra.mxu0 0.0
    %627 = vmatprep.subr.mxu0 0.0
    %628 = vmatpush2.msra.mxu0 0.0
    %629 = vmatprep.subr.mxu0 0.0
    %630 = vmatpush2.msra.mxu0 0.0
    %631 = vmatprep.subr.mxu0 0.0
    %632 = vmatpush2.msra.mxu0 0.0
    %633 = vmatprep.mubr.f32.mxu0 0.0
    %634 = vmatmul.mubr.f32.gmra.mxu0 %v562
    %v635 = vpop.f32.mrf.mxu0
    %v636 = vadd.f32 0.0, %v635
    %v637 = vpop.f32.mrf.mxu0
    %638 = vmatprep.mubr.f32.mxu0 0.0
    %639 = vmatmul.mubr.f32.gmra.mxu0 %v565
    %v640 = vpop.f32.mrf.mxu0
    %v641 = vadd.f32 0.0, %v640
    %v642 = vpop.f32.mrf.mxu0
    %643 = vdwg.mxu0
    %644 = vrot.lane.b32.xlu0 %v232, 112
    %v645 = vpop.permute.xlu0 %644
    %646 = vrot.lane.b32.xlu0 %v237, 112
    %v647 = vpop.permute.xlu0 %646
    %648 = vrot.lane.b32.xlu0 %v232, 80
    %v649 = vpop.permute.xlu0 %648
    %650 = vrot.lane.b32.xlu0 %v237, 80
    %v651 = vpop.permute.xlu0 %650
    %v652 = vsel %vm246, %v645, 0
    %v654 = vsel %vm246, %v647, 0
    %v656 = vsel %vm246, %v649, 0
    %v658 = vsel %vm246, %v651, 0
    %660 = vmatprep.subr.mxu0 0.0
    %661 = vmatpush1.xpose.msra.mxu0 0.0
    %662 = vmatprep.subr.mxu0 0.0
    %663 = vmatpush1.xpose.msra.mxu0 0.0
    %664 = vmatprep.subr.mxu0 0.0
    %665 = vmatpush1.xpose.msra.mxu0 0.0
    %666 = vmatprep.subr.mxu0 0.0
    %667 = vmatpush1.xpose.msra.mxu0 0.0
    %668 = vmatprep.subr.mxu0 0.0
    %669 = vmatpush1.xpose.msra.mxu0 0.0
    %670 = vmatprep.subr.mxu0 0.0
    %671 = vmatpush1.xpose.msra.mxu0 0.0
    %672 = vmatprep.subr.mxu0 0.0
    %673 = vmatpush1.xpose.msra.mxu0 0.0
    %674 = vmatprep.subr.mxu0 0.0
    %675 = vmatpush1.xpose.msra.mxu0 0.0
    %676 = vmatprep.subr.mxu0 0.0
    %677 = vmatpush1.xpose.msra.mxu0 0.0
    %678 = vmatprep.subr.mxu0 0.0
    %679 = vmatpush1.xpose.msra.mxu0 0.0
    %680 = vmatprep.subr.mxu0 0.0
    %681 = vmatpush1.xpose.msra.mxu0 0.0
    %682 = vmatprep.subr.mxu0 0.0
    %683 = vmatpush1.xpose.msra.mxu0 0.0
    %684 = vmatprep.subr.mxu0 0.0
    %685 = vmatpush1.xpose.msra.mxu0 0.0
    %686 = vmatprep.subr.mxu0 0.0
    %687 = vmatpush1.xpose.msra.mxu0 0.0
    %688 = vmatprep.subr.mxu0 0.0
    %689 = vmatpush1.xpose.msra.mxu0 %v658
    %690 = vmatprep.subr.mxu0 0.0
    %691 = vmatpush1.xpose.msra.mxu0 %v656
    %692 = vmatprep.subr.mxu0 0.0
    %693 = vmatpush2.xpose.msra.mxu0 0.0
    %694 = vmatprep.subr.mxu0 0.0
    %695 = vmatpush2.xpose.msra.mxu0 0.0
    %696 = vmatprep.subr.mxu0 0.0
    %697 = vmatpush2.xpose.msra.mxu0 0.0
    %698 = vmatprep.subr.mxu0 0.0
    %699 = vmatpush2.xpose.msra.mxu0 0.0
    %700 = vmatprep.subr.mxu0 0.0
    %701 = vmatpush2.xpose.msra.mxu0 0.0
    %702 = vmatprep.subr.mxu0 0.0
    %703 = vmatpush2.xpose.msra.mxu0 0.0
    %704 = vmatprep.subr.mxu0 0.0
    %705 = vmatpush2.xpose.msra.mxu0 0.0
    %706 = vmatprep.subr.mxu0 0.0
    %707 = vmatpush2.xpose.msra.mxu0 0.0
    %708 = vmatprep.subr.mxu0 0.0
    %709 = vmatpush2.xpose.msra.mxu0 0.0
    %710 = vmatprep.subr.mxu0 0.0
    %711 = vmatpush2.xpose.msra.mxu0 0.0
    %712 = vmatprep.subr.mxu0 0.0
    %713 = vmatpush2.xpose.msra.mxu0 0.0
    %714 = vmatprep.subr.mxu0 0.0
    %715 = vmatpush2.xpose.msra.mxu0 0.0
    %716 = vmatprep.subr.mxu0 0.0
    %717 = vmatpush2.xpose.msra.mxu0 0.0
    %718 = vmatprep.subr.mxu0 0.0
    %719 = vmatpush2.xpose.msra.mxu0 0.0
    %720 = vmatprep.subr.mxu0 0.0
    %721 = vmatpush2.xpose.msra.mxu0 0.0
    %722 = vmatprep.subr.mxu0 0.0
    %723 = vmatpush2.xpose.msra.mxu0 0.0
    %724 = vmatprep.mubr.f32.mxu0 0.0
    %725 = vmatmul.mubr.f32.gmra.mxu0 %v652
    %v726 = vpop.f32.mrf.mxu0
    %v727 = vadd.f32 %v145, %v726
    %v728 = vpop.f32.mrf.mxu0
    %729 = vmatprep.mubr.f32.mxu0 0.0
    %730 = vmatmul.mubr.f32.gmra.mxu0 %v654
    %v731 = vpop.f32.mrf.mxu0
    %v732 = vadd.f32 %v146, %v731
    %v733 = vpop.f32.mrf.mxu0
    %734 = vdwg.mxu0
    %v735 = vsel %vm330, %v727, -inf
    %736 = vmax.xlane.f32.xlu0 %v735
    %v737 = vpop.xlane.xlu0 %736
    %v738 = vsel %vm334, %v732, -inf
    %739 = vmax.xlane.f32.xlu0 %v738
    %v740 = vpop.xlane.xlu0 %739
    %v741 = vsub.f32 %v727, %v737
    %v742 = vsub.f32 %v732, %v740
    %v743 = vmul.f32 %v741, 1.442695
    %v744 = vpow.pop %v743
    %v745 = vmul.f32 %v742, 1.442695
    %v746 = vpow.pop %v745
    %v747 = vsel %vm330, %v744, 0.0
    %748 = vadd.xlane.f32.xlu0 %v747
    %v749 = vpop.xlane.xlu0 %748
    %v750 = vsel %vm334, %v746, 0.0
    %751 = vadd.xlane.f32.xlu0 %v750
    %v752 = vpop.xlane.xlu0 %751
    %v753 = vrcp.pop %v749
    %v754 = vrcp.pop %v752
    %v755 = vmul.f32 %v744, %v753
    %v756 = vmul.f32 %v746, %v754
    %757 = vrot.lane.b32.xlu0 %v232, 48
    %v758 = vpop.permute.xlu0 %757
    %759 = vrot.lane.b32.xlu0 %v237, 48
    %v760 = vpop.permute.xlu0 %759
    %v763 = vsel %vm330, %v755, 0
    %v766 = vsel %vm330, %v756, 0
    %v768 = vsel %vm365, %v760, 0
    %770 = vmatprep.subr.mxu0 0.0
    %771 = vmatpush1.msra.mxu0 0.0
    %772 = vmatprep.subr.mxu0 0.0
    %773 = vmatpush1.msra.mxu0 0.0
    %774 = vmatprep.subr.mxu0 0.0
    %775 = vmatpush1.msra.mxu0 0.0
    %776 = vmatprep.subr.mxu0 0.0
    %777 = vmatpush1.msra.mxu0 0.0
    %778 = vmatprep.subr.mxu0 0.0
    %779 = vmatpush1.msra.mxu0 0.0
    %780 = vmatprep.subr.mxu0 0.0
    %781 = vmatpush1.msra.mxu0 0.0
    %782 = vmatprep.subr.mxu0 0.0
    %783 = vmatpush1.msra.mxu0 0.0
    %784 = vmatprep.subr.mxu0 0.0
    %785 = vmatpush1.msra.mxu0 0.0
    %786 = vmatprep.subr.mxu0 0.0
    %787 = vmatpush1.msra.mxu0 0.0
    %788 = vmatprep.subr.mxu0 0.0
    %789 = vmatpush1.msra.mxu0 0.0
    %790 = vmatprep.subr.mxu0 0.0
    %791 = vmatpush1.msra.mxu0 0.0
    %792 = vmatprep.subr.mxu0 0.0
    %793 = vmatpush1.msra.mxu0 0.0
    %794 = vmatprep.subr.mxu0 0.0
    %795 = vmatpush1.msra.mxu0 0.0
    %796 = vmatprep.subr.mxu0 0.0
    %797 = vmatpush1.msra.mxu0 0.0
    %798 = vmatprep.subr.mxu0 0.0
    %799 = vmatpush1.msra.mxu0 %v768
    %800 = vmatprep.subr.mxu0 0.0
    %801 = vmatpush1.msra.mxu0 %v758
    %802 = vmatprep.subr.mxu0 0.0
    %803 = vmatpush2.msra.mxu0 0.0
    %804 = vmatprep.subr.mxu0 0.0
    %805 = vmatpush2.msra.mxu0 0.0
    %806 = vmatprep.subr.mxu0 0.0
    %807 = vmatpush2.msra.mxu0 0.0
    %808 = vmatprep.subr.mxu0 0.0
    %809 = vmatpush2.msra.mxu0 0.0
    %810 = vmatprep.subr.mxu0 0.0
    %811 = vmatpush2.msra.mxu0 0.0
    %812 = vmatprep.subr.mxu0 0.0
    %813 = vmatpush2.msra.mxu0 0.0
    %814 = vmatprep.subr.mxu0 0.0
    %815 = vmatpush2.msra.mxu0 0.0
    %816 = vmatprep.subr.mxu0 0.0
    %817 = vmatpush2.msra.mxu0 0.0
    %818 = vmatprep.subr.mxu0 0.0
    %819 = vmatpush2.msra.mxu0 0.0
    %820 = vmatprep.subr.mxu0 0.0
    %821 = vmatpush2.msra.mxu0 0.0
    %822 = vmatprep.subr.mxu0 0.0
    %823 = vmatpush2.msra.mxu0 0.0
    %824 = vmatprep.subr.mxu0 0.0
    %825 = vmatpush2.msra.mxu0 0.0
    %826 = vmatprep.subr.mxu0 0.0
    %827 = vmatpush2.msra.mxu0 0.0
    %828 = vmatprep.subr.mxu0 0.0
    %829 = vmatpush2.msra.mxu0 0.0
    %830 = vmatprep.subr.mxu0 0.0
    %831 = vmatpush2.msra.mxu0 0.0
    %832 = vmatprep.subr.mxu0 0.0
    %833 = vmatpush2.msra.mxu0 0.0
    %834 = vmatprep.mubr.f32.mxu0 0.0
    %835 = vmatmul.mubr.f32.gmra.mxu0 %v763
    %v836 = vpop.f32.mrf.mxu0
    %v837 = vadd.f32 0.0, %v836
    %v838 = vpop.f32.mrf.mxu0
    %839 = vmatprep.mubr.f32.mxu0 0.0
    %840 = vmatmul.mubr.f32.gmra.mxu0 %v766
    %v841 = vpop.f32.mrf.mxu0
    %v842 = vadd.f32 0.0, %v841
    %v843 = vpop.f32.mrf.mxu0
    %844 = vdwg.mxu0
    %845 = vrot.lane.b32.xlu0 %v232, 104
    %v846 = vpop.permute.xlu0 %845
    %847 = vrot.lane.b32.xlu0 %v237, 104
    %v848 = vpop.permute.xlu0 %847
    %849 = vrot.lane.b32.xlu0 %v232, 72
    %v850 = vpop.permute.xlu0 %849
    %851 = vrot.lane.b32.xlu0 %v237, 72
    %v852 = vpop.permute.xlu0 %851
    %v853 = vsel %vm246, %v846, 0
    %v855 = vsel %vm246, %v848, 0
    %v857 = vsel %vm246, %v850, 0
    %v859 = vsel %vm246, %v852, 0
    %861 = vmatprep.subr.mxu0 0.0
    %862 = vmatpush1.xpose.msra.mxu0 0.0
    %863 = vmatprep.subr.mxu0 0.0
    %864 = vmatpush1.xpose.msra.mxu0 0.0
    %865 = vmatprep.subr.mxu0 0.0
    %866 = vmatpush1.xpose.msra.mxu0 0.0
    %867 = vmatprep.subr.mxu0 0.0
    %868 = vmatpush1.xpose.msra.mxu0 0.0
    %869 = vmatprep.subr.mxu0 0.0
    %870 = vmatpush1.xpose.msra.mxu0 0.0
    %871 = vmatprep.subr.mxu0 0.0
    %872 = vmatpush1.xpose.msra.mxu0 0.0
    %873 = vmatprep.subr.mxu0 0.0
    %874 = vmatpush1.xpose.msra.mxu0 0.0
    %875 = vmatprep.subr.mxu0 0.0
    %876 = vmatpush1.xpose.msra.mxu0 0.0
    %877 = vmatprep.subr.mxu0 0.0
    %878 = vmatpush1.xpose.msra.mxu0 0.0
    %879 = vmatprep.subr.mxu0 0.0
    %880 = vmatpush1.xpose.msra.mxu0 0.0
    %881 = vmatprep.subr.mxu0 0.0
    %882 = vmatpush1.xpose.msra.mxu0 0.0
    %883 = vmatprep.subr.mxu0 0.0
    %884 = vmatpush1.xpose.msra.mxu0 0.0
    %885 = vmatprep.subr.mxu0 0.0
    %886 = vmatpush1.xpose.msra.mxu0 0.0
    %887 = vmatprep.subr.mxu0 0.0
    %888 = vmatpush1.xpose.msra.mxu0 0.0
    %889 = vmatprep.subr.mxu0 0.0
    %890 = vmatpush1.xpose.msra.mxu0 %v859
    %891 = vmatprep.subr.mxu0 0.0
    %892 = vmatpush1.xpose.msra.mxu0 %v857
    %893 = vmatprep.subr.mxu0 0.0
    %894 = vmatpush2.xpose.msra.mxu0 0.0
    %895 = vmatprep.subr.mxu0 0.0
    %896 = vmatpush2.xpose.msra.mxu0 0.0
    %897 = vmatprep.subr.mxu0 0.0
    %898 = vmatpush2.xpose.msra.mxu0 0.0
    %899 = vmatprep.subr.mxu0 0.0
    %900 = vmatpush2.xpose.msra.mxu0 0.0
    %901 = vmatprep.subr.mxu0 0.0
    %902 = vmatpush2.xpose.msra.mxu0 0.0
    %903 = vmatprep.subr.mxu0 0.0
    %904 = vmatpush2.xpose.msra.mxu0 0.0
    %905 = vmatprep.subr.mxu0 0.0
    %906 = vmatpush2.xpose.msra.mxu0 0.0
    %907 = vmatprep.subr.mxu0 0.0
    %908 = vmatpush2.xpose.msra.mxu0 0.0
    %909 = vmatprep.subr.mxu0 0.0
    %910 = vmatpush2.xpose.msra.mxu0 0.0
    %911 = vmatprep.subr.mxu0 0.0
    %912 = vmatpush2.xpose.msra.mxu0 0.0
    %913 = vmatprep.subr.mxu0 0.0
    %914 = vmatpush2.xpose.msra.mxu0 0.0
    %915 = vmatprep.subr.mxu0 0.0
    %916 = vmatpush2.xpose.msra.mxu0 0.0
    %917 = vmatprep.subr.mxu0 0.0
    %918 = vmatpush2.xpose.msra.mxu0 0.0
    %919 = vmatprep.subr.mxu0 0.0
    %920 = vmatpush2.xpose.msra.mxu0 0.0
    %921 = vmatprep.subr.mxu0 0.0
    %922 = vmatpush2.xpose.msra.mxu0 0.0
    %923 = vmatprep.subr.mxu0 0.0
    %924 = vmatpush2.xpose.msra.mxu0 0.0
    %925 = vmatprep.mubr.f32.mxu0 0.0
    %926 = vmatmul.mubr.f32.gmra.mxu0 %v853
    %v927 = vpop.f32.mrf.mxu0
    %v928 = vadd.f32 %v145, %v927
    %v929 = vpop.f32.mrf.mxu0
    %930 = vmatprep.mubr.f32.mxu0 0.0
    %931 = vmatmul.mubr.f32.gmra.mxu0 %v855
    %v932 = vpop.f32.mrf.mxu0
    %v933 = vadd.f32 %v146, %v932
    %v934 = vpop.f32.mrf.mxu0
    %935 = vdwg.mxu0
    %v936 = vsel %vm330, %v928, -inf
    %937 = vmax.xlane.f32.xlu0 %v936
    %v938 = vpop.xlane.xlu0 %937
    %v939 = vsel %vm334, %v933, -inf
    %940 = vmax.xlane.f32.xlu0 %v939
    %v941 = vpop.xlane.xlu0 %940
    %v942 = vsub.f32 %v928, %v938
    %v943 = vsub.f32 %v933, %v941
    %v944 = vmul.f32 %v942, 1.442695
    %v945 = vpow.pop %v944
    %v946 = vmul.f32 %v943, 1.442695
    %v947 = vpow.pop %v946
    %v948 = vsel %vm330, %v945, 0.0
    %949 = vadd.xlane.f32.xlu0 %v948
    %v950 = vpop.xlane.xlu0 %949
    %v951 = vsel %vm334, %v947, 0.0
    %952 = vadd.xlane.f32.xlu0 %v951
    %v953 = vpop.xlane.xlu0 %952
    %v954 = vrcp.pop %v950
    %v955 = vrcp.pop %v953
    %v956 = vmul.f32 %v945, %v954
    %v957 = vmul.f32 %v947, %v955
    %958 = vrot.lane.b32.xlu0 %v232, 40
    %v959 = vpop.permute.xlu0 %958
    %960 = vrot.lane.b32.xlu0 %v237, 40
    %v961 = vpop.permute.xlu0 %960
    %v964 = vsel %vm330, %v956, 0
    %v967 = vsel %vm330, %v957, 0
    %v969 = vsel %vm365, %v961, 0
    %971 = vmatprep.subr.mxu0 0.0
    %972 = vmatpush1.msra.mxu0 0.0
    %973 = vmatprep.subr.mxu0 0.0
    %974 = vmatpush1.msra.mxu0 0.0
    %975 = vmatprep.subr.mxu0 0.0
    %976 = vmatpush1.msra.mxu0 0.0
    %977 = vmatprep.subr.mxu0 0.0
    %978 = vmatpush1.msra.mxu0 0.0
    %979 = vmatprep.subr.mxu0 0.0
    %980 = vmatpush1.msra.mxu0 0.0
    %981 = vmatprep.subr.mxu0 0.0
    %982 = vmatpush1.msra.mxu0 0.0
    %983 = vmatprep.subr.mxu0 0.0
    %984 = vmatpush1.msra.mxu0 0.0
    %985 = vmatprep.subr.mxu0 0.0
    %986 = vmatpush1.msra.mxu0 0.0
    %987 = vmatprep.subr.mxu0 0.0
    %988 = vmatpush1.msra.mxu0 0.0
    %989 = vmatprep.subr.mxu0 0.0
    %990 = vmatpush1.msra.mxu0 0.0
    %991 = vmatprep.subr.mxu0 0.0
    %992 = vmatpush1.msra.mxu0 0.0
    %993 = vmatprep.subr.mxu0 0.0
    %994 = vmatpush1.msra.mxu0 0.0
    %995 = vmatprep.subr.mxu0 0.0
    %996 = vmatpush1.msra.mxu0 0.0
    %997 = vmatprep.subr.mxu0 0.0
    %998 = vmatpush1.msra.mxu0 0.0
    %999 = vmatprep.subr.mxu0 0.0
    %1000 = vmatpush1.msra.mxu0 %v969
    %1001 = vmatprep.subr.mxu0 0.0
    %1002 = vmatpush1.msra.mxu0 %v959
    %1003 = vmatprep.subr.mxu0 0.0
    %1004 = vmatpush2.msra.mxu0 0.0
    %1005 = vmatprep.subr.mxu0 0.0
    %1006 = vmatpush2.msra.mxu0 0.0
    %1007 = vmatprep.subr.mxu0 0.0
    %1008 = vmatpush2.msra.mxu0 0.0
    %1009 = vmatprep.subr.mxu0 0.0
    %1010 = vmatpush2.msra.mxu0 0.0
    %1011 = vmatprep.subr.mxu0 0.0
    %1012 = vmatpush2.msra.mxu0 0.0
    %1013 = vmatprep.subr.mxu0 0.0
    %1014 = vmatpush2.msra.mxu0 0.0
    %1015 = vmatprep.subr.mxu0 0.0
    %1016 = vmatpush2.msra.mxu0 0.0
    %1017 = vmatprep.subr.mxu0 0.0
    %1018 = vmatpush2.msra.mxu0 0.0
    %1019 = vmatprep.subr.mxu0 0.0
    %1020 = vmatpush2.msra.mxu0 0.0
    %1021 = vmatprep.subr.mxu0 0.0
    %1022 = vmatpush2.msra.mxu0 0.0
    %1023 = vmatprep.subr.mxu0 0.0
    %1024 = vmatpush2.msra.mxu0 0.0
    %1025 = vmatprep.subr.mxu0 0.0
    %1026 = vmatpush2.msra.mxu0 0.0
    %1027 = vmatprep.subr.mxu0 0.0
    %1028 = vmatpush2.msra.mxu0 0.0
    %1029 = vmatprep.subr.mxu0 0.0
    %1030 = vmatpush2.msra.mxu0 0.0
    %1031 = vmatprep.subr.mxu0 0.0
    %1032 = vmatpush2.msra.mxu0 0.0
    %1033 = vmatprep.subr.mxu0 0.0
    %1034 = vmatpush2.msra.mxu0 0.0
    %1035 = vmatprep.mubr.f32.mxu0 0.0
    %1036 = vmatmul.mubr.f32.gmra.mxu0 %v964
    %v1037 = vpop.f32.mrf.mxu0
    %v1038 = vadd.f32 0.0, %v1037
    %v1039 = vpop.f32.mrf.mxu0
    %1040 = vmatprep.mubr.f32.mxu0 0.0
    %1041 = vmatmul.mubr.f32.gmra.mxu0 %v967
    %v1042 = vpop.f32.mrf.mxu0
    %v1043 = vadd.f32 0.0, %v1042
    %v1044 = vpop.f32.mrf.mxu0
    %1045 = vdwg.mxu0
    %1048 = vrot.lane.b32.xlu0 %v636, 8
    %v1049 = vpop.permute.xlu0 %1048
    %1050 = vrot.lane.b32.xlu0 %v641, 8
    %v1051 = vpop.permute.xlu0 %1050
    %1056 = vrot.lane.b32.xlu0 %v837, 16
    %v1057 = vpop.permute.xlu0 %1056
    %1058 = vrot.lane.b32.xlu0 %v842, 16
    %v1059 = vpop.permute.xlu0 %1058
    %1064 = vrot.lane.b32.xlu0 %v1038, 24
    %v1065 = vpop.permute.xlu0 %1064
    %1066 = vrot.lane.b32.xlu0 %v1043, 24
    %v1067 = vpop.permute.xlu0 %1066
    %v1070 = vsel %vm246, %v435, %v1049
    %v1071 = vsel %vm246, %v440, %v1051
    %vm1072 = vcmask 130048
    %v1073 = vsel %vm1072, %v1070, %v1057
    %v1074 = vsel %vm1072, %v1071, %v1059
    %vm1075 = vcmask 195584
    %v1076 = vsel %vm1075, %v1073, %v1065
    %v1077 = vsel %vm1075, %v1074, %v1067
    %v1078 = vld [vmem:[%s5] sm:$0xff]
    %v1079 = vld [vmem:[%s5 + $0x8] sm:$0xff]
    %v1080 = vld [vmem:[%s5 + $0x10] sm:$0xff]
    %v1081 = vld [vmem:[%s5 + $0x18] sm:$0xff]
    %v1082 = vld [vmem:[%s6 + $0x1] sm:$0x1]
    %v1083 = vlaneseq
    %v1084 = vshrl.u32 %v1083, 7
    %v1085 = vsub.s32 0, %v1084
    %v1086 = vrot.slane %v1082, %v1085
    %v1088 = vsel %vm158, %v1076, 0
    %v1091 = vsel %vm158, %v1077, 0
    %1093 = vmatprep.subr.mxu0 0.0
    %1094 = vmatpush1.msra.mxu0 0.0
    %1095 = vmatprep.subr.mxu0 0.0
    %1096 = vmatpush1.msra.mxu0 0.0
    %1097 = vmatprep.subr.mxu0 0.0
    %1098 = vmatpush1.msra.mxu0 0.0
    %1099 = vmatprep.subr.mxu0 0.0
    %1100 = vmatpush1.msra.mxu0 0.0
    %1101 = vmatprep.subr.mxu0 0.0
    %1102 = vmatpush1.msra.mxu0 0.0
    %1103 = vmatprep.subr.mxu0 0.0
    %1104 = vmatpush1.msra.mxu0 0.0
    %1105 = vmatprep.subr.mxu0 0.0
    %1106 = vmatpush1.msra.mxu0 0.0
    %1107 = vmatprep.subr.mxu0 0.0
    %1108 = vmatpush1.msra.mxu0 0.0
    %1109 = vmatprep.subr.mxu0 0.0
    %1110 = vmatpush1.msra.mxu0 0.0
    %1111 = vmatprep.subr.mxu0 0.0
    %1112 = vmatpush1.msra.mxu0 0.0
    %1113 = vmatprep.subr.mxu0 0.0
    %1114 = vmatpush1.msra.mxu0 0.0
    %1115 = vmatprep.subr.mxu0 0.0
    %1116 = vmatpush1.msra.mxu0 0.0
    %1117 = vmatprep.subr.mxu0 0.0
    %1118 = vmatpush1.msra.mxu0 %v1081
    %1119 = vmatprep.subr.mxu0 0.0
    %1120 = vmatpush1.msra.mxu0 %v1080
    %1121 = vmatprep.subr.mxu0 0.0
    %1122 = vmatpush1.msra.mxu0 %v1079
    %1123 = vmatprep.subr.mxu0 0.0
    %1124 = vmatpush1.msra.mxu0 %v1078
    %1125 = vmatprep.subr.mxu0 0.0
    %1126 = vmatpush2.msra.mxu0 0.0
    %1127 = vmatprep.subr.mxu0 0.0
    %1128 = vmatpush2.msra.mxu0 0.0
    %1129 = vmatprep.subr.mxu0 0.0
    %1130 = vmatpush2.msra.mxu0 0.0
    %1131 = vmatprep.subr.mxu0 0.0
    %1132 = vmatpush2.msra.mxu0 0.0
    %1133 = vmatprep.subr.mxu0 0.0
    %1134 = vmatpush2.msra.mxu0 0.0
    %1135 = vmatprep.subr.mxu0 0.0
    %1136 = vmatpush2.msra.mxu0 0.0
    %1137 = vmatprep.subr.mxu0 0.0
    %1138 = vmatpush2.msra.mxu0 0.0
    %1139 = vmatprep.subr.mxu0 0.0
    %1140 = vmatpush2.msra.mxu0 0.0
    %1141 = vmatprep.subr.mxu0 0.0
    %1142 = vmatpush2.msra.mxu0 0.0
    %1143 = vmatprep.subr.mxu0 0.0
    %1144 = vmatpush2.msra.mxu0 0.0
    %1145 = vmatprep.subr.mxu0 0.0
    %1146 = vmatpush2.msra.mxu0 0.0
    %1147 = vmatprep.subr.mxu0 0.0
    %1148 = vmatpush2.msra.mxu0 0.0
    %1149 = vmatprep.subr.mxu0 0.0
    %1150 = vmatpush2.msra.mxu0 0.0
    %1151 = vmatprep.subr.mxu0 0.0
    %1152 = vmatpush2.msra.mxu0 0.0
    %1153 = vmatprep.subr.mxu0 0.0
    %1154 = vmatpush2.msra.mxu0 0.0
    %1155 = vmatprep.subr.mxu0 0.0
    %1156 = vmatpush2.msra.mxu0 0.0
    %1157 = vmatprep.mubr.f32.mxu0 0.0
    %1158 = vmatmul.mubr.f32.gmra.mxu0 %v1088
    %v1159 = vpop.f32.mrf.mxu0
    %v1160 = vadd.f32 %v1086, %v1159
    %v1161 = vpop.f32.mrf.mxu0
    %1162 = vmatprep.mubr.f32.mxu0 0.0
    %1163 = vmatmul.mubr.f32.gmra.mxu0 %v1091
    %v1164 = vpop.f32.mrf.mxu0
    %v1165 = vadd.f32 %v1086, %v1164
    %v1166 = vpop.f32.mrf.mxu0
    %1167 = vdwg.mxu0
    %v1168 = vadd.f32 %v147, %v1160
    %v1169 = vadd.f32 %v148, %v1165
    %v1170 = vld [vmem:[%s6 + $0x2] sm:$0x1]
    %v1171 = vld [vmem:[%s6 + $0x3] sm:$0x1]
    %v1172 = vsel %vm158, %v1168, 0.0
    %1173 = vadd.xlane.f32.xlu0 %v1172
    %v1174 = vpop.xlane.xlu0 %1173
    %vm1175 = vcmask 254976
    %v1176 = vsel %vm1175, %v1169, 0.0
    %1177 = vadd.xlane.f32.xlu0 %v1176
    %v1178 = vpop.xlane.xlu0 %1177
    %v1179 = vrcp.pop 32.0
    %v1180 = vmul.f32 %v1174, %v1179
    %v1181 = vmul.f32 %v1178, %v1179
    %v1182 = vsub.f32 %v1168, %v1180
    %v1183 = vsub.f32 %v1169, %v1181
    %v1184 = vmul.f32 %v1182, %v1182
    %v1185 = vmul.f32 %v1183, %v1183
    %v1186 = vsel %vm158, %v1184, 0.0
    %1187 = vadd.xlane.f32.xlu0 %v1186
    %v1188 = vpop.xlane.xlu0 %1187
    %v1189 = vsel %vm1175, %v1185, 0.0
    %1190 = vadd.xlane.f32.xlu0 %v1189
    %v1191 = vpop.xlane.xlu0 %1190
    %v1192 = vmul.f32 %v1188, %v1179
    %v1193 = vmul.f32 %v1191, %v1179
    %v1194 = vadd.f32 %v1192, 1e-05
    %v1195 = vadd.f32 %v1193, 1e-05
    %v1196 = vrsqrt.pop %v1194
    %v1197 = vrsqrt.pop %v1195
    %v1198 = vmul.f32 %v1182, %v1196
    %v1199 = vmul.f32 %v1183, %v1197
    %v1200 = vlaneseq
    %v1201 = vshrl.u32 %v1200, 7
    %v1202 = vsub.s32 0, %v1201
    %v1203 = vrot.slane %v1170, %v1202
    %v1204 = vmul.f32 %v1198, %v1203
    %v1205 = vmul.f32 %v1199, %v1203
    %v1206 = vlaneseq
    %v1207 = vshrl.u32 %v1206, 7
    %v1208 = vsub.s32 0, %v1207
    %v1209 = vrot.slane %v1171, %v1208
    %v1210 = vadd.f32 %v1204, %v1209
    %v1211 = vadd.f32 %v1205, %v1209
    %s1212 = scalar_lea.vmem %s5, 32
    %v1213 = vld [vmem:[%s1212] sm:$0xff]
    %v1214 = vld [vmem:[%s1212 + $0x8] sm:$0xff]
    %v1215 = vld [vmem:[%s1212 + $0x10] sm:$0xff]
    %v1216 = vld [vmem:[%s1212 + $0x18] sm:$0xff]
    %v1217 = vld [vmem:[%s6 + $0x4] sm:$0x1]
    %v1218 = vlaneseq
    %v1219 = vshrl.u32 %v1218, 7
    %v1220 = vsub.s32 0, %v1219
    %v1221 = vrot.slane %v1217, %v1220
    %v1223 = vsel %vm158, %v1210, 0
    %v1226 = vsel %vm158, %v1211, 0
    %1228 = vmatprep.subr.mxu0 0.0
    %1229 = vmatpush1.msra.mxu0 0.0
    %1230 = vmatprep.subr.mxu0 0.0
    %1231 = vmatpush1.msra.mxu0 0.0
    %1232 = vmatprep.subr.mxu0 0.0
    %1233 = vmatpush1.msra.mxu0 0.0
    %1234 = vmatprep.subr.mxu0 0.0
    %1235 = vmatpush1.msra.mxu0 0.0
    %1236 = vmatprep.subr.mxu0 0.0
    %1237 = vmatpush1.msra.mxu0 0.0
    %1238 = vmatprep.subr.mxu0 0.0
    %1239 = vmatpush1.msra.mxu0 0.0
    %1240 = vmatprep.subr.mxu0 0.0
    %1241 = vmatpush1.msra.mxu0 0.0
    %1242 = vmatprep.subr.mxu0 0.0
    %1243 = vmatpush1.msra.mxu0 0.0
    %1244 = vmatprep.subr.mxu0 0.0
    %1245 = vmatpush1.msra.mxu0 0.0
    %1246 = vmatprep.subr.mxu0 0.0
    %1247 = vmatpush1.msra.mxu0 0.0
    %1248 = vmatprep.subr.mxu0 0.0
    %1249 = vmatpush1.msra.mxu0 0.0
    %1250 = vmatprep.subr.mxu0 0.0
    %1251 = vmatpush1.msra.mxu0 0.0
    %1252 = vmatprep.subr.mxu0 0.0
    %1253 = vmatpush1.msra.mxu0 %v1216
    %1254 = vmatprep.subr.mxu0 0.0
    %1255 = vmatpush1.msra.mxu0 %v1215
    %1256 = vmatprep.subr.mxu0 0.0
    %1257 = vmatpush1.msra.mxu0 %v1214
    %1258 = vmatprep.subr.mxu0 0.0
    %1259 = vmatpush1.msra.mxu0 %v1213
    %1260 = vmatprep.subr.mxu0 0.0
    %1261 = vmatpush2.msra.mxu0 0.0
    %1262 = vmatprep.subr.mxu0 0.0
    %1263 = vmatpush2.msra.mxu0 0.0
    %1264 = vmatprep.subr.mxu0 0.0
    %1265 = vmatpush2.msra.mxu0 0.0
    %1266 = vmatprep.subr.mxu0 0.0
    %1267 = vmatpush2.msra.mxu0 0.0
    %1268 = vmatprep.subr.mxu0 0.0
    %1269 = vmatpush2.msra.mxu0 0.0
    %1270 = vmatprep.subr.mxu0 0.0
    %1271 = vmatpush2.msra.mxu0 0.0
    %1272 = vmatprep.subr.mxu0 0.0
    %1273 = vmatpush2.msra.mxu0 0.0
    %1274 = vmatprep.subr.mxu0 0.0
    %1275 = vmatpush2.msra.mxu0 0.0
    %1276 = vmatprep.subr.mxu0 0.0
    %1277 = vmatpush2.msra.mxu0 0.0
    %1278 = vmatprep.subr.mxu0 0.0
    %1279 = vmatpush2.msra.mxu0 0.0
    %1280 = vmatprep.subr.mxu0 0.0
    %1281 = vmatpush2.msra.mxu0 0.0
    %1282 = vmatprep.subr.mxu0 0.0
    %1283 = vmatpush2.msra.mxu0 0.0
    %1284 = vmatprep.subr.mxu0 0.0
    %1285 = vmatpush2.msra.mxu0 0.0
    %1286 = vmatprep.subr.mxu0 0.0
    %1287 = vmatpush2.msra.mxu0 0.0
    %1288 = vmatprep.subr.mxu0 0.0
    %1289 = vmatpush2.msra.mxu0 0.0
    %1290 = vmatprep.subr.mxu0 0.0
    %1291 = vmatpush2.msra.mxu0 0.0
    %1292 = vmatprep.mubr.f32.mxu0 0.0
    %1293 = vmatmul.mubr.f32.gmra.mxu0 %v1223
    %v1294 = vpop.f32.mrf.mxu0
    %v1295 = vadd.f32 %v1221, %v1294
    %v1296 = vpop.f32.mrf.mxu0
    %1297 = vmatprep.mubr.f32.mxu0 0.0
    %1298 = vmatmul.mubr.f32.gmra.mxu0 %v1226
    %v1299 = vpop.f32.mrf.mxu0
    %v1300 = vadd.f32 %v1221, %v1299
    %v1301 = vpop.f32.mrf.mxu0
    %1302 = vdwg.mxu0
    %v1303 = vmul.f32 %v1295, 0.5
    %v1304 = vmul.f32 %v1300, 0.5
    %v1305 = vmul.f32 %v1295, 0.044715
    %v1306 = vmul.f32 %v1300, 0.044715
    %v1307 = vmul.f32 %v1305, %v1295
    %v1308 = vmul.f32 %v1306, %v1300
    %v1309 = vmul.f32 %v1307, %v1295
    %v1310 = vmul.f32 %v1308, %v1300
    %v1311 = vadd.f32 %v1295, %v1309
    %v1312 = vadd.f32 %v1300, %v1310
    %v1313 = vmul.f32 %v1311, 0.7978846
    %v1314 = vmul.f32 %v1312, 0.7978846
    %v1315 = vtanh.pop %v1313
    %v1316 = vtanh.pop %v1314
    %v1317 = vadd.f32 %v1315, 1.0
    %v1318 = vadd.f32 %v1316, 1.0
    %v1319 = vmul.f32 %v1303, %v1317
    %v1320 = vmul.f32 %v1304, %v1318
    %s1321 = scalar_lea.vmem %s5, 64
    %v1322 = vld [vmem:[%s1321] sm:$0xff]
    %v1323 = vld [vmem:[%s1321 + $0x8] sm:$0xff]
    %v1324 = vld [vmem:[%s1321 + $0x10] sm:$0xff]
    %v1325 = vld [vmem:[%s1321 + $0x18] sm:$0xff]
    %v1326 = vld [vmem:[%s6 + $0x5] sm:$0x1]
    %v1327 = vlaneseq
    %v1328 = vshrl.u32 %v1327, 7
    %v1329 = vsub.s32 0, %v1328
    %v1330 = vrot.slane %v1326, %v1329
    %v1332 = vsel %vm158, %v1319, 0
    %v1335 = vsel %vm158, %v1320, 0
    %1337 = vmatprep.subr.mxu0 0.0
    %1338 = vmatpush1.msra.mxu0 0.0
    %1339 = vmatprep.subr.mxu0 0.0
    %1340 = vmatpush1.msra.mxu0 0.0
    %1341 = vmatprep.subr.mxu0 0.0
    %1342 = vmatpush1.msra.mxu0 0.0
    %1343 = vmatprep.subr.mxu0 0.0
    %1344 = vmatpush1.msra.mxu0 0.0
    %1345 = vmatprep.subr.mxu0 0.0
    %1346 = vmatpush1.msra.mxu0 0.0
    %1347 = vmatprep.subr.mxu0 0.0
    %1348 = vmatpush1.msra.mxu0 0.0
    %1349 = vmatprep.subr.mxu0 0.0
    %1350 = vmatpush1.msra.mxu0 0.0
    %1351 = vmatprep.subr.mxu0 0.0
    %1352 = vmatpush1.msra.mxu0 0.0
    %1353 = vmatprep.subr.mxu0 0.0
    %1354 = vmatpush1.msra.mxu0 0.0
    %1355 = vmatprep.subr.mxu0 0.0
    %1356 = vmatpush1.msra.mxu0 0.0
    %1357 = vmatprep.subr.mxu0 0.0
    %1358 = vmatpush1.msra.mxu0 0.0
    %1359 = vmatprep.subr.mxu0 0.0
    %1360 = vmatpush1.msra.mxu0 0.0
    %1361 = vmatprep.subr.mxu0 0.0
    %1362 = vmatpush1.msra.mxu0 %v1325
    %1363 = vmatprep.subr.mxu0 0.0
    %1364 = vmatpush1.msra.mxu0 %v1324
    %1365 = vmatprep.subr.mxu0 0.0
    %1366 = vmatpush1.msra.mxu0 %v1323
    %1367 = vmatprep.subr.mxu0 0.0
    %1368 = vmatpush1.msra.mxu0 %v1322
    %1369 = vmatprep.subr.mxu0 0.0
    %1370 = vmatpush2.msra.mxu0 0.0
    %1371 = vmatprep.subr.mxu0 0.0
    %1372 = vmatpush2.msra.mxu0 0.0
    %1373 = vmatprep.subr.mxu0 0.0
    %1374 = vmatpush2.msra.mxu0 0.0
    %1375 = vmatprep.subr.mxu0 0.0
    %1376 = vmatpush2.msra.mxu0 0.0
    %1377 = vmatprep.subr.mxu0 0.0
    %1378 = vmatpush2.msra.mxu0 0.0
    %1379 = vmatprep.subr.mxu0 0.0
    %1380 = vmatpush2.msra.mxu0 0.0
    %1381 = vmatprep.subr.mxu0 0.0
    %1382 = vmatpush2.msra.mxu0 0.0
    %1383 = vmatprep.subr.mxu0 0.0
    %1384 = vmatpush2.msra.mxu0 0.0
    %1385 = vmatprep.subr.mxu0 0.0
    %1386 = vmatpush2.msra.mxu0 0.0
    %1387 = vmatprep.subr.mxu0 0.0
    %1388 = vmatpush2.msra.mxu0 0.0
    %1389 = vmatprep.subr.mxu0 0.0
    %1390 = vmatpush2.msra.mxu0 0.0
    %1391 = vmatprep.subr.mxu0 0.0
    %1392 = vmatpush2.msra.mxu0 0.0
    %1393 = vmatprep.subr.mxu0 0.0
    %1394 = vmatpush2.msra.mxu0 0.0
    %1395 = vmatprep.subr.mxu0 0.0
    %1396 = vmatpush2.msra.mxu0 0.0
    %1397 = vmatprep.subr.mxu0 0.0
    %1398 = vmatpush2.msra.mxu0 0.0
    %1399 = vmatprep.subr.mxu0 0.0
    %1400 = vmatpush2.msra.mxu0 0.0
    %1401 = vmatprep.mubr.f32.mxu0 0.0
    %1402 = vmatmul.mubr.f32.gmra.mxu0 %v1332
    %v1403 = vpop.f32.mrf.mxu0
    %v1404 = vadd.f32 %v1330, %v1403
    %v1405 = vpop.f32.mrf.mxu0
    %1406 = vmatprep.mubr.f32.mxu0 0.0
    %1407 = vmatmul.mubr.f32.gmra.mxu0 %v1335
    %v1408 = vpop.f32.mrf.mxu0
    %v1409 = vadd.f32 %v1330, %v1408
    %v1410 = vpop.f32.mrf.mxu0
    %1411 = vdwg.mxu0
    %v1412 = vadd.f32 %v1210, %v1404
    %v1413 = vadd.f32 %v1211, %v1409
    %v1414 = vld [vmem:[%s6 + $0x6] sm:$0x1]
    %v1415 = vld [vmem:[%s6 + $0x7] sm:$0x1]
    %v1416 = vsel %vm158, %v1412, 0.0
    %1417 = vadd.xlane.f32.xlu0 %v1416
    %v1418 = vpop.xlane.xlu0 %1417
    %v1419 = vsel %vm1175, %v1413, 0.0
    %1420 = vadd.xlane.f32.xlu0 %v1419
    %v1421 = vpop.xlane.xlu0 %1420
    %v1422 = vmul.f32 %v1418, %v1179
    %v1423 = vmul.f32 %v1421, %v1179
    %v1424 = vsub.f32 %v1412, %v1422
    %v1425 = vsub.f32 %v1413, %v1423
    %v1426 = vmul.f32 %v1424, %v1424
    %v1427 = vmul.f32 %v1425, %v1425
    %v1428 = vsel %vm158, %v1426, 0.0
    %1429 = vadd.xlane.f32.xlu0 %v1428
    %v1430 = vpop.xlane.xlu0 %1429
    %v1431 = vsel %vm1175, %v1427, 0.0
    %1432 = vadd.xlane.f32.xlu0 %v1431
    %v1433 = vpop.xlane.xlu0 %1432
    %v1434 = vmul.f32 %v1430, %v1179
    %v1435 = vmul.f32 %v1433, %v1179
    %v1436 = vadd.f32 %v1434, 1e-05
    %v1437 = vadd.f32 %v1435, 1e-05
    %v1438 = vrsqrt.pop %v1436
    %v1439 = vrsqrt.pop %v1437
    %v1440 = vmul.f32 %v1424, %v1438
    %v1441 = vmul.f32 %v1425, %v1439
    %v1442 = vlaneseq
    %v1443 = vshrl.u32 %v1442, 7
    %v1444 = vsub.s32 0, %v1443
    %v1445 = vrot.slane %v1414, %v1444
    %v1446 = vmul.f32 %v1440, %v1445
    %v1447 = vmul.f32 %v1441, %v1445
    %v1448 = vlaneseq
    %v1449 = vshrl.u32 %v1448, 7
    %v1450 = vsub.s32 0, %v1449
    %v1451 = vrot.slane %v1415, %v1450
    %v1452 = vadd.f32 %v1446, %v1451
    %v1453 = vadd.f32 %v1447, %v1451
    %v1454 = vadd.f32 %v1452, %v143
    %v1455 = vadd.f32 %v1453, %v144
    %s1456 = scalar_lea.vmem %s4, 32
    %v1457 = vld [vmem:[%s1456] sm:$0xff]
    %v1458 = vld [vmem:[%s1456 + $0x8] sm:$0xff]
    %v1459 = vld [vmem:[%s1456 + $0x10] sm:$0xff]
    %v1460 = vld [vmem:[%s1456 + $0x18] sm:$0xff]
    %v1461 = vld [vmem:[%s6 + $0x8] sm:$0x1]
    %v1462 = vlaneseq
    %v1463 = vshrl.u32 %v1462, 7
    %v1464 = vsub.s32 0, %v1463
    %v1465 = vrot.slane %v1461, %v1464
    %v1467 = vsel %vm158, %v1454, 0
    %v1470 = vsel %vm158, %v1455, 0
    %1472 = vmatprep.subr.mxu0 0.0
    %1473 = vmatpush1.msra.mxu0 0.0
    %1474 = vmatprep.subr.mxu0 0.0
    %1475 = vmatpush1.msra.mxu0 0.0
    %1476 = vmatprep.subr.mxu0 0.0
    %1477 = vmatpush1.msra.mxu0 0.0
    %1478 = vmatprep.subr.mxu0 0.0
    %1479 = vmatpush1.msra.mxu0 0.0
    %1480 = vmatprep.subr.mxu0 0.0
    %1481 = vmatpush1.msra.mxu0 0.0
    %1482 = vmatprep.subr.mxu0 0.0
    %1483 = vmatpush1.msra.mxu0 0.0
    %1484 = vmatprep.subr.mxu0 0.0
    %1485 = vmatpush1.msra.mxu0 0.0
    %1486 = vmatprep.subr.mxu0 0.0
    %1487 = vmatpush1.msra.mxu0 0.0
    %1488 = vmatprep.subr.mxu0 0.0
    %1489 = vmatpush1.msra.mxu0 0.0
    %1490 = vmatprep.subr.mxu0 0.0
    %1491 = vmatpush1.msra.mxu0 0.0
    %1492 = vmatprep.subr.mxu0 0.0
    %1493 = vmatpush1.msra.mxu0 0.0
    %1494 = vmatprep.subr.mxu0 0.0
    %1495 = vmatpush1.msra.mxu0 0.0
    %1496 = vmatprep.subr.mxu0 0.0
    %1497 = vmatpush1.msra.mxu0 %v1460
    %1498 = vmatprep.subr.mxu0 0.0
    %1499 = vmatpush1.msra.mxu0 %v1459
    %1500 = vmatprep.subr.mxu0 0.0
    %1501 = vmatpush1.msra.mxu0 %v1458
    %1502 = vmatprep.subr.mxu0 0.0
    %1503 = vmatpush1.msra.mxu0 %v1457
    %1504 = vmatprep.subr.mxu0 0.0
    %1505 = vmatpush2.msra.mxu0 0.0
    %1506 = vmatprep.subr.mxu0 0.0
    %1507 = vmatpush2.msra.mxu0 0.0
    %1508 = vmatprep.subr.mxu0 0.0
    %1509 = vmatpush2.msra.mxu0 0.0
    %1510 = vmatprep.subr.mxu0 0.0
    %1511 = vmatpush2.msra.mxu0 0.0
    %1512 = vmatprep.subr.mxu0 0.0
    %1513 = vmatpush2.msra.mxu0 0.0
    %1514 = vmatprep.subr.mxu0 0.0
    %1515 = vmatpush2.msra.mxu0 0.0
    %1516 = vmatprep.subr.mxu0 0.0
    %1517 = vmatpush2.msra.mxu0 0.0
    %1518 = vmatprep.subr.mxu0 0.0
    %1519 = vmatpush2.msra.mxu0 0.0
    %1520 = vmatprep.subr.mxu0 0.0
    %1521 = vmatpush2.msra.mxu0 0.0
    %1522 = vmatprep.subr.mxu0 0.0
    %1523 = vmatpush2.msra.mxu0 0.0
    %1524 = vmatprep.subr.mxu0 0.0
    %1525 = vmatpush2.msra.mxu0 0.0
    %1526 = vmatprep.subr.mxu0 0.0
    %1527 = vmatpush2.msra.mxu0 0.0
    %1528 = vmatprep.subr.mxu0 0.0
    %1529 = vmatpush2.msra.mxu0 0.0
    %1530 = vmatprep.subr.mxu0 0.0
    %1531 = vmatpush2.msra.mxu0 0.0
    %1532 = vmatprep.subr.mxu0 0.0
    %1533 = vmatpush2.msra.mxu0 0.0
    %1534 = vmatprep.subr.mxu0 0.0
    %1535 = vmatpush2.msra.mxu0 0.0
    %1536 = vmatprep.mubr.f32.mxu0 0.0
    %1537 = vmatmul.mubr.f32.gmra.mxu0 %v1467
    %v1538 = vpop.f32.mrf.mxu0
    %v1539 = vadd.f32 %v1465, %v1538
    %v1540 = vpop.f32.mrf.mxu0
    %1541 = vmatprep.mubr.f32.mxu0 0.0
    %1542 = vmatmul.mubr.f32.gmra.mxu0 %v1470
    %v1543 = vpop.f32.mrf.mxu0
    %v1544 = vadd.f32 %v1465, %v1543
    %v1545 = vpop.f32.mrf.mxu0
    %1546 = vdwg.mxu0
    %1549 = vrot.lane.b32.xlu0 %v1539, 96
    %v1550 = vpop.permute.xlu0 %1549
    %1551 = vrot.lane.b32.xlu0 %v1544, 96
    %v1552 = vpop.permute.xlu0 %1551
    %v1553 = vsel %vm246, %v1539, 0
    %v1555 = vsel %vm246, %v1544, 0
    %v1557 = vsel %vm246, %v1550, 0
    %v1559 = vsel %vm246, %v1552, 0
    %1561 = vmatprep.subr.mxu0 0.0
    %1562 = vmatpush1.xpose.msra.mxu0 0.0
    %1563 = vmatprep.subr.mxu0 0.0
    %1564 = vmatpush1.xpose.msra.mxu0 0.0
    %1565 = vmatprep.subr.mxu0 0.0
    %1566 = vmatpush1.xpose.msra.mxu0 0.0
    %1567 = vmatprep.subr.mxu0 0.0
    %1568 = vmatpush1.xpose.msra.mxu0 0.0
    %1569 = vmatprep.subr.mxu0 0.0
    %1570 = vmatpush1.xpose.msra.mxu0 0.0
    %1571 = vmatprep.subr.mxu0 0.0
    %1572 = vmatpush1.xpose.msra.mxu0 0.0
    %1573 = vmatprep.subr.mxu0 0.0
    %1574 = vmatpush1.xpose.msra.mxu0 0.0
    %1575 = vmatprep.subr.mxu0 0.0
    %1576 = vmatpush1.xpose.msra.mxu0 0.0
    %1577 = vmatprep.subr.mxu0 0.0
    %1578 = vmatpush1.xpose.msra.mxu0 0.0
    %1579 = vmatprep.subr.mxu0 0.0
    %1580 = vmatpush1.xpose.msra.mxu0 0.0
    %1581 = vmatprep.subr.mxu0 0.0
    %1582 = vmatpush1.xpose.msra.mxu0 0.0
    %1583 = vmatprep.subr.mxu0 0.0
    %1584 = vmatpush1.xpose.msra.mxu0 0.0
    %1585 = vmatprep.subr.mxu0 0.0
    %1586 = vmatpush1.xpose.msra.mxu0 0.0
    %1587 = vmatprep.subr.mxu0 0.0
    %1588 = vmatpush1.xpose.msra.mxu0 0.0
    %1589 = vmatprep.subr.mxu0 0.0
    %1590 = vmatpush1.xpose.msra.mxu0 %v1559
    %1591 = vmatprep.subr.mxu0 0.0
    %1592 = vmatpush1.xpose.msra.mxu0 %v1557
    %1593 = vmatprep.subr.mxu0 0.0
    %1594 = vmatpush2.xpose.msra.mxu0 0.0
    %1595 = vmatprep.subr.mxu0 0.0
    %1596 = vmatpush2.xpose.msra.mxu0 0.0
    %1597 = vmatprep.subr.mxu0 0.0
    %1598 = vmatpush2.xpose.msra.mxu0 0.0
    %1599 = vmatprep.subr.mxu0 0.0
    %1600 = vmatpush2.xpose.msra.mxu0 0.0
    %1601 = vmatprep.subr.mxu0 0.0
    %1602 = vmatpush2.xpose.msra.mxu0 0.0
    %1603 = vmatprep.subr.mxu0 0.0
    %1604 = vmatpush2.xpose.msra.mxu0 0.0
    %1605 = vmatprep.subr.mxu0 0.0
    %1606 = vmatpush2.xpose.msra.mxu0 0.0
    %1607 = vmatprep.subr.mxu0 0.0
    %1608 = vmatpush2.xpose.msra.mxu0 0.0
    %1609 = vmatprep.subr.mxu0 0.0
    %1610 = vmatpush2.xpose.msra.mxu0 0.0
    %1611 = vmatprep.subr.mxu0 0.0
    %1612 = vmatpush2.xpose.msra.mxu0 0.0
    %1613 = vmatprep.subr.mxu0 0.0
    %1614 = vmatpush2.xpose.msra.mxu0 0.0
    %1615 = vmatprep.subr.mxu0 0.0
    %1616 = vmatpush2.xpose.msra.mxu0 0.0
    %1617 = vmatprep.subr.mxu0 0.0
    %1618 = vmatpush2.xpose.msra.mxu0 0.0
    %1619 = vmatprep.subr.mxu0 0.0
    %1620 = vmatpush2.xpose.msra.mxu0 0.0
    %1621 = vmatprep.subr.mxu0 0.0
    %1622 = vmatpush2.xpose.msra.mxu0 0.0
    %1623 = vmatprep.subr.mxu0 0.0
    %1624 = vmatpush2.xpose.msra.mxu0 0.0
    %1625 = vmatprep.mubr.f32.mxu0 0.0
    %1626 = vmatmul.mubr.f32.gmra.mxu0 %v1553
    %v1627 = vpop.f32.mrf.mxu0
    %v1628 = vadd.f32 %v145, %v1627
    %v1629 = vpop.f32.mrf.mxu0
    %1630 = vmatprep.mubr.f32.mxu0 0.0
    %1631 = vmatmul.mubr.f32.gmra.mxu0 %v1555
    %v1632 = vpop.f32.mrf.mxu0
    %v1633 = vadd.f32 %v146, %v1632
    %v1634 = vpop.f32.mrf.mxu0
    %1635 = vdwg.mxu0
    %v1636 = vsel %vm330, %v1628, -inf
    %1637 = vmax.xlane.f32.xlu0 %v1636
    %v1638 = vpop.xlane.xlu0 %1637
    %v1639 = vsel %vm334, %v1633, -inf
    %1640 = vmax.xlane.f32.xlu0 %v1639
    %v1641 = vpop.xlane.xlu0 %1640
    %v1642 = vsub.f32 %v1628, %v1638
    %v1643 = vsub.f32 %v1633, %v1641
    %v1644 = vmul.f32 %v1642, 1.442695
    %v1645 = vpow.pop %v1644
    %v1646 = vmul.f32 %v1643, 1.442695
    %v1647 = vpow.pop %v1646
    %v1648 = vsel %vm330, %v1645, 0.0
    %1649 = vadd.xlane.f32.xlu0 %v1648
    %v1650 = vpop.xlane.xlu0 %1649
    %v1651 = vsel %vm334, %v1647, 0.0
    %1652 = vadd.xlane.f32.xlu0 %v1651
    %v1653 = vpop.xlane.xlu0 %1652
    %v1654 = vrcp.pop %v1650
    %v1655 = vrcp.pop %v1653
    %v1656 = vmul.f32 %v1645, %v1654
    %v1657 = vmul.f32 %v1647, %v1655
    %1658 = vrot.lane.b32.xlu0 %v1539, 64
    %v1659 = vpop.permute.xlu0 %1658
    %1660 = vrot.lane.b32.xlu0 %v1544, 64
    %v1661 = vpop.permute.xlu0 %1660
    %v1664 = vsel %vm330, %v1656, 0
    %v1667 = vsel %vm330, %v1657, 0
    %v1669 = vsel %vm365, %v1661, 0
    %1671 = vmatprep.subr.mxu0 0.0
    %1672 = vmatpush1.msra.mxu0 0.0
    %1673 = vmatprep.subr.mxu0 0.0
    %1674 = vmatpush1.msra.mxu0 0.0
    %1675 = vmatprep.subr.mxu0 0.0
    %1676 = vmatpush1.msra.mxu0 0.0
    %1677 = vmatprep.subr.mxu0 0.0
    %1678 = vmatpush1.msra.mxu0 0.0
    %1679 = vmatprep.subr.mxu0 0.0
    %1680 = vmatpush1.msra.mxu0 0.0
    %1681 = vmatprep.subr.mxu0 0.0
    %1682 = vmatpush1.msra.mxu0 0.0
    %1683 = vmatprep.subr.mxu0 0.0
    %1684 = vmatpush1.msra.mxu0 0.0
    %1685 = vmatprep.subr.mxu0 0.0
    %1686 = vmatpush1.msra.mxu0 0.0
    %1687 = vmatprep.subr.mxu0 0.0
    %1688 = vmatpush1.msra.mxu0 0.0
    %1689 = vmatprep.subr.mxu0 0.0
    %1690 = vmatpush1.msra.mxu0 0.0
    %1691 = vmatprep.subr.mxu0 0.0
    %1692 = vmatpush1.msra.mxu0 0.0
    %1693 = vmatprep.subr.mxu0 0.0
    %1694 = vmatpush1.msra.mxu0 0.0
    %1695 = vmatprep.subr.mxu0 0.0
    %1696 = vmatpush1.msra.mxu0 0.0
    %1697 = vmatprep.subr.mxu0 0.0
    %1698 = vmatpush1.msra.mxu0 0.0
    %1699 = vmatprep.subr.mxu0 0.0
    %1700 = vmatpush1.msra.mxu0 %v1669
    %1701 = vmatprep.subr.mxu0 0.0
    %1702 = vmatpush1.msra.mxu0 %v1659
    %1703 = vmatprep.subr.mxu0 0.0
    %1704 = vmatpush2.msra.mxu0 0.0
    %1705 = vmatprep.subr.mxu0 0.0
    %1706 = vmatpush2.msra.mxu0 0.0
    %1707 = vmatprep.subr.mxu0 0.0
    %1708 = vmatpush2.msra.mxu0 0.0
    %1709 = vmatprep.subr.mxu0 0.0
    %1710 = vmatpush2.msra.mxu0 0.0
    %1711 = vmatprep.subr.mxu0 0.0
    %1712 = vmatpush2.msra.mxu0 0.0
    %1713 = vmatprep.subr.mxu0 0.0
    %1714 = vmatpush2.msra.mxu0 0.0
    %1715 = vmatprep.subr.mxu0 0.0
    %1716 = vmatpush2.msra.mxu0 0.0
    %1717 = vmatprep.subr.mxu0 0.0
    %1718 = vmatpush2.msra.mxu0 0.0
    %1719 = vmatprep.subr.mxu0 0.0
    %1720 = vmatpush2.msra.mxu0 0.0
    %1721 = vmatprep.subr.mxu0 0.0
    %1722 = vmatpush2.msra.mxu0 0.0
    %1723 = vmatprep.subr.mxu0 0.0
    %1724 = vmatpush2.msra.mxu0 0.0
    %1725 = vmatprep.subr.mxu0 0.0
    %1726 = vmatpush2.msra.mxu0 0.0
    %1727 = vmatprep.subr.mxu0 0.0
    %1728 = vmatpush2.msra.mxu0 0.0
    %1729 = vmatprep.subr.mxu0 0.0
    %1730 = vmatpush2.msra.mxu0 0.0
    %1731 = vmatprep.subr.mxu0 0.0
    %1732 = vmatpush2.msra.mxu0 0.0
    %1733 = vmatprep.subr.mxu0 0.0
    %1734 = vmatpush2.msra.mxu0 0.0
    %1735 = vmatprep.mubr.f32.mxu0 0.0
    %1736 = vmatmul.mubr.f32.gmra.mxu0 %v1664
    %v1737 = vpop.f32.mrf.mxu0
    %v1738 = vadd.f32 0.0, %v1737
    %v1739 = vpop.f32.mrf.mxu0
    %1740 = vmatprep.mubr.f32.mxu0 0.0
    %1741 = vmatmul.mubr.f32.gmra.mxu0 %v1667
    %v1742 = vpop.f32.mrf.mxu0
    %v1743 = vadd.f32 0.0, %v1742
    %v1744 = vpop.f32.mrf.mxu0
    %1745 = vdwg.mxu0
    %1746 = vrot.lane.b32.xlu0 %v1539, 120
    %v1747 = vpop.permute.xlu0 %1746
    %1748 = vrot.lane.b32.xlu0 %v1544, 120
    %v1749 = vpop.permute.xlu0 %1748
    %1750 = vrot.lane.b32.xlu0 %v1539, 88
    %v1751 = vpop.permute.xlu0 %1750
    %1752 = vrot.lane.b32.xlu0 %v1544, 88
    %v1753 = vpop.permute.xlu0 %1752
    %v1754 = vsel %vm246, %v1747, 0
    %v1756 = vsel %vm246, %v1749, 0
    %v1758 = vsel %vm246, %v1751, 0
    %v1760 = vsel %vm246, %v1753, 0
    %1762 = vmatprep.subr.mxu0 0.0
    %1763 = vmatpush1.xpose.msra.mxu0 0.0
    %1764 = vmatprep.subr.mxu0 0.0
    %1765 = vmatpush1.xpose.msra.mxu0 0.0
    %1766 = vmatprep.subr.mxu0 0.0
    %1767 = vmatpush1.xpose.msra.mxu0 0.0
    %1768 = vmatprep.subr.mxu0 0.0
    %1769 = vmatpush1.xpose.msra.mxu0 0.0
    %1770 = vmatprep.subr.mxu0 0.0
    %1771 = vmatpush1.xpose.msra.mxu0 0.0
    %1772 = vmatprep.subr.mxu0 0.0
    %1773 = vmatpush1.xpose.msra.mxu0 0.0
    %1774 = vmatprep.subr.mxu0 0.0
    %1775 = vmatpush1.xpose.msra.mxu0 0.0
    %1776 = vmatprep.subr.mxu0 0.0
    %1777 = vmatpush1.xpose.msra.mxu0 0.0
    %1778 = vmatprep.subr.mxu0 0.0
    %1779 = vmatpush1.xpose.msra.mxu0 0.0
    %1780 = vmatprep.subr.mxu0 0.0
    %1781 = vmatpush1.xpose.msra.mxu0 0.0
    %1782 = vmatprep.subr.mxu0 0.0
    %1783 = vmatpush1.xpose.msra.mxu0 0.0
    %1784 = vmatprep.subr.mxu0 0.0
    %1785 = vmatpush1.xpose.msra.mxu0 0.0
    %1786 = vmatprep.subr.mxu0 0.0
    %1787 = vmatpush1.xpose.msra.mxu0 0.0
    %1788 = vmatprep.subr.mxu0 0.0
    %1789 = vmatpush1.xpose.msra.mxu0 0.0
    %1790 = vmatprep.subr.mxu0 0.0
    %1791 = vmatpush1.xpose.msra.mxu0 %v1760
    %1792 = vmatprep.subr.mxu0 0.0
    %1793 = vmatpush1.xpose.msra.mxu0 %v1758
    %1794 = vmatprep.subr.mxu0 0.0
    %1795 = vmatpush2.xpose.msra.mxu0 0.0
    %1796 = vmatprep.subr.mxu0 0.0
    %1797 = vmatpush2.xpose.msra.mxu0 0.0
    %1798 = vmatprep.subr.mxu0 0.0
    %1799 = vmatpush2.xpose.msra.mxu0 0.0
    %1800 = vmatprep.subr.mxu0 0.0
    %1801 = vmatpush2.xpose.msra.mxu0 0.0
    %1802 = vmatprep.subr.mxu0 0.0
    %1803 = vmatpush2.xpose.msra.mxu0 0.0
    %1804 = vmatprep.subr.mxu0 0.0
    %1805 = vmatpush2.xpose.msra.mxu0 0.0
    %1806 = vmatprep.subr.mxu0 0.0
    %1807 = vmatpush2.xpose.msra.mxu0 0.0
    %1808 = vmatprep.subr.mxu0 0.0
    %1809 = vmatpush2.xpose.msra.mxu0 0.0
    %1810 = vmatprep.subr.mxu0 0.0
    %1811 = vmatpush2.xpose.msra.mxu0 0.0
    %1812 = vmatprep.subr.mxu0 0.0
    %1813 = vmatpush2.xpose.msra.mxu0 0.0
    %1814 = vmatprep.subr.mxu0 0.0
    %1815 = vmatpush2.xpose.msra.mxu0 0.0
    %1816 = vmatprep.subr.mxu0 0.0
    %1817 = vmatpush2.xpose.msra.mxu0 0.0
    %1818 = vmatprep.subr.mxu0 0.0
    %1819 = vmatpush2.xpose.msra.mxu0 0.0
    %1820 = vmatprep.subr.mxu0 0.0
    %1821 = vmatpush2.xpose.msra.mxu0 0.0
    %1822 = vmatprep.subr.mxu0 0.0
    %1823 = vmatpush2.xpose.msra.mxu0 0.0
    %1824 = vmatprep.subr.mxu0 0.0
    %1825 = vmatpush2.xpose.msra.mxu0 0.0
    %1826 = vmatprep.mubr.f32.mxu0 0.0
    %1827 = vmatmul.mubr.f32.gmra.mxu0 %v1754
    %v1828 = vpop.f32.mrf.mxu0
    %v1829 = vadd.f32 %v145, %v1828
    %v1830 = vpop.f32.mrf.mxu0
    %1831 = vmatprep.mubr.f32.mxu0 0.0
    %1832 = vmatmul.mubr.f32.gmra.mxu0 %v1756
    %v1833 = vpop.f32.mrf.mxu0
    %v1834 = vadd.f32 %v146, %v1833
    %v1835 = vpop.f32.mrf.mxu0
    %1836 = vdwg.mxu0
    %v1837 = vsel %vm330, %v1829, -inf
    %1838 = vmax.xlane.f32.xlu0 %v1837
    %v1839 = vpop.xlane.xlu0 %1838
    %v1840 = vsel %vm334, %v1834, -inf
    %1841 = vmax.xlane.f32.xlu0 %v1840
    %v1842 = vpop.xlane.xlu0 %1841
    %v1843 = vsub.f32 %v1829, %v1839
    %v1844 = vsub.f32 %v1834, %v1842
    %v1845 = vmul.f32 %v1843, 1.442695
    %v1846 = vpow.pop %v1845
    %v1847 = vmul.f32 %v1844, 1.442695
    %v1848 = vpow.pop %v1847
    %v1849 = vsel %vm330, %v1846, 0.0
    %1850 = vadd.xlane.f32.xlu0 %v1849
    %v1851 = vpop.xlane.xlu0 %1850
    %v1852 = vsel %vm334, %v1848, 0.0
    %1853 = vadd.xlane.f32.xlu0 %v1852
    %v1854 = vpop.xlane.xlu0 %1853
    %v1855 = vrcp.pop %v1851
    %v1856 = vrcp.pop %v1854
    %v1857 = vmul.f32 %v1846, %v1855
    %v1858 = vmul.f32 %v1848, %v1856
    %1859 = vrot.lane.b32.xlu0 %v1539, 56
    %v1860 = vpop.permute.xlu0 %1859
    %1861 = vrot.lane.b32.xlu0 %v1544, 56
    %v1862 = vpop.permute.xlu0 %1861
    %v1865 = vsel %vm330, %v1857, 0
    %v1868 = vsel %vm330, %v1858, 0
    %v1870 = vsel %vm365, %v1862, 0
    %1872 = vmatprep.subr.mxu0 0.0
    %1873 = vmatpush1.msra.mxu0 0.0
    %1874 = vmatprep.subr.mxu0 0.0
    %1875 = vmatpush1.msra.mxu0 0.0
    %1876 = vmatprep.subr.mxu0 0.0
    %1877 = vmatpush1.msra.mxu0 0.0
    %1878 = vmatprep.subr.mxu0 0.0
    %1879 = vmatpush1.msra.mxu0 0.0
    %1880 = vmatprep.subr.mxu0 0.0
    %1881 = vmatpush1.msra.mxu0 0.0
    %1882 = vmatprep.subr.mxu0 0.0
    %1883 = vmatpush1.msra.mxu0 0.0
    %1884 = vmatprep.subr.mxu0 0.0
    %1885 = vmatpush1.msra.mxu0 0.0
    %1886 = vmatprep.subr.mxu0 0.0
    %1887 = vmatpush1.msra.mxu0 0.0
    %1888 = vmatprep.subr.mxu0 0.0
    %1889 = vmatpush1.msra.mxu0 0.0
    %1890 = vmatprep.subr.mxu0 0.0
    %1891 = vmatpush1.msra.mxu0 0.0
    %1892 = vmatprep.subr.mxu0 0.0
    %1893 = vmatpush1.msra.mxu0 0.0
    %1894 = vmatprep.subr.mxu0 0.0
    %1895 = vmatpush1.msra.mxu0 0.0
    %1896 = vmatprep.subr.mxu0 0.0
    %1897 = vmatpush1.msra.mxu0 0.0
    %1898 = vmatprep.subr.mxu0 0.0
    %1899 = vmatpush1.msra.mxu0 0.0
    %1900 = vmatprep.subr.mxu0 0.0
    %1901 = vmatpush1.msra.mxu0 %v1870
    %1902 = vmatprep.subr.mxu0 0.0
    %1903 = vmatpush1.msra.mxu0 %v1860
    %1904 = vmatprep.subr.mxu0 0.0
    %1905 = vmatpush2.msra.mxu0 0.0
    %1906 = vmatprep.subr.mxu0 0.0
    %1907 = vmatpush2.msra.mxu0 0.0
    %1908 = vmatprep.subr.mxu0 0.0
    %1909 = vmatpush2.msra.mxu0 0.0
    %1910 = vmatprep.subr.mxu0 0.0
    %1911 = vmatpush2.msra.mxu0 0.0
    %1912 = vmatprep.subr.mxu0 0.0
    %1913 = vmatpush2.msra.mxu0 0.0
    %1914 = vmatprep.subr.mxu0 0.0
    %1915 = vmatpush2.msra.mxu0 0.0
    %1916 = vmatprep.subr.mxu0 0.0
    %1917 = vmatpush2.msra.mxu0 0.0
    %1918 = vmatprep.subr.mxu0 0.0
    %1919 = vmatpush2.msra.mxu0 0.0
    %1920 = vmatprep.subr.mxu0 0.0
    %1921 = vmatpush2.msra.mxu0 0.0
    %1922 = vmatprep.subr.mxu0 0.0
    %1923 = vmatpush2.msra.mxu0 0.0
    %1924 = vmatprep.subr.mxu0 0.0
    %1925 = vmatpush2.msra.mxu0 0.0
    %1926 = vmatprep.subr.mxu0 0.0
    %1927 = vmatpush2.msra.mxu0 0.0
    %1928 = vmatprep.subr.mxu0 0.0
    %1929 = vmatpush2.msra.mxu0 0.0
    %1930 = vmatprep.subr.mxu0 0.0
    %1931 = vmatpush2.msra.mxu0 0.0
    %1932 = vmatprep.subr.mxu0 0.0
    %1933 = vmatpush2.msra.mxu0 0.0
    %1934 = vmatprep.subr.mxu0 0.0
    %1935 = vmatpush2.msra.mxu0 0.0
    %1936 = vmatprep.mubr.f32.mxu0 0.0
    %1937 = vmatmul.mubr.f32.gmra.mxu0 %v1865
    %v1938 = vpop.f32.mrf.mxu0
    %v1939 = vadd.f32 0.0, %v1938
    %v1940 = vpop.f32.mrf.mxu0
    %1941 = vmatprep.mubr.f32.mxu0 0.0
    %1942 = vmatmul.mubr.f32.gmra.mxu0 %v1868
    %v1943 = vpop.f32.mrf.mxu0
    %v1944 = vadd.f32 0.0, %v1943
    %v1945 = vpop.f32.mrf.mxu0
    %1946 = vdwg.mxu0
    %1947 = vrot.lane.b32.xlu0 %v1539, 112
    %v1948 = vpop.permute.xlu0 %1947
    %1949 = vrot.lane.b32.xlu0 %v1544, 112
    %v1950 = vpop.permute.xlu0 %1949
    %1951 = vrot.lane.b32.xlu0 %v1539, 80
    %v1952 = vpop.permute.xlu0 %1951
    %1953 = vrot.lane.b32.xlu0 %v1544, 80
    %v1954 = vpop.permute.xlu0 %1953
    %v1955 = vsel %vm246, %v1948, 0
    %v1957 = vsel %vm246, %v1950, 0
    %v1959 = vsel %vm246, %v1952, 0
    %v1961 = vsel %vm246, %v1954, 0
    %1963 = vmatprep.subr.mxu0 0.0
    %1964 = vmatpush1.xpose.msra.mxu0 0.0
    %1965 = vmatprep.subr.mxu0 0.0
    %1966 = vmatpush1.xpose.msra.mxu0 0.0
    %1967 = vmatprep.subr.mxu0 0.0
    %1968 = vmatpush1.xpose.msra.mxu0 0.0
    %1969 = vmatprep.subr.mxu0 0.0
    %1970 = vmatpush1.xpose.msra.mxu0 0.0
    %1971 = vmatprep.subr.mxu0 0.0
    %1972 = vmatpush1.xpose.msra.mxu0 0.0
    %1973 = vmatprep.subr.mxu0 0.0
    %1974 = vmatpush1.xpose.msra.mxu0 0.0
    %1975 = vmatprep.subr.mxu0 0.0
    %1976 = vmatpush1.xpose.msra.mxu0 0.0
    %1977 = vmatprep.subr.mxu0 0.0
    %1978 = vmatpush1.xpose.msra.mxu0 0.0
    %1979 = vmatprep.subr.mxu0 0.0
    %1980 = vmatpush1.xpose.msra.mxu0 0.0
    %1981 = vmatprep.subr.mxu0 0.0
    %1982 = vmatpush1.xpose.msra.mxu0 0.0
    %1983 = vmatprep.subr.mxu0 0.0
    %1984 = vmatpush1.xpose.msra.mxu0 0.0
    %1985 = vmatprep.subr.mxu0 0.0
    %1986 = vmatpush1.xpose.msra.mxu0 0.0
    %1987 = vmatprep.subr.mxu0 0.0
    %1988 = vmatpush1.xpose.msra.mxu0 0.0
    %1989 = vmatprep.subr.mxu0 0.0
    %1990 = vmatpush1.xpose.msra.mxu0 0.0
    %1991 = vmatprep.subr.mxu0 0.0
    %1992 = vmatpush1.xpose.msra.mxu0 %v1961
    %1993 = vmatprep.subr.mxu0 0.0
    %1994 = vmatpush1.xpose.msra.mxu0 %v1959
    %1995 = vmatprep.subr.mxu0 0.0
    %1996 = vmatpush2.xpose.msra.mxu0 0.0
    %1997 = vmatprep.subr.mxu0 0.0
    %1998 = vmatpush2.xpose.msra.mxu0 0.0
    %1999 = vmatprep.subr.mxu0 0.0
    %2000 = vmatpush2.xpose.msra.mxu0 0.0
    %2001 = vmatprep.subr.mxu0 0.0
    %2002 = vmatpush2.xpose.msra.mxu0 0.0
    %2003 = vmatprep.subr.mxu0 0.0
    %2004 = vmatpush2.xpose.msra.mxu0 0.0
    %2005 = vmatprep.subr.mxu0 0.0
    %2006 = vmatpush2.xpose.msra.mxu0 0.0
    %2007 = vmatprep.subr.mxu0 0.0
    %2008 = vmatpush2.xpose.msra.mxu0 0.0
    %2009 = vmatprep.subr.mxu0 0.0
    %2010 = vmatpush2.xpose.msra.mxu0 0.0
    %2011 = vmatprep.subr.mxu0 0.0
    %2012 = vmatpush2.xpose.msra.mxu0 0.0
    %2013 = vmatprep.subr.mxu0 0.0
    %2014 = vmatpush2.xpose.msra.mxu0 0.0
    %2015 = vmatprep.subr.mxu0 0.0
    %2016 = vmatpush2.xpose.msra.mxu0 0.0
    %2017 = vmatprep.subr.mxu0 0.0
    %2018 = vmatpush2.xpose.msra.mxu0 0.0
    %2019 = vmatprep.subr.mxu0 0.0
    %2020 = vmatpush2.xpose.msra.mxu0 0.0
    %2021 = vmatprep.subr.mxu0 0.0
    %2022 = vmatpush2.xpose.msra.mxu0 0.0
    %2023 = vmatprep.subr.mxu0 0.0
    %2024 = vmatpush2.xpose.msra.mxu0 0.0
    %2025 = vmatprep.subr.mxu0 0.0
    %2026 = vmatpush2.xpose.msra.mxu0 0.0
    %2027 = vmatprep.mubr.f32.mxu0 0.0
    %2028 = vmatmul.mubr.f32.gmra.mxu0 %v1955
    %v2029 = vpop.f32.mrf.mxu0
    %v2030 = vadd.f32 %v145, %v2029
    %v2031 = vpop.f32.mrf.mxu0
    %2032 = vmatprep.mubr.f32.mxu0 0.0
    %2033 = vmatmul.mubr.f32.gmra.mxu0 %v1957
    %v2034 = vpop.f32.mrf.mxu0
    %v2035 = vadd.f32 %v146, %v2034
    %v2036 = vpop.f32.mrf.mxu0
    %2037 = vdwg.mxu0
    %v2038 = vsel %vm330, %v2030, -inf
    %2039 = vmax.xlane.f32.xlu0 %v2038
    %v2040 = vpop.xlane.xlu0 %2039
    %v2041 = vsel %vm334, %v2035, -inf
    %2042 = vmax.xlane.f32.xlu0 %v2041
    %v2043 = vpop.xlane.xlu0 %2042
    %v2044 = vsub.f32 %v2030, %v2040
    %v2045 = vsub.f32 %v2035, %v2043
    %v2046 = vmul.f32 %v2044, 1.442695
    %v2047 = vpow.pop %v2046
    %v2048 = vmul.f32 %v2045, 1.442695
    %v2049 = vpow.pop %v2048
    %v2050 = vsel %vm330, %v2047, 0.0
    %2051 = vadd.xlane.f32.xlu0 %v2050
    %v2052 = vpop.xlane.xlu0 %2051
    %v2053 = vsel %vm334, %v2049, 0.0
    %2054 = vadd.xlane.f32.xlu0 %v2053
    %v2055 = vpop.xlane.xlu0 %2054
    %v2056 = vrcp.pop %v2052
    %v2057 = vrcp.pop %v2055
    %v2058 = vmul.f32 %v2047, %v2056
    %v2059 = vmul.f32 %v2049, %v2057
    %2060 = vrot.lane.b32.xlu0 %v1539, 48
    %v2061 = vpop.permute.xlu0 %2060
    %2062 = vrot.lane.b32.xlu0 %v1544, 48
    %v2063 = vpop.permute.xlu0 %2062
    %v2066 = vsel %vm330, %v2058, 0
    %v2069 = vsel %vm330, %v2059, 0
    %v2071 = vsel %vm365, %v2063, 0
    %2073 = vmatprep.subr.mxu0 0.0
    %2074 = vmatpush1.msra.mxu0 0.0
    %2075 = vmatprep.subr.mxu0 0.0
    %2076 = vmatpush1.msra.mxu0 0.0
    %2077 = vmatprep.subr.mxu0 0.0
    %2078 = vmatpush1.msra.mxu0 0.0
    %2079 = vmatprep.subr.mxu0 0.0
    %2080 = vmatpush1.msra.mxu0 0.0
    %2081 = vmatprep.subr.mxu0 0.0
    %2082 = vmatpush1.msra.mxu0 0.0
    %2083 = vmatprep.subr.mxu0 0.0
    %2084 = vmatpush1.msra.mxu0 0.0
    %2085 = vmatprep.subr.mxu0 0.0
    %2086 = vmatpush1.msra.mxu0 0.0
    %2087 = vmatprep.subr.mxu0 0.0
    %2088 = vmatpush1.msra.mxu0 0.0
    %2089 = vmatprep.subr.mxu0 0.0
    %2090 = vmatpush1.msra.mxu0 0.0
    %2091 = vmatprep.subr.mxu0 0.0
    %2092 = vmatpush1.msra.mxu0 0.0
    %2093 = vmatprep.subr.mxu0 0.0
    %2094 = vmatpush1.msra.mxu0 0.0
    %2095 = vmatprep.subr.mxu0 0.0
    %2096 = vmatpush1.msra.mxu0 0.0
    %2097 = vmatprep.subr.mxu0 0.0
    %2098 = vmatpush1.msra.mxu0 0.0
    %2099 = vmatprep.subr.mxu0 0.0
    %2100 = vmatpush1.msra.mxu0 0.0
    %2101 = vmatprep.subr.mxu0 0.0
    %2102 = vmatpush1.msra.mxu0 %v2071
    %2103 = vmatprep.subr.mxu0 0.0
    %2104 = vmatpush1.msra.mxu0 %v2061
    %2105 = vmatprep.subr.mxu0 0.0
    %2106 = vmatpush2.msra.mxu0 0.0
    %2107 = vmatprep.subr.mxu0 0.0
    %2108 = vmatpush2.msra.mxu0 0.0
    %2109 = vmatprep.subr.mxu0 0.0
    %2110 = vmatpush2.msra.mxu0 0.0
    %2111 = vmatprep.subr.mxu0 0.0
    %2112 = vmatpush2.msra.mxu0 0.0
    %2113 = vmatprep.subr.mxu0 0.0
    %2114 = vmatpush2.msra.mxu0 0.0
    %2115 = vmatprep.subr.mxu0 0.0
    %2116 = vmatpush2.msra.mxu0 0.0
    %2117 = vmatprep.subr.mxu0 0.0
    %2118 = vmatpush2.msra.mxu0 0.0
    %2119 = vmatprep.subr.mxu0 0.0
    %2120 = vmatpush2.msra.mxu0 0.0
    %2121 = vmatprep.subr.mxu0 0.0
    %2122 = vmatpush2.msra.mxu0 0.0
    %2123 = vmatprep.subr.mxu0 0.0
    %2124 = vmatpush2.msra.mxu0 0.0
    %2125 = vmatprep.subr.mxu0 0.0
    %2126 = vmatpush2.msra.mxu0 0.0
    %2127 = vmatprep.subr.mxu0 0.0
    %2128 = vmatpush2.msra.mxu0 0.0
    %2129 = vmatprep.subr.mxu0 0.0
    %2130 = vmatpush2.msra.mxu0 0.0
    %2131 = vmatprep.subr.mxu0 0.0
    %2132 = vmatpush2.msra.mxu0 0.0
    %2133 = vmatprep.subr.mxu0 0.0
    %2134 = vmatpush2.msra.mxu0 0.0
    %2135 = vmatprep.subr.mxu0 0.0
    %2136 = vmatpush2.msra.mxu0 0.0
    %2137 = vmatprep.mubr.f32.mxu0 0.0
    %2138 = vmatmul.mubr.f32.gmra.mxu0 %v2066
    %v2139 = vpop.f32.mrf.mxu0
    %v2140 = vadd.f32 0.0, %v2139
    %v2141 = vpop.f32.mrf.mxu0
    %2142 = vmatprep.mubr.f32.mxu0 0.0
    %2143 = vmatmul.mubr.f32.gmra.mxu0 %v2069
    %v2144 = vpop.f32.mrf.mxu0
    %v2145 = vadd.f32 0.0, %v2144
    %v2146 = vpop.f32.mrf.mxu0
    %2147 = vdwg.mxu0
    %2148 = vrot.lane.b32.xlu0 %v1539, 104
    %v2149 = vpop.permute.xlu0 %2148
    %2150 = vrot.lane.b32.xlu0 %v1544, 104
    %v2151 = vpop.permute.xlu0 %2150
    %2152 = vrot.lane.b32.xlu0 %v1539, 72
    %v2153 = vpop.permute.xlu0 %2152
    %2154 = vrot.lane.b32.xlu0 %v1544, 72
    %v2155 = vpop.permute.xlu0 %2154
    %v2156 = vsel %vm246, %v2149, 0
    %v2158 = vsel %vm246, %v2151, 0
    %v2160 = vsel %vm246, %v2153, 0
    %v2162 = vsel %vm246, %v2155, 0
    %2164 = vmatprep.subr.mxu0 0.0
    %2165 = vmatpush1.xpose.msra.mxu0 0.0
    %2166 = vmatprep.subr.mxu0 0.0
    %2167 = vmatpush1.xpose.msra.mxu0 0.0
    %2168 = vmatprep.subr.mxu0 0.0
    %2169 = vmatpush1.xpose.msra.mxu0 0.0
    %2170 = vmatprep.subr.mxu0 0.0
    %2171 = vmatpush1.xpose.msra.mxu0 0.0
    %2172 = vmatprep.subr.mxu0 0.0
    %2173 = vmatpush1.xpose.msra.mxu0 0.0
    %2174 = vmatprep.subr.mxu0 0.0
    %2175 = vmatpush1.xpose.msra.mxu0 0.0
    %2176 = vmatprep.subr.mxu0 0.0
    %2177 = vmatpush1.xpose.msra.mxu0 0.0
    %2178 = vmatprep.subr.mxu0 0.0
    %2179 = vmatpush1.xpose.msra.mxu0 0.0
    %2180 = vmatprep.subr.mxu0 0.0
    %2181 = vmatpush1.xpose.msra.mxu0 0.0
    %2182 = vmatprep.subr.mxu0 0.0
    %2183 = vmatpush1.xpose.msra.mxu0 0.0
    %2184 = vmatprep.subr.mxu0 0.0
    %2185 = vmatpush1.xpose.msra.mxu0 0.0
    %2186 = vmatprep.subr.mxu0 0.0
    %2187 = vmatpush1.xpose.msra.mxu0 0.0
    %2188 = vmatprep.subr.mxu0 0.0
    %2189 = vmatpush1.xpose.msra.mxu0 0.0
    %2190 = vmatprep.subr.mxu0 0.0
    %2191 = vmatpush1.xpose.msra.mxu0 0.0
    %2192 = vmatprep.subr.mxu0 0.0
    %2193 = vmatpush1.xpose.msra.mxu0 %v2162
    %2194 = vmatprep.subr.mxu0 0.0
    %2195 = vmatpush1.xpose.msra.mxu0 %v2160
    %2196 = vmatprep.subr.mxu0 0.0
    %2197 = vmatpush2.xpose.msra.mxu0 0.0
    %2198 = vmatprep.subr.mxu0 0.0
    %2199 = vmatpush2.xpose.msra.mxu0 0.0
    %2200 = vmatprep.subr.mxu0 0.0
    %2201 = vmatpush2.xpose.msra.mxu0 0.0
    %2202 = vmatprep.subr.mxu0 0.0
    %2203 = vmatpush2.xpose.msra.mxu0 0.0
    %2204 = vmatprep.subr.mxu0 0.0
    %2205 = vmatpush2.xpose.msra.mxu0 0.0
    %2206 = vmatprep.subr.mxu0 0.0
    %2207 = vmatpush2.xpose.msra.mxu0 0.0
    %2208 = vmatprep.subr.mxu0 0.0
    %2209 = vmatpush2.xpose.msra.mxu0 0.0
    %2210 = vmatprep.subr.mxu0 0.0
    %2211 = vmatpush2.xpose.msra.mxu0 0.0
    %2212 = vmatprep.subr.mxu0 0.0
    %2213 = vmatpush2.xpose.msra.mxu0 0.0
    %2214 = vmatprep.subr.mxu0 0.0
    %2215 = vmatpush2.xpose.msra.mxu0 0.0
    %2216 = vmatprep.subr.mxu0 0.0
    %2217 = vmatpush2.xpose.msra.mxu0 0.0
    %2218 = vmatprep.subr.mxu0 0.0
    %2219 = vmatpush2.xpose.msra.mxu0 0.0
    %2220 = vmatprep.subr.mxu0 0.0
    %2221 = vmatpush2.xpose.msra.mxu0 0.0
    %2222 = vmatprep.subr.mxu0 0.0
    %2223 = vmatpush2.xpose.msra.mxu0 0.0
    %2224 = vmatprep.subr.mxu0 0.0
    %2225 = vmatpush2.xpose.msra.mxu0 0.0
    %2226 = vmatprep.subr.mxu0 0.0
    %2227 = vmatpush2.xpose.msra.mxu0 0.0
    %2228 = vmatprep.mubr.f32.mxu0 0.0
    %2229 = vmatmul.mubr.f32.gmra.mxu0 %v2156
    %v2230 = vpop.f32.mrf.mxu0
    %v2231 = vadd.f32 %v145, %v2230
    %v2232 = vpop.f32.mrf.mxu0
    %2233 = vmatprep.mubr.f32.mxu0 0.0
    %2234 = vmatmul.mubr.f32.gmra.mxu0 %v2158
    %v2235 = vpop.f32.mrf.mxu0
    %v2236 = vadd.f32 %v146, %v2235
    %v2237 = vpop.f32.mrf.mxu0
    %2238 = vdwg.mxu0
    %v2239 = vsel %vm330, %v2231, -inf
    %2240 = vmax.xlane.f32.xlu0 %v2239
    %v2241 = vpop.xlane.xlu0 %2240
    %v2242 = vsel %vm334, %v2236, -inf
    %2243 = vmax.xlane.f32.xlu0 %v2242
    %v2244 = vpop.xlane.xlu0 %2243
    %v2245 = vsub.f32 %v2231, %v2241
    %v2246 = vsub.f32 %v2236, %v2244
    %v2247 = vmul.f32 %v2245, 1.442695
    %v2248 = vpow.pop %v2247
    %v2249 = vmul.f32 %v2246, 1.442695
    %v2250 = vpow.pop %v2249
    %v2251 = vsel %vm330, %v2248, 0.0
    %2252 = vadd.xlane.f32.xlu0 %v2251
    %v2253 = vpop.xlane.xlu0 %2252
    %v2254 = vsel %vm334, %v2250, 0.0
    %2255 = vadd.xlane.f32.xlu0 %v2254
    %v2256 = vpop.xlane.xlu0 %2255
    %v2257 = vrcp.pop %v2253
    %v2258 = vrcp.pop %v2256
    %v2259 = vmul.f32 %v2248, %v2257
    %v2260 = vmul.f32 %v2250, %v2258
    %2261 = vrot.lane.b32.xlu0 %v1539, 40
    %v2262 = vpop.permute.xlu0 %2261
    %2263 = vrot.lane.b32.xlu0 %v1544, 40
    %v2264 = vpop.permute.xlu0 %2263
    %v2267 = vsel %vm330, %v2259, 0
    %v2270 = vsel %vm330, %v2260, 0
    %v2272 = vsel %vm365, %v2264, 0
    %2274 = vmatprep.subr.mxu0 0.0
    %2275 = vmatpush1.msra.mxu0 0.0
    %2276 = vmatprep.subr.mxu0 0.0
    %2277 = vmatpush1.msra.mxu0 0.0
    %2278 = vmatprep.subr.mxu0 0.0
    %2279 = vmatpush1.msra.mxu0 0.0
    %2280 = vmatprep.subr.mxu0 0.0
    %2281 = vmatpush1.msra.mxu0 0.0
    %2282 = vmatprep.subr.mxu0 0.0
    %2283 = vmatpush1.msra.mxu0 0.0
    %2284 = vmatprep.subr.mxu0 0.0
    %2285 = vmatpush1.msra.mxu0 0.0
    %2286 = vmatprep.subr.mxu0 0.0
    %2287 = vmatpush1.msra.mxu0 0.0
    %2288 = vmatprep.subr.mxu0 0.0
    %2289 = vmatpush1.msra.mxu0 0.0
    %2290 = vmatprep.subr.mxu0 0.0
    %2291 = vmatpush1.msra.mxu0 0.0
    %2292 = vmatprep.subr.mxu0 0.0
    %2293 = vmatpush1.msra.mxu0 0.0
    %2294 = vmatprep.subr.mxu0 0.0
    %2295 = vmatpush1.msra.mxu0 0.0
    %2296 = vmatprep.subr.mxu0 0.0
    %2297 = vmatpush1.msra.mxu0 0.0
    %2298 = vmatprep.subr.mxu0 0.0
    %2299 = vmatpush1.msra.mxu0 0.0
    %2300 = vmatprep.subr.mxu0 0.0
    %2301 = vmatpush1.msra.mxu0 0.0
    %2302 = vmatprep.subr.mxu0 0.0
    %2303 = vmatpush1.msra.mxu0 %v2272
    %2304 = vmatprep.subr.mxu0 0.0
    %2305 = vmatpush1.msra.mxu0 %v2262
    %2306 = vmatprep.subr.mxu0 0.0
    %2307 = vmatpush2.msra.mxu0 0.0
    %2308 = vmatprep.subr.mxu0 0.0
    %2309 = vmatpush2.msra.mxu0 0.0
    %2310 = vmatprep.subr.mxu0 0.0
    %2311 = vmatpush2.msra.mxu0 0.0
    %2312 = vmatprep.subr.mxu0 0.0
    %2313 = vmatpush2.msra.mxu0 0.0
    %2314 = vmatprep.subr.mxu0 0.0
    %2315 = vmatpush2.msra.mxu0 0.0
    %2316 = vmatprep.subr.mxu0 0.0
    %2317 = vmatpush2.msra.mxu0 0.0
    %2318 = vmatprep.subr.mxu0 0.0
    %2319 = vmatpush2.msra.mxu0 0.0
    %2320 = vmatprep.subr.mxu0 0.0
    %2321 = vmatpush2.msra.mxu0 0.0
    %2322 = vmatprep.subr.mxu0 0.0
    %2323 = vmatpush2.msra.mxu0 0.0
    %2324 = vmatprep.subr.mxu0 0.0
    %2325 = vmatpush2.msra.mxu0 0.0
    %2326 = vmatprep.subr.mxu0 0.0
    %2327 = vmatpush2.msra.mxu0 0.0
    %2328 = vmatprep.subr.mxu0 0.0
    %2329 = vmatpush2.msra.mxu0 0.0
    %2330 = vmatprep.subr.mxu0 0.0
    %2331 = vmatpush2.msra.mxu0 0.0
    %2332 = vmatprep.subr.mxu0 0.0
    %2333 = vmatpush2.msra.mxu0 0.0
    %2334 = vmatprep.subr.mxu0 0.0
    %2335 = vmatpush2.msra.mxu0 0.0
    %2336 = vmatprep.subr.mxu0 0.0
    %2337 = vmatpush2.msra.mxu0 0.0
    %2338 = vmatprep.mubr.f32.mxu0 0.0
    %2339 = vmatmul.mubr.f32.gmra.mxu0 %v2267
    %v2340 = vpop.f32.mrf.mxu0
    %v2341 = vadd.f32 0.0, %v2340
    %v2342 = vpop.f32.mrf.mxu0
    %2343 = vmatprep.mubr.f32.mxu0 0.0
    %2344 = vmatmul.mubr.f32.gmra.mxu0 %v2270
    %v2345 = vpop.f32.mrf.mxu0
    %v2346 = vadd.f32 0.0, %v2345
    %v2347 = vpop.f32.mrf.mxu0
    %2348 = vdwg.mxu0
    %2351 = vrot.lane.b32.xlu0 %v1939, 8
    %v2352 = vpop.permute.xlu0 %2351
    %2353 = vrot.lane.b32.xlu0 %v1944, 8
    %v2354 = vpop.permute.xlu0 %2353
    %2359 = vrot.lane.b32.xlu0 %v2140, 16
    %v2360 = vpop.permute.xlu0 %2359
    %2361 = vrot.lane.b32.xlu0 %v2145, 16
    %v2362 = vpop.permute.xlu0 %2361
    %2367 = vrot.lane.b32.xlu0 %v2341, 24
    %v2368 = vpop.permute.xlu0 %2367
    %2369 = vrot.lane.b32.xlu0 %v2346, 24
    %v2370 = vpop.permute.xlu0 %2369
    %v2373 = vsel %vm246, %v1738, %v2352
    %v2374 = vsel %vm246, %v1743, %v2354
    %v2375 = vsel %vm1072, %v2373, %v2360
    %v2376 = vsel %vm1072, %v2374, %v2362
    %v2377 = vsel %vm1075, %v2375, %v2368
    %v2378 = vsel %vm1075, %v2376, %v2370
    %s2379 = scalar_lea.vmem %s5, 96
    %v2380 = vld [vmem:[%s2379] sm:$0xff]
    %v2381 = vld [vmem:[%s2379 + $0x8] sm:$0xff]
    %v2382 = vld [vmem:[%s2379 + $0x10] sm:$0xff]
    %v2383 = vld [vmem:[%s2379 + $0x18] sm:$0xff]
    %v2384 = vld [vmem:[%s6 + $0x9] sm:$0x1]
    %v2385 = vlaneseq
    %v2386 = vshrl.u32 %v2385, 7
    %v2387 = vsub.s32 0, %v2386
    %v2388 = vrot.slane %v2384, %v2387
    %v2390 = vsel %vm158, %v2377, 0
    %v2393 = vsel %vm158, %v2378, 0
    %2395 = vmatprep.subr.mxu0 0.0
    %2396 = vmatpush1.msra.mxu0 0.0
    %2397 = vmatprep.subr.mxu0 0.0
    %2398 = vmatpush1.msra.mxu0 0.0
    %2399 = vmatprep.subr.mxu0 0.0
    %2400 = vmatpush1.msra.mxu0 0.0
    %2401 = vmatprep.subr.mxu0 0.0
    %2402 = vmatpush1.msra.mxu0 0.0
    %2403 = vmatprep.subr.mxu0 0.0
    %2404 = vmatpush1.msra.mxu0 0.0
    %2405 = vmatprep.subr.mxu0 0.0
    %2406 = vmatpush1.msra.mxu0 0.0
    %2407 = vmatprep.subr.mxu0 0.0
    %2408 = vmatpush1.msra.mxu0 0.0
    %2409 = vmatprep.subr.mxu0 0.0
    %2410 = vmatpush1.msra.mxu0 0.0
    %2411 = vmatprep.subr.mxu0 0.0
    %2412 = vmatpush1.msra.mxu0 0.0
    %2413 = vmatprep.subr.mxu0 0.0
    %2414 = vmatpush1.msra.mxu0 0.0
    %2415 = vmatprep.subr.mxu0 0.0
    %2416 = vmatpush1.msra.mxu0 0.0
    %2417 = vmatprep.subr.mxu0 0.0
    %2418 = vmatpush1.msra.mxu0 0.0
    %2419 = vmatprep.subr.mxu0 0.0
    %2420 = vmatpush1.msra.mxu0 %v2383
    %2421 = vmatprep.subr.mxu0 0.0
    %2422 = vmatpush1.msra.mxu0 %v2382
    %2423 = vmatprep.subr.mxu0 0.0
    %2424 = vmatpush1.msra.mxu0 %v2381
    %2425 = vmatprep.subr.mxu0 0.0
    %2426 = vmatpush1.msra.mxu0 %v2380
    %2427 = vmatprep.subr.mxu0 0.0
    %2428 = vmatpush2.msra.mxu0 0.0
    %2429 = vmatprep.subr.mxu0 0.0
    %2430 = vmatpush2.msra.mxu0 0.0
    %2431 = vmatprep.subr.mxu0 0.0
    %2432 = vmatpush2.msra.mxu0 0.0
    %2433 = vmatprep.subr.mxu0 0.0
    %2434 = vmatpush2.msra.mxu0 0.0
    %2435 = vmatprep.subr.mxu0 0.0
    %2436 = vmatpush2.msra.mxu0 0.0
    %2437 = vmatprep.subr.mxu0 0.0
    %2438 = vmatpush2.msra.mxu0 0.0
    %2439 = vmatprep.subr.mxu0 0.0
    %2440 = vmatpush2.msra.mxu0 0.0
    %2441 = vmatprep.subr.mxu0 0.0
    %2442 = vmatpush2.msra.mxu0 0.0
    %2443 = vmatprep.subr.mxu0 0.0
    %2444 = vmatpush2.msra.mxu0 0.0
    %2445 = vmatprep.subr.mxu0 0.0
    %2446 = vmatpush2.msra.mxu0 0.0
    %2447 = vmatprep.subr.mxu0 0.0
    %2448 = vmatpush2.msra.mxu0 0.0
    %2449 = vmatprep.subr.mxu0 0.0
    %2450 = vmatpush2.msra.mxu0 0.0
    %2451 = vmatprep.subr.mxu0 0.0
    %2452 = vmatpush2.msra.mxu0 0.0
    %2453 = vmatprep.subr.mxu0 0.0
    %2454 = vmatpush2.msra.mxu0 0.0
    %2455 = vmatprep.subr.mxu0 0.0
    %2456 = vmatpush2.msra.mxu0 0.0
    %2457 = vmatprep.subr.mxu0 0.0
    %2458 = vmatpush2.msra.mxu0 0.0
    %2459 = vmatprep.mubr.f32.mxu0 0.0
    %2460 = vmatmul.mubr.f32.gmra.mxu0 %v2390
    %v2461 = vpop.f32.mrf.mxu0
    %v2462 = vadd.f32 %v2388, %v2461
    %v2463 = vpop.f32.mrf.mxu0
    %2464 = vmatprep.mubr.f32.mxu0 0.0
    %2465 = vmatmul.mubr.f32.gmra.mxu0 %v2393
    %v2466 = vpop.f32.mrf.mxu0
    %v2467 = vadd.f32 %v2388, %v2466
    %v2468 = vpop.f32.mrf.mxu0
    %2469 = vdwg.mxu0
    %v2470 = vadd.f32 %v1454, %v2462
    %v2471 = vadd.f32 %v1455, %v2467
    %v2472 = vld [vmem:[%s6 + $0xa] sm:$0x1]
    %v2473 = vld [vmem:[%s6 + $0xb] sm:$0x1]
    %v2474 = vsel %vm158, %v2470, 0.0
    %2475 = vadd.xlane.f32.xlu0 %v2474
    %v2476 = vpop.xlane.xlu0 %2475
    %v2477 = vsel %vm1175, %v2471, 0.0
    %2478 = vadd.xlane.f32.xlu0 %v2477
    %v2479 = vpop.xlane.xlu0 %2478
    %v2480 = vmul.f32 %v2476, %v1179
    %v2481 = vmul.f32 %v2479, %v1179
    %v2482 = vsub.f32 %v2470, %v2480
    %v2483 = vsub.f32 %v2471, %v2481
    %v2484 = vmul.f32 %v2482, %v2482
    %v2485 = vmul.f32 %v2483, %v2483
    %v2486 = vsel %vm158, %v2484, 0.0
    %2487 = vadd.xlane.f32.xlu0 %v2486
    %v2488 = vpop.xlane.xlu0 %2487
    %v2489 = vsel %vm1175, %v2485, 0.0
    %2490 = vadd.xlane.f32.xlu0 %v2489
    %v2491 = vpop.xlane.xlu0 %2490
    %v2492 = vmul.f32 %v2488, %v1179
    %v2493 = vmul.f32 %v2491, %v1179
    %v2494 = vadd.f32 %v2492, 1e-05
    %v2495 = vadd.f32 %v2493, 1e-05
    %v2496 = vrsqrt.pop %v2494
    %v2497 = vrsqrt.pop %v2495
    %v2498 = vmul.f32 %v2482, %v2496
    %v2499 = vmul.f32 %v2483, %v2497
    %v2500 = vlaneseq
    %v2501 = vshrl.u32 %v2500, 7
    %v2502 = vsub.s32 0, %v2501
    %v2503 = vrot.slane %v2472, %v2502
    %v2504 = vmul.f32 %v2498, %v2503
    %v2505 = vmul.f32 %v2499, %v2503
    %v2506 = vlaneseq
    %v2507 = vshrl.u32 %v2506, 7
    %v2508 = vsub.s32 0, %v2507
    %v2509 = vrot.slane %v2473, %v2508
    %v2510 = vadd.f32 %v2504, %v2509
    %v2511 = vadd.f32 %v2505, %v2509
    %s2512 = scalar_lea.vmem %s5, 128
    %v2513 = vld [vmem:[%s2512] sm:$0xff]
    %v2514 = vld [vmem:[%s2512 + $0x8] sm:$0xff]
    %v2515 = vld [vmem:[%s2512 + $0x10] sm:$0xff]
    %v2516 = vld [vmem:[%s2512 + $0x18] sm:$0xff]
    %v2517 = vld [vmem:[%s6 + $0xc] sm:$0x1]
    %v2518 = vlaneseq
    %v2519 = vshrl.u32 %v2518, 7
    %v2520 = vsub.s32 0, %v2519
    %v2521 = vrot.slane %v2517, %v2520
    %v2523 = vsel %vm158, %v2510, 0
    %v2526 = vsel %vm158, %v2511, 0
    %2528 = vmatprep.subr.mxu0 0.0
    %2529 = vmatpush1.msra.mxu0 0.0
    %2530 = vmatprep.subr.mxu0 0.0
    %2531 = vmatpush1.msra.mxu0 0.0
    %2532 = vmatprep.subr.mxu0 0.0
    %2533 = vmatpush1.msra.mxu0 0.0
    %2534 = vmatprep.subr.mxu0 0.0
    %2535 = vmatpush1.msra.mxu0 0.0
    %2536 = vmatprep.subr.mxu0 0.0
    %2537 = vmatpush1.msra.mxu0 0.0
    %2538 = vmatprep.subr.mxu0 0.0
    %2539 = vmatpush1.msra.mxu0 0.0
    %2540 = vmatprep.subr.mxu0 0.0
    %2541 = vmatpush1.msra.mxu0 0.0
    %2542 = vmatprep.subr.mxu0 0.0
    %2543 = vmatpush1.msra.mxu0 0.0
    %2544 = vmatprep.subr.mxu0 0.0
    %2545 = vmatpush1.msra.mxu0 0.0
    %2546 = vmatprep.subr.mxu0 0.0
    %2547 = vmatpush1.msra.mxu0 0.0
    %2548 = vmatprep.subr.mxu0 0.0
    %2549 = vmatpush1.msra.mxu0 0.0
    %2550 = vmatprep.subr.mxu0 0.0
    %2551 = vmatpush1.msra.mxu0 0.0
    %2552 = vmatprep.subr.mxu0 0.0
    %2553 = vmatpush1.msra.mxu0 %v2516
    %2554 = vmatprep.subr.mxu0 0.0
    %2555 = vmatpush1.msra.mxu0 %v2515
    %2556 = vmatprep.subr.mxu0 0.0
    %2557 = vmatpush1.msra.mxu0 %v2514
    %2558 = vmatprep.subr.mxu0 0.0
    %2559 = vmatpush1.msra.mxu0 %v2513
    %2560 = vmatprep.subr.mxu0 0.0
    %2561 = vmatpush2.msra.mxu0 0.0
    %2562 = vmatprep.subr.mxu0 0.0
    %2563 = vmatpush2.msra.mxu0 0.0
    %2564 = vmatprep.subr.mxu0 0.0
    %2565 = vmatpush2.msra.mxu0 0.0
    %2566 = vmatprep.subr.mxu0 0.0
    %2567 = vmatpush2.msra.mxu0 0.0
    %2568 = vmatprep.subr.mxu0 0.0
    %2569 = vmatpush2.msra.mxu0 0.0
    %2570 = vmatprep.subr.mxu0 0.0
    %2571 = vmatpush2.msra.mxu0 0.0
    %2572 = vmatprep.subr.mxu0 0.0
    %2573 = vmatpush2.msra.mxu0 0.0
    %2574 = vmatprep.subr.mxu0 0.0
    %2575 = vmatpush2.msra.mxu0 0.0
    %2576 = vmatprep.subr.mxu0 0.0
    %2577 = vmatpush2.msra.mxu0 0.0
    %2578 = vmatprep.subr.mxu0 0.0
    %2579 = vmatpush2.msra.mxu0 0.0
    %2580 = vmatprep.subr.mxu0 0.0
    %2581 = vmatpush2.msra.mxu0 0.0
    %2582 = vmatprep.subr.mxu0 0.0
    %2583 = vmatpush2.msra.mxu0 0.0
    %2584 = vmatprep.subr.mxu0 0.0
    %2585 = vmatpush2.msra.mxu0 0.0
    %2586 = vmatprep.subr.mxu0 0.0
    %2587 = vmatpush2.msra.mxu0 0.0
    %2588 = vmatprep.subr.mxu0 0.0
    %2589 = vmatpush2.msra.mxu0 0.0
    %2590 = vmatprep.subr.mxu0 0.0
    %2591 = vmatpush2.msra.mxu0 0.0
    %2592 = vmatprep.mubr.f32.mxu0 0.0
    %2593 = vmatmul.mubr.f32.gmra.mxu0 %v2523
    %v2594 = vpop.f32.mrf.mxu0
    %v2595 = vadd.f32 %v2521, %v2594
    %v2596 = vpop.f32.mrf.mxu0
    %2597 = vmatprep.mubr.f32.mxu0 0.0
    %2598 = vmatmul.mubr.f32.gmra.mxu0 %v2526
    %v2599 = vpop.f32.mrf.mxu0
    %v2600 = vadd.f32 %v2521, %v2599
    %v2601 = vpop.f32.mrf.mxu0
    %2602 = vdwg.mxu0
    %v2603 = vmul.f32 %v2595, 0.5
    %v2604 = vmul.f32 %v2600, 0.5
    %v2605 = vmul.f32 %v2595, 0.044715
    %v2606 = vmul.f32 %v2600, 0.044715
    %v2607 = vmul.f32 %v2605, %v2595
    %v2608 = vmul.f32 %v2606, %v2600
    %v2609 = vmul.f32 %v2607, %v2595
    %v2610 = vmul.f32 %v2608, %v2600
    %v2611 = vadd.f32 %v2595, %v2609
    %v2612 = vadd.f32 %v2600, %v2610
    %v2613 = vmul.f32 %v2611, 0.7978846
    %v2614 = vmul.f32 %v2612, 0.7978846
    %v2615 = vtanh.pop %v2613
    %v2616 = vtanh.pop %v2614
    %v2617 = vadd.f32 %v2615, 1.0
    %v2618 = vadd.f32 %v2616, 1.0
    %v2619 = vmul.f32 %v2603, %v2617
    %v2620 = vmul.f32 %v2604, %v2618
    %s2621 = scalar_lea.vmem %s5, 160
    %v2622 = vld [vmem:[%s2621] sm:$0xff]
    %v2623 = vld [vmem:[%s2621 + $0x8] sm:$0xff]
    %v2624 = vld [vmem:[%s2621 + $0x10] sm:$0xff]
    %v2625 = vld [vmem:[%s2621 + $0x18] sm:$0xff]
    %v2626 = vld [vmem:[%s6 + $0xd] sm:$0x1]
    %v2627 = vlaneseq
    %v2628 = vshrl.u32 %v2627, 7
    %v2629 = vsub.s32 0, %v2628
    %v2630 = vrot.slane %v2626, %v2629
    %v2632 = vsel %vm158, %v2619, 0
    %v2635 = vsel %vm158, %v2620, 0
    %2637 = vmatprep.subr.mxu0 0.0
    %2638 = vmatpush1.msra.mxu0 0.0
    %2639 = vmatprep.subr.mxu0 0.0
    %2640 = vmatpush1.msra.mxu0 0.0
    %2641 = vmatprep.subr.mxu0 0.0
    %2642 = vmatpush1.msra.mxu0 0.0
    %2643 = vmatprep.subr.mxu0 0.0
    %2644 = vmatpush1.msra.mxu0 0.0
    %2645 = vmatprep.subr.mxu0 0.0
    %2646 = vmatpush1.msra.mxu0 0.0
    %2647 = vmatprep.subr.mxu0 0.0
    %2648 = vmatpush1.msra.mxu0 0.0
    %2649 = vmatprep.subr.mxu0 0.0
    %2650 = vmatpush1.msra.mxu0 0.0
    %2651 = vmatprep.subr.mxu0 0.0
    %2652 = vmatpush1.msra.mxu0 0.0
    %2653 = vmatprep.subr.mxu0 0.0
    %2654 = vmatpush1.msra.mxu0 0.0
    %2655 = vmatprep.subr.mxu0 0.0
    %2656 = vmatpush1.msra.mxu0 0.0
    %2657 = vmatprep.subr.mxu0 0.0
    %2658 = vmatpush1.msra.mxu0 0.0
    %2659 = vmatprep.subr.mxu0 0.0
    %2660 = vmatpush1.msra.mxu0 0.0
    %2661 = vmatprep.subr.mxu0 0.0
    %2662 = vmatpush1.msra.mxu0 %v2625
    %2663 = vmatprep.subr.mxu0 0.0
    %2664 = vmatpush1.msra.mxu0 %v2624
    %2665 = vmatprep.subr.mxu0 0.0
    %2666 = vmatpush1.msra.mxu0 %v2623
    %2667 = vmatprep.subr.mxu0 0.0
    %2668 = vmatpush1.msra.mxu0 %v2622
    %2669 = vmatprep.subr.mxu0 0.0
    %2670 = vmatpush2.msra.mxu0 0.0
    %2671 = vmatprep.subr.mxu0 0.0
    %2672 = vmatpush2.msra.mxu0 0.0
    %2673 = vmatprep.subr.mxu0 0.0
    %2674 = vmatpush2.msra.mxu0 0.0
    %2675 = vmatprep.subr.mxu0 0.0
    %2676 = vmatpush2.msra.mxu0 0.0
    %2677 = vmatprep.subr.mxu0 0.0
    %2678 = vmatpush2.msra.mxu0 0.0
    %2679 = vmatprep.subr.mxu0 0.0
    %2680 = vmatpush2.msra.mxu0 0.0
    %2681 = vmatprep.subr.mxu0 0.0
    %2682 = vmatpush2.msra.mxu0 0.0
    %2683 = vmatprep.subr.mxu0 0.0
    %2684 = vmatpush2.msra.mxu0 0.0
    %2685 = vmatprep.subr.mxu0 0.0
    %2686 = vmatpush2.msra.mxu0 0.0
    %2687 = vmatprep.subr.mxu0 0.0
    %2688 = vmatpush2.msra.mxu0 0.0
    %2689 = vmatprep.subr.mxu0 0.0
    %2690 = vmatpush2.msra.mxu0 0.0
    %2691 = vmatprep.subr.mxu0 0.0
    %2692 = vmatpush2.msra.mxu0 0.0
    %2693 = vmatprep.subr.mxu0 0.0
    %2694 = vmatpush2.msra.mxu0 0.0
    %2695 = vmatprep.subr.mxu0 0.0
    %2696 = vmatpush2.msra.mxu0 0.0
    %2697 = vmatprep.subr.mxu0 0.0
    %2698 = vmatpush2.msra.mxu0 0.0
    %2699 = vmatprep.subr.mxu0 0.0
    %2700 = vmatpush2.msra.mxu0 0.0
    %2701 = vmatprep.mubr.f32.mxu0 0.0
    %2702 = vmatmul.mubr.f32.gmra.mxu0 %v2632
    %v2703 = vpop.f32.mrf.mxu0
    %v2704 = vadd.f32 %v2630, %v2703
    %v2705 = vpop.f32.mrf.mxu0
    %2706 = vmatprep.mubr.f32.mxu0 0.0
    %2707 = vmatmul.mubr.f32.gmra.mxu0 %v2635
    %v2708 = vpop.f32.mrf.mxu0
    %v2709 = vpop.f32.mrf.mxu0
    %2710 = vdwg.mxu0
    %v2711 = vadd.f32 %v2510, %v2704
    %v2712 = vld [vmem:[%s6 + $0xe] sm:$0x1]
    %v2713 = vld [vmem:[%s6 + $0xf] sm:$0x1]
    %v2714 = vsel %vm158, %v2711, 0.0
    %2715 = vadd.xlane.f32.xlu0 %v2714
    %v2716 = vpop.xlane.xlu0 %2715
    %v2717 = vmul.f32 %v2716, %v1179
    %v2718 = vsub.f32 %v2711, %v2717
    %v2719 = vmul.f32 %v2718, %v2718
    %v2720 = vsel %vm158, %v2719, 0.0
    %2721 = vadd.xlane.f32.xlu0 %v2720
    %v2722 = vpop.xlane.xlu0 %2721
    %v2723 = vmul.f32 %v2722, %v1179
    %v2724 = vadd.f32 %v2723, 1e-05
    %v2725 = vrsqrt.pop %v2724
    %v2726 = vmul.f32 %v2718, %v2725
    %v2727 = vlaneseq
    %v2728 = vshrl.u32 %v2727, 7
    %v2729 = vsub.s32 0, %v2728
    %v2730 = vrot.slane %v2712, %v2729
    %v2731 = vmul.f32 %v2726, %v2730
    %v2732 = vlaneseq
    %v2733 = vshrl.u32 %v2732, 7
    %v2734 = vsub.s32 0, %v2733
    %v2735 = vrot.slane %v2713, %v2734
    %v2736 = vadd.f32 %v2731, %v2735
    %v2737 = vld [vmem:[%s6 + $0x10] sm:$0x1]
    %v2738 = vld [vmem:[%s6 + $0x11] sm:$0x1]
    %v2739 = vsel %vm1175, %v2736, 0.0
    %2740 = vadd.xlane.f32.xlu0 %v2739
    %v2741 = vpop.xlane.xlu0 %2740
    %v2742 = vmul.f32 %v2741, %v1179
    %v2743 = vsub.f32 %v2736, %v2742
    %v2744 = vmul.f32 %v2743, %v2743
    %v2745 = vsel %vm1175, %v2744, 0.0
    %2746 = vadd.xlane.f32.xlu0 %v2745
    %v2747 = vpop.xlane.xlu0 %2746
    %v2748 = vmul.f32 %v2747, %v1179
    %v2749 = vadd.f32 %v2748, 1e-05
    %v2750 = vrsqrt.pop %v2749
    %v2751 = vmul.f32 %v2743, %v2750
    %v2752 = vlaneseq
    %v2753 = vshrl.u32 %v2752, 7
    %v2754 = vsub.s32 0, %v2753
    %v2755 = vrot.slane %v2737, %v2754
    %v2756 = vmul.f32 %v2751, %v2755
    %v2757 = vlaneseq
    %v2758 = vshrl.u32 %v2757, 7
    %v2759 = vsub.s32 0, %v2758
    %v2760 = vrot.slane %v2738, %v2759
    %v2761 = vadd.f32 %v2756, %v2760
    %v2762 = vld [vmem:[%s7] sm:$0xff]
    %v2763 = vld [vmem:[%s7 + $0x8] sm:$0xff]
    %v2764 = vld [vmem:[%s7 + $0x10] sm:$0xff]
    %v2765 = vld [vmem:[%s7 + $0x18] sm:$0xff]
    %v2766 = vld [vmem:[%s6 + $0x12] sm:$0x1]
    %v2767 = vlaneseq
    %v2768 = vshrl.u32 %v2767, 7
    %v2769 = vsub.s32 0, %v2768
    %v2770 = vrot.slane %v2766, %v2769
    %v2772 = vsel %vm158, %v2761, 0
    %2774 = vmatprep.subr.mxu0 0.0
    %2775 = vmatpush1.msra.mxu0 0.0
    %2776 = vmatprep.subr.mxu0 0.0
    %2777 = vmatpush1.msra.mxu0 0.0
    %2778 = vmatprep.subr.mxu0 0.0
    %2779 = vmatpush1.msra.mxu0 0.0
    %2780 = vmatprep.subr.mxu0 0.0
    %2781 = vmatpush1.msra.mxu0 0.0
    %2782 = vmatprep.subr.mxu0 0.0
    %2783 = vmatpush1.msra.mxu0 0.0
    %2784 = vmatprep.subr.mxu0 0.0
    %2785 = vmatpush1.msra.mxu0 0.0
    %2786 = vmatprep.subr.mxu0 0.0
    %2787 = vmatpush1.msra.mxu0 0.0
    %2788 = vmatprep.subr.mxu0 0.0
    %2789 = vmatpush1.msra.mxu0 0.0
    %2790 = vmatprep.subr.mxu0 0.0
    %2791 = vmatpush1.msra.mxu0 0.0
    %2792 = vmatprep.subr.mxu0 0.0
    %2793 = vmatpush1.msra.mxu0 0.0
    %2794 = vmatprep.subr.mxu0 0.0
    %2795 = vmatpush1.msra.mxu0 0.0
    %2796 = vmatprep.subr.mxu0 0.0
    %2797 = vmatpush1.msra.mxu0 0.0
    %2798 = vmatprep.subr.mxu0 0.0
    %2799 = vmatpush1.msra.mxu0 %v2765
    %2800 = vmatprep.subr.mxu0 0.0
    %2801 = vmatpush1.msra.mxu0 %v2764
    %2802 = vmatprep.subr.mxu0 0.0
    %2803 = vmatpush1.msra.mxu0 %v2763
    %2804 = vmatprep.subr.mxu0 0.0
    %2805 = vmatpush1.msra.mxu0 %v2762
    %2806 = vmatprep.subr.mxu0 0.0
    %2807 = vmatpush2.msra.mxu0 0.0
    %2808 = vmatprep.subr.mxu0 0.0
    %2809 = vmatpush2.msra.mxu0 0.0
    %2810 = vmatprep.subr.mxu0 0.0
    %2811 = vmatpush2.msra.mxu0 0.0
    %2812 = vmatprep.subr.mxu0 0.0
    %2813 = vmatpush2.msra.mxu0 0.0
    %2814 = vmatprep.subr.mxu0 0.0
    %2815 = vmatpush2.msra.mxu0 0.0
    %2816 = vmatprep.subr.mxu0 0.0
    %2817 = vmatpush2.msra.mxu0 0.0
    %2818 = vmatprep.subr.mxu0 0.0
    %2819 = vmatpush2.msra.mxu0 0.0
    %2820 = vmatprep.subr.mxu0 0.0
    %2821 = vmatpush2.msra.mxu0 0.0
    %2822 = vmatprep.subr.mxu0 0.0
    %2823 = vmatpush2.msra.mxu0 0.0
    %2824 = vmatprep.subr.mxu0 0.0
    %2825 = vmatpush2.msra.mxu0 0.0
    %2826 = vmatprep.subr.mxu0 0.0
    %2827 = vmatpush2.msra.mxu0 0.0
    %2828 = vmatprep.subr.mxu0 0.0
    %2829 = vmatpush2.msra.mxu0 0.0
    %2830 = vmatprep.subr.mxu0 0.0
    %2831 = vmatpush2.msra.mxu0 0.0
    %2832 = vmatprep.subr.mxu0 0.0
    %2833 = vmatpush2.msra.mxu0 0.0
    %2834 = vmatprep.subr.mxu0 0.0
    %2835 = vmatpush2.msra.mxu0 0.0
    %2836 = vmatprep.subr.mxu0 0.0
    %2837 = vmatpush2.msra.mxu0 0.0
    %2838 = vmatprep.mubr.f32.mxu0 0.0
    %2839 = vmatmul.mubr.f32.gmra.mxu0 %v2772
    %v2840 = vpop.f32.mrf.mxu0
    %v2841 = vadd.f32 %v2770, %v2840
    %v2842 = vpop.f32.mrf.mxu0
    %2843 = vdwg.mxu0
    %2844 = vst [vmem:[#allocation2] sm:$0x3] %v2841
    // Predicated region
    $region34: #{vit_forward.1} parent=1 // pred_check
      _
    $region35: #{vit_forward.1} parent=1 // pred_check_branch
      %2846 = sbr.rel (0) target = $region37
    $region36: #{vit_forward.1} parent=1 // pred_region
      %s2848 = ssub.s32 32, 32
      %2849 = vsyncadd [#allocation3], %s2848
      %s2851 = sshll.u32 [#allocation2], 4
      %s2852 = int_to_ptr.vmem [resolvable:$true] %s2851
      %2854 = dma.vmem_to_hbm [thread:$0]  %s2852, 32, %s8, [#allocation3]
    $region37: #{vit_forward.1} parent=1 // pred_fallthru
      _
    // Predicated region
    $region38: #{vit_forward.1} parent=1 // pred_check
      _
    $region39: #{vit_forward.1} parent=1 // pred_check_branch
      %2856 = sbr.rel (0) target = $region41
    $region40: #{vit_forward.1} parent=1 // pred_region
      %2857 = dma.done [#allocation3], 32
    $region41: #{vit_forward.1} parent=1 // pred_fallthru
      _
    %2858 = vsyncpa [#allocation3], 1

</llo_original>
